<compile_context>
chip_gen: v5e
topology: v5e:2x2
jax: 0.10.0
libtpu: 0.0.40
codegen_flags: <defaults>
</compile_context>

<pallas_src>
import jax
import jax.numpy as jnp
from jax import lax
from jax.experimental import pallas as pl
from jax.experimental.pallas import tpu as pltpu

LATENT_DIM = 100
LATENT_PAD = 128            # latent zero-padded to a lane-aligned K
IMG_FLAT = 28 * 28          # 784
IMG_PAD = 896               # 7 * 128, lane-dense final layer
BN_EPS = 0.8                # nn.BatchNorm1d(op_features, 0.8) -> eps=0.8
LRELU_SLOPE = 0.2

HIDDEN = [128, 256, 512, 1024]


def _lrelu(x):
    return jnp.where(x > 0, x, LRELU_SLOPE * x)


def generator_kernel(z_ref,
                     w1_ref, b1_ref,
                     w2_ref, g2_ref, be2_ref,
                     w3_ref, g3_ref, be3_ref,
                     w4_ref, g4_ref, be4_ref,
                     w5_ref, b5_ref,
                     out_ref):
    def matmul(x, w_ref):
        # bf16 x bf16 on the MXU, f32 accumulation.
        return jnp.dot(x.astype(jnp.bfloat16), w_ref[...],
                       preferred_element_type=jnp.float32)

    def bn_lrelu(y, g_ref, b_ref):
        # Training-mode BatchNorm1d: biased batch statistics over the batch
        # axis, eps=0.8, affine folded into one scale/shift.  The preceding
        # Linear bias is omitted upstream: mean subtraction cancels it.
        # Single-pass moments: var = E[y^2] - E[y]^2 (eps=0.8 dominates any
        # cancellation error).
        mean = jnp.mean(y, axis=0, keepdims=True)
        mean_sq = jnp.mean(y * y, axis=0, keepdims=True)
        var = mean_sq - mean * mean
        s = g_ref[...] * lax.rsqrt(var + BN_EPS)   # rsqrt -> EUP (free slot)
        t = b_ref[...] - mean * s
        return _lrelu(y * s + t)

    x = z_ref[...]                                        # (B, 128) f32
    # block(100 -> 128, no norm); padded latent columns are zero.
    x = _lrelu(matmul(x, w1_ref) + b1_ref[...])           # (B, 128)
    # block(128 -> 256) with BN
    x = bn_lrelu(matmul(x, w2_ref), g2_ref, be2_ref)      # (B, 256)
    # block(256 -> 512) with BN
    x = bn_lrelu(matmul(x, w3_ref), g3_ref, be3_ref)      # (B, 512)
    # block(512 -> 1024) with BN
    x = bn_lrelu(matmul(x, w4_ref), g4_ref, be4_ref)      # (B, 1024)
    # final Linear(1024 -> 784, padded to 896) + Tanh (tanh -> EUP)
    x = jnp.tanh(matmul(x, w5_ref) + b5_ref[...])         # (B, 896)
    out_ref[...] = x


def init_params(key):
    """Deterministic init mimicking PyTorch Linear defaults (uniform +-1/sqrt(fan_in)).
    Weights stored as (in_features, out_features) so the kernel does x @ W."""
    dims = [LATENT_DIM] + HIDDEN + [IMG_FLAT]   # 100,128,256,512,1024,784
    params = []
    for i in range(len(dims) - 1):
        fan_in, fan_out = dims[i], dims[i + 1]
        key, kw, kb = jax.random.split(key, 3)
        bound = 1.0 / (fan_in ** 0.5)
        w = jax.random.uniform(kw, (fan_in, fan_out), jnp.float32, -bound, bound)
        b = jax.random.uniform(kb, (1, fan_out), jnp.float32, -bound, bound)
        params.append((w, b))
    # BatchNorm affine params for layers 2..4 (gamma=1, beta=0, PyTorch default)
    bn = [(jnp.ones((1, d), jnp.float32), jnp.zeros((1, d), jnp.float32))
          for d in HIDDEN[1:]]                  # 256, 512, 1024
    return params, bn


def prepare_kernel_params(params, bn):
    """Pad to lane-aligned shapes and cast weights to bf16 for the kernel.

    Biases of the BN'd linears (layers 2-4) are dropped: training-mode BN's
    mean subtraction cancels them exactly, so the forward is unchanged.
    """
    (w1, b1), (w2, _b2), (w3, _b3), (w4, _b4), (w5, b5) = params
    (g2, be2), (g3, be3), (g4, be4) = bn

    w1p = jnp.pad(w1, ((0, LATENT_PAD - LATENT_DIM), (0, 0)))   # (128, 128)
    w5p = jnp.pad(w5, ((0, 0), (0, IMG_PAD - IMG_FLAT)))        # (1024, 896)
    b5p = jnp.pad(b5, ((0, 0), (0, IMG_PAD - IMG_FLAT)))        # (1, 896)

    bf16 = lambda w: w.astype(jnp.bfloat16)
    return (bf16(w1p), b1,
            bf16(w2), g2, be2,
            bf16(w3), g3, be3,
            bf16(w4), g4, be4,
            bf16(w5p), b5p)


def generator_forward(z, kernel_params):
    B = z.shape[0]
    z_pad = jnp.pad(z.astype(jnp.float32),
                    ((0, 0), (0, LATENT_PAD - LATENT_DIM)))

    # TODO(synk): a batch grid (weights DMA'd once, batch axis "parallel" for
    # v7x's 2 TensorCores) is only valid with eval-mode BN (running stats);
    # training-mode BN needs the full batch in one block.
    flat = pl.pallas_call(
        generator_kernel,
        out_shape=jax.ShapeDtypeStruct((B, IMG_PAD), jnp.float32),
        in_specs=[pl.BlockSpec(memory_space=pltpu.VMEM)] * 14,
        out_specs=pl.BlockSpec(memory_space=pltpu.VMEM),
        compiler_params=pltpu.CompilerParams(vmem_limit_bytes=32 << 20),
    )(z_pad, *kernel_params)

    # drop the lane padding, then img.view(B, 1, 28, 28) -> NCHW
    return flat[:, :IMG_FLAT].reshape(B, 1, 28, 28)


def generator_forward_ref(z, kernel_params):
    """Pure-JAX reference using the exact same (padded, bf16) kernel params."""
    (w1, b1, w2, g2, be2, w3, g3, be3, w4, g4, be4, w5, b5) = kernel_params
    z_pad = jnp.pad(z.astype(jnp.float32),
                    ((0, 0), (0, LATENT_PAD - LATENT_DIM)))

    def matmul(x, w):
        return jnp.dot(x.astype(jnp.bfloat16), w,
                       preferred_element_type=jnp.float32)

    def bn_lrelu(y, g, b):
        mean = jnp.mean(y, axis=0, keepdims=True)
        var = jnp.mean(y * y, axis=0, keepdims=True) - mean * mean
        s = g * lax.rsqrt(var + BN_EPS)
        t = b - mean * s
        return _lrelu(y * s + t)

    x = _lrelu(matmul(z_pad, w1) + b1)
    x = bn_lrelu(matmul(x, w2), g2, be2)
    x = bn_lrelu(matmul(x, w3), g3, be3)
    x = bn_lrelu(matmul(x, w4), g4, be4)
    x = jnp.tanh(matmul(x, w5) + b5)
    return x[:, :IMG_FLAT].reshape(z.shape[0], 1, 28, 28)


if __name__ == "__main__":
    key = jax.random.PRNGKey(0)
    k_param, k_z = jax.random.split(key)
    params, bn = init_params(k_param)
    kparams = prepare_kernel_params(params, bn)

    B = 8
    z = jax.random.normal(k_z, (B, LATENT_DIM), jnp.float32)

    img = generator_forward(z, kparams)
    jax.block_until_ready(img)

    assert img.shape == (B, 1, 28, 28)
    assert img.dtype == jnp.float32

    # Correctness check against the pure-JAX reference (same bf16 weights,
    # f32 accumulation) before declaring success.
    img_ref = generator_forward_ref(z, kparams)
    jax.block_until_ready(img_ref)
    assert bool(jnp.all(jnp.isfinite(img)))
    assert bool(jnp.max(jnp.abs(img - img_ref)) < 1e-2), \
        float(jnp.max(jnp.abs(img - img_ref)))

    print("KERNEL_OK")
</pallas_src>

<mosaic_0001>
module attributes {stable_mosaic.version = 11 : i64} {
  func.func @generator_kernel(%arg0: memref<8x128xf32, #tpu.memory_space<vmem>>, %arg1: memref<128x128xbf16, #tpu.memory_space<vmem>>, %arg2: memref<1x128xf32, #tpu.memory_space<vmem>>, %arg3: memref<128x256xbf16, #tpu.memory_space<vmem>>, %arg4: memref<1x256xf32, #tpu.memory_space<vmem>>, %arg5: memref<1x256xf32, #tpu.memory_space<vmem>>, %arg6: memref<256x512xbf16, #tpu.memory_space<vmem>>, %arg7: memref<1x512xf32, #tpu.memory_space<vmem>>, %arg8: memref<1x512xf32, #tpu.memory_space<vmem>>, %arg9: memref<512x1024xbf16, #tpu.memory_space<vmem>>, %arg10: memref<1x1024xf32, #tpu.memory_space<vmem>>, %arg11: memref<1x1024xf32, #tpu.memory_space<vmem>>, %arg12: memref<1024x896xbf16, #tpu.memory_space<vmem>>, %arg13: memref<1x896xf32, #tpu.memory_space<vmem>>, %arg14: memref<8x896xf32, #tpu.memory_space<vmem>>) attributes {dimension_semantics = [], scalar_prefetch = 0 : i64, scratch_operands = 0 : i64, tpu.core_type = #tpu.core_type<tc>} {
    %c0 = arith.constant 0 : index
    %c0_0 = arith.constant 0 : index
    %0 = vector.load %arg0[%c0, %c0_0] : memref<8x128xf32, #tpu.memory_space<vmem>>, vector<8x128xf32>
    %1 = arith.truncf %0 : vector<8x128xf32> to vector<8x128xbf16>
    %c0_1 = arith.constant 0 : index
    %c0_2 = arith.constant 0 : index
    %2 = vector.load %arg1[%c0_1, %c0_2] : memref<128x128xbf16, #tpu.memory_space<vmem>>, vector<128x128xbf16>
    %cst = arith.constant dense<0.000000e+00> : vector<8x128xf32>
    %3 = tpu.matmul %1, %2, %cst {dimension_numbers = #tpu.dot_dimension_numbers<[1], [0], [0], [1], [0, 0, 1, 1], [], []>} : vector<8x128xbf16>, vector<128x128xbf16>, vector<8x128xf32> -> vector<8x128xf32>
    %c0_3 = arith.constant 0 : index
    %c0_4 = arith.constant 0 : index
    %4 = vector.load %arg2[%c0_3, %c0_4] : memref<1x128xf32, #tpu.memory_space<vmem>>, vector<1x128xf32>
    %5 = vector.broadcast %4 : vector<1x128xf32> to vector<8x128xf32>
    %6 = arith.addf %3, %5 : vector<8x128xf32>
    %cst_5 = arith.constant 0.000000e+00 : f32
    %7 = vector.broadcast %cst_5 : f32 to vector<8x128xf32>
    %8 = arith.cmpf ogt, %6, %7 : vector<8x128xf32>
    %cst_6 = arith.constant 2.000000e-01 : f32
    %9 = vector.broadcast %cst_6 : f32 to vector<8x128xf32>
    %10 = arith.mulf %9, %6 : vector<8x128xf32>
    %11 = arith.select %8, %6, %10 : vector<8x128xi1>, vector<8x128xf32>
    %12 = arith.truncf %11 : vector<8x128xf32> to vector<8x128xbf16>
    %c0_7 = arith.constant 0 : index
    %c0_8 = arith.constant 0 : index
    %13 = vector.load %arg3[%c0_7, %c0_8] : memref<128x256xbf16, #tpu.memory_space<vmem>>, vector<128x256xbf16>
    %cst_9 = arith.constant dense<0.000000e+00> : vector<8x256xf32>
    %14 = tpu.matmul %12, %13, %cst_9 {dimension_numbers = #tpu.dot_dimension_numbers<[1], [0], [0], [1], [0, 0, 1, 1], [], []>} : vector<8x128xbf16>, vector<128x256xbf16>, vector<8x256xf32> -> vector<8x256xf32>
    %cst_10 = arith.constant dense<0.000000e+00> : vector<256xf32>
    %15 = vector.multi_reduction <add>, %14, %cst_10 [0] : vector<8x256xf32> to vector<256xf32>
    %16 = vector.shape_cast %15 : vector<256xf32> to vector<1x256xf32>
    %cst_11 = arith.constant 8.000000e+00 : f32
    %17 = vector.broadcast %cst_11 : f32 to vector<1x256xf32>
    %18 = arith.divf %16, %17 : vector<1x256xf32>
    %19 = arith.mulf %14, %14 : vector<8x256xf32>
    %cst_12 = arith.constant dense<0.000000e+00> : vector<256xf32>
    %20 = vector.multi_reduction <add>, %19, %cst_12 [0] : vector<8x256xf32> to vector<256xf32>
    %21 = vector.shape_cast %20 : vector<256xf32> to vector<1x256xf32>
    %cst_13 = arith.constant 8.000000e+00 : f32
    %22 = vector.broadcast %cst_13 : f32 to vector<1x256xf32>
    %23 = arith.divf %21, %22 : vector<1x256xf32>
    %24 = arith.mulf %18, %18 : vector<1x256xf32>
    %25 = arith.subf %23, %24 : vector<1x256xf32>
    %c0_14 = arith.constant 0 : index
    %c0_15 = arith.constant 0 : index
    %26 = vector.load %arg4[%c0_14, %c0_15] : memref<1x256xf32, #tpu.memory_space<vmem>>, vector<1x256xf32>
    %cst_16 = arith.constant 8.000000e-01 : f32
    %27 = vector.broadcast %cst_16 : f32 to vector<1x256xf32>
    %28 = arith.addf %25, %27 : vector<1x256xf32>
    %29 = math.rsqrt %28 : vector<1x256xf32>
    %30 = arith.mulf %26, %29 : vector<1x256xf32>
    %c0_17 = arith.constant 0 : index
    %c0_18 = arith.constant 0 : index
    %31 = vector.load %arg5[%c0_17, %c0_18] : memref<1x256xf32, #tpu.memory_space<vmem>>, vector<1x256xf32>
    %32 = arith.mulf %18, %30 : vector<1x256xf32>
    %33 = arith.subf %31, %32 : vector<1x256xf32>
    %34 = vector.broadcast %30 : vector<1x256xf32> to vector<8x256xf32>
    %35 = arith.mulf %14, %34 : vector<8x256xf32>
    %36 = vector.broadcast %33 : vector<1x256xf32> to vector<8x256xf32>
    %37 = arith.addf %35, %36 : vector<8x256xf32>
    %cst_19 = arith.constant 0.000000e+00 : f32
    %38 = vector.broadcast %cst_19 : f32 to vector<8x256xf32>
    %39 = arith.cmpf ogt, %37, %38 : vector<8x256xf32>
    %cst_20 = arith.constant 2.000000e-01 : f32
    %40 = vector.broadcast %cst_20 : f32 to vector<8x256xf32>
    %41 = arith.mulf %40, %37 : vector<8x256xf32>
    %42 = arith.select %39, %37, %41 : vector<8x256xi1>, vector<8x256xf32>
    %43 = arith.truncf %42 : vector<8x256xf32> to vector<8x256xbf16>
    %c0_21 = arith.constant 0 : index
    %c0_22 = arith.constant 0 : index
    %44 = vector.load %arg6[%c0_21, %c0_22] : memref<256x512xbf16, #tpu.memory_space<vmem>>, vector<256x512xbf16>
    %cst_23 = arith.constant dense<0.000000e+00> : vector<8x512xf32>
    %45 = tpu.matmul %43, %44, %cst_23 {dimension_numbers = #tpu.dot_dimension_numbers<[1], [0], [0], [1], [0, 0, 1, 1], [], []>} : vector<8x256xbf16>, vector<256x512xbf16>, vector<8x512xf32> -> vector<8x512xf32>
    %cst_24 = arith.constant dense<0.000000e+00> : vector<512xf32>
    %46 = vector.multi_reduction <add>, %45, %cst_24 [0] : vector<8x512xf32> to vector<512xf32>
    %47 = vector.shape_cast %46 : vector<512xf32> to vector<1x512xf32>
    %cst_25 = arith.constant 8.000000e+00 : f32
    %48 = vector.broadcast %cst_25 : f32 to vector<1x512xf32>
    %49 = arith.divf %47, %48 : vector<1x512xf32>
    %50 = arith.mulf %45, %45 : vector<8x512xf32>
    %cst_26 = arith.constant dense<0.000000e+00> : vector<512xf32>
    %51 = vector.multi_reduction <add>, %50, %cst_26 [0] : vector<8x512xf32> to vector<512xf32>
    %52 = vector.shape_cast %51 : vector<512xf32> to vector<1x512xf32>
    %cst_27 = arith.constant 8.000000e+00 : f32
    %53 = vector.broadcast %cst_27 : f32 to vector<1x512xf32>
    %54 = arith.divf %52, %53 : vector<1x512xf32>
    %55 = arith.mulf %49, %49 : vector<1x512xf32>
    %56 = arith.subf %54, %55 : vector<1x512xf32>
    %c0_28 = arith.constant 0 : index
    %c0_29 = arith.constant 0 : index
    %57 = vector.load %arg7[%c0_28, %c0_29] : memref<1x512xf32, #tpu.memory_space<vmem>>, vector<1x512xf32>
    %cst_30 = arith.constant 8.000000e-01 : f32
    %58 = vector.broadcast %cst_30 : f32 to vector<1x512xf32>
    %59 = arith.addf %56, %58 : vector<1x512xf32>
    %60 = math.rsqrt %59 : vector<1x512xf32>
    %61 = arith.mulf %57, %60 : vector<1x512xf32>
    %c0_31 = arith.constant 0 : index
    %c0_32 = arith.constant 0 : index
    %62 = vector.load %arg8[%c0_31, %c0_32] : memref<1x512xf32, #tpu.memory_space<vmem>>, vector<1x512xf32>
    %63 = arith.mulf %49, %61 : vector<1x512xf32>
    %64 = arith.subf %62, %63 : vector<1x512xf32>
    %65 = vector.broadcast %61 : vector<1x512xf32> to vector<8x512xf32>
    %66 = arith.mulf %45, %65 : vector<8x512xf32>
    %67 = vector.broadcast %64 : vector<1x512xf32> to vector<8x512xf32>
    %68 = arith.addf %66, %67 : vector<8x512xf32>
    %cst_33 = arith.constant 0.000000e+00 : f32
    %69 = vector.broadcast %cst_33 : f32 to vector<8x512xf32>
    %70 = arith.cmpf ogt, %68, %69 : vector<8x512xf32>
    %cst_34 = arith.constant 2.000000e-01 : f32
    %71 = vector.broadcast %cst_34 : f32 to vector<8x512xf32>
    %72 = arith.mulf %71, %68 : vector<8x512xf32>
    %73 = arith.select %70, %68, %72 : vector<8x512xi1>, vector<8x512xf32>
    %74 = arith.truncf %73 : vector<8x512xf32> to vector<8x512xbf16>
    %c0_35 = arith.constant 0 : index
    %c0_36 = arith.constant 0 : index
    %75 = vector.load %arg9[%c0_35, %c0_36] : memref<512x1024xbf16, #tpu.memory_space<vmem>>, vector<512x1024xbf16>
    %cst_37 = arith.constant dense<0.000000e+00> : vector<8x1024xf32>
    %76 = tpu.matmul %74, %75, %cst_37 {dimension_numbers = #tpu.dot_dimension_numbers<[1], [0], [0], [1], [0, 0, 1, 1], [], []>} : vector<8x512xbf16>, vector<512x1024xbf16>, vector<8x1024xf32> -> vector<8x1024xf32>
    %cst_38 = arith.constant dense<0.000000e+00> : vector<1024xf32>
    %77 = vector.multi_reduction <add>, %76, %cst_38 [0] : vector<8x1024xf32> to vector<1024xf32>
    %78 = vector.shape_cast %77 : vector<1024xf32> to vector<1x1024xf32>
    %cst_39 = arith.constant 8.000000e+00 : f32
    %79 = vector.broadcast %cst_39 : f32 to vector<1x1024xf32>
    %80 = arith.divf %78, %79 : vector<1x1024xf32>
    %81 = arith.mulf %76, %76 : vector<8x1024xf32>
    %cst_40 = arith.constant dense<0.000000e+00> : vector<1024xf32>
    %82 = vector.multi_reduction <add>, %81, %cst_40 [0] : vector<8x1024xf32> to vector<1024xf32>
    %83 = vector.shape_cast %82 : vector<1024xf32> to vector<1x1024xf32>
    %cst_41 = arith.constant 8.000000e+00 : f32
    %84 = vector.broadcast %cst_41 : f32 to vector<1x1024xf32>
    %85 = arith.divf %83, %84 : vector<1x1024xf32>
    %86 = arith.mulf %80, %80 : vector<1x1024xf32>
    %87 = arith.subf %85, %86 : vector<1x1024xf32>
    %c0_42 = arith.constant 0 : index
    %c0_43 = arith.constant 0 : index
    %88 = vector.load %arg10[%c0_42, %c0_43] : memref<1x1024xf32, #tpu.memory_space<vmem>>, vector<1x1024xf32>
    %cst_44 = arith.constant 8.000000e-01 : f32
    %89 = vector.broadcast %cst_44 : f32 to vector<1x1024xf32>
    %90 = arith.addf %87, %89 : vector<1x1024xf32>
    %91 = math.rsqrt %90 : vector<1x1024xf32>
    %92 = arith.mulf %88, %91 : vector<1x1024xf32>
    %c0_45 = arith.constant 0 : index
    %c0_46 = arith.constant 0 : index
    %93 = vector.load %arg11[%c0_45, %c0_46] : memref<1x1024xf32, #tpu.memory_space<vmem>>, vector<1x1024xf32>
    %94 = arith.mulf %80, %92 : vector<1x1024xf32>
    %95 = arith.subf %93, %94 : vector<1x1024xf32>
    %96 = vector.broadcast %92 : vector<1x1024xf32> to vector<8x1024xf32>
    %97 = arith.mulf %76, %96 : vector<8x1024xf32>
    %98 = vector.broadcast %95 : vector<1x1024xf32> to vector<8x1024xf32>
    %99 = arith.addf %97, %98 : vector<8x1024xf32>
    %cst_47 = arith.constant 0.000000e+00 : f32
    %100 = vector.broadcast %cst_47 : f32 to vector<8x1024xf32>
    %101 = arith.cmpf ogt, %99, %100 : vector<8x1024xf32>
    %cst_48 = arith.constant 2.000000e-01 : f32
    %102 = vector.broadcast %cst_48 : f32 to vector<8x1024xf32>
    %103 = arith.mulf %102, %99 : vector<8x1024xf32>
    %104 = arith.select %101, %99, %103 : vector<8x1024xi1>, vector<8x1024xf32>
    %105 = arith.truncf %104 : vector<8x1024xf32> to vector<8x1024xbf16>
    %c0_49 = arith.constant 0 : index
    %c0_50 = arith.constant 0 : index
    %106 = vector.load %arg12[%c0_49, %c0_50] : memref<1024x896xbf16, #tpu.memory_space<vmem>>, vector<1024x896xbf16>
    %cst_51 = arith.constant dense<0.000000e+00> : vector<8x896xf32>
    %107 = tpu.matmul %105, %106, %cst_51 {dimension_numbers = #tpu.dot_dimension_numbers<[1], [0], [0], [1], [0, 0, 1, 1], [], []>} : vector<8x1024xbf16>, vector<1024x896xbf16>, vector<8x896xf32> -> vector<8x896xf32>
    %c0_52 = arith.constant 0 : index
    %c0_53 = arith.constant 0 : index
    %108 = vector.load %arg13[%c0_52, %c0_53] : memref<1x896xf32, #tpu.memory_space<vmem>>, vector<1x896xf32>
    %109 = vector.broadcast %108 : vector<1x896xf32> to vector<8x896xf32>
    %110 = arith.addf %107, %109 : vector<8x896xf32>
    %111 = math.tanh %110 : vector<8x896xf32>
    %c0_54 = arith.constant 0 : index
    %c0_55 = arith.constant 0 : index
    %112 = vector.load %arg14[%c0_54, %c0_55] : memref<8x896xf32, #tpu.memory_space<vmem>>, vector<8x896xf32>
    tpu.vector_store %arg14[%c0_54, %c0_55], %111 {strides = array<i32>} : memref<8x896xf32, #tpu.memory_space<vmem>>, vector<8x896xf32>,
    return
  }
}

</mosaic_0001>

<llo_original>
// kernel: tpu_custom_call.1
$region0: #{tpu_custom_call.1}
  #allocation0 [shape = 'u32[]', space=smem, size = 0x4, offset = 0x4, fixed_abs, tag = 'smem constant byte address 0x4 - core index']
  #allocation1 [shape = 'u32[72,128]{1,0:T(1,128)}', space=vmem, size = 0x9000, scoped, tag = 'internal scratch']
  %s0 = inlined_call_operand.hbm [shape: f32[8,128], index: 0, kind: input, shape index: {}]
  %s1 = inlined_call_operand.hbm [shape: bf16[128,128], index: 1, kind: input, shape index: {}]
  %s2 = inlined_call_operand.hbm [shape: f32[1,128], index: 2, kind: input, shape index: {}]
  %s3 = inlined_call_operand.hbm [shape: bf16[128,256], index: 3, kind: input, shape index: {}]
  %s4 = inlined_call_operand.hbm [shape: f32[1,256], index: 4, kind: input, shape index: {}]
  %s5 = inlined_call_operand.hbm [shape: f32[1,256], index: 5, kind: input, shape index: {}]
  %s6 = inlined_call_operand.hbm [shape: bf16[256,512], index: 6, kind: input, shape index: {}]
  %s7 = inlined_call_operand.hbm [shape: f32[1,512], index: 7, kind: input, shape index: {}]
  %s8 = inlined_call_operand.hbm [shape: f32[1,512], index: 8, kind: input, shape index: {}]
  %s9 = inlined_call_operand.hbm [shape: bf16[512,1024], index: 9, kind: input, shape index: {}]
  %s10 = inlined_call_operand.hbm [shape: f32[1,1024], index: 10, kind: input, shape index: {}]
  %s11 = inlined_call_operand.hbm [shape: f32[1,1024], index: 11, kind: input, shape index: {}]
  %s12 = inlined_call_operand.hbm [shape: bf16[1024,896], index: 12, kind: input, shape index: {}]
  %s13 = inlined_call_operand.hbm [shape: f32[1,896], index: 13, kind: input, shape index: {}]
  %s14 = inlined_call_operand.hbm [shape: f32[8,896], index: 14, kind: output, shape index: {}]
  %s15 = sld [smem:[#allocation0]]
  $region122: #{tpu_custom_call.1} parent=0
    _
  %s17 = ssub.s32 1, %s15
  %s18 = scalar_select 0, %s17, %s15
  $region1: #{tpu_custom_call.1} parent=0
    #allocation2 [shape = 'u8[4096]{0}', space=vmem, size = 0x1000, scoped, tag = 'input window, operand 0, single buffered']
    #allocation3 [shape = 's32[1]{0}', space=sflag, size = 0x4, scoped, tag = 'scoped memory for tpu_custom_call.1']
    #allocation4 [shape = 's32[1]{0}', space=sflag, size = 0x4, scoped, tag = 'scoped memory for tpu_custom_call.1']
    #allocation5 [shape = 'u8[32768]{0}', space=vmem, size = 0x8000, scoped, tag = 'input window, operand 1, single buffered']
    #allocation6 [shape = 's32[1]{0}', space=sflag, size = 0x4, scoped, tag = 'scoped memory for tpu_custom_call.1']
    #allocation7 [shape = 'u8[512]{0}', space=vmem, size = 0x400, scoped, tag = 'input window, operand 2, single buffered']
    #allocation8 [shape = 'u8[65536]{0}', space=vmem, size = 0x10000, scoped, tag = 'input window, operand 3, single buffered']
    #allocation9 [shape = 's32[1]{0}', space=sflag, size = 0x4, scoped, tag = 'scoped memory for tpu_custom_call.1']
    #allocation10 [shape = 'u8[1024]{0}', space=vmem, size = 0x400, scoped, tag = 'input window, operand 4, single buffered']
    #allocation11 [shape = 'u8[1024]{0}', space=vmem, size = 0x400, scoped, tag = 'input window, operand 5, single buffered']
    #allocation12 [shape = 's32[1]{0}', space=sflag, size = 0x4, scoped, tag = 'scoped memory for tpu_custom_call.1']
    #allocation13 [shape = 'u8[262144]{0}', space=vmem, size = 0x40000, scoped, tag = 'input window, operand 6, single buffered']
    #allocation14 [shape = 'u8[2048]{0}', space=vmem, size = 0x800, scoped, tag = 'input window, operand 7, single buffered']
    #allocation15 [shape = 's32[1]{0}', space=sflag, size = 0x4, scoped, tag = 'scoped memory for tpu_custom_call.1']
    #allocation16 [shape = 'u8[2048]{0}', space=vmem, size = 0x800, scoped, tag = 'input window, operand 8, single buffered']
    #allocation17 [shape = 'u8[1048576]{0}', space=vmem, size = 0x100000, scoped, tag = 'input window, operand 9, single buffered']
    #allocation18 [shape = 's32[1]{0}', space=sflag, size = 0x4, scoped, tag = 'scoped memory for tpu_custom_call.1']
    #allocation19 [shape = 'u8[4096]{0}', space=vmem, size = 0x1000, scoped, tag = 'input window, operand 10, single buffered']
    #allocation20 [shape = 'u8[4096]{0}', space=vmem, size = 0x1000, scoped, tag = 'input window, operand 11, single buffered']
    #allocation21 [shape = 's32[1]{0}', space=sflag, size = 0x4, scoped, tag = 'scoped memory for tpu_custom_call.1']
    #allocation22 [shape = 'u8[1835008]{0}', space=vmem, size = 0x1c0000, scoped, tag = 'input window, operand 12, single buffered']
    #allocation23 [shape = 'u8[3584]{0}', space=vmem, size = 0x1000, scoped, tag = 'input window, operand 13, single buffered']
    #allocation24 [shape = 's32[1]{0}', space=sflag, size = 0x4, scoped, tag = 'scoped memory for tpu_custom_call.1']
    #allocation25 [shape = 'u8[28672]{0}', space=vmem, size = 0x7000, scoped, tag = 'output window, operand 0, single buffered']
    %19 = vsyncpa [#allocation3], 0
    %20 = vsyncpa [#allocation6], 0
    %21 = vsyncpa [#allocation9], 0
    %22 = vsyncpa [#allocation12], 0
    %23 = vsyncpa [#allocation15], 0
    %24 = vsyncpa [#allocation18], 0
    %25 = vsyncpa [#allocation21], 0
    %26 = vsyncpa [#allocation24], 0
    %27 = vsyncpa [#allocation4], 0
    // Predicated region
    $region2: #{tpu_custom_call.1} parent=1 // pred_check
      _
    $region3: #{tpu_custom_call.1} parent=1 // pred_check_branch
      %29 = sbr.rel (0) target = $region5
    $region4: #{tpu_custom_call.1} parent=1 // pred_region
      %31 = vsyncadd [#allocation3], 0
      %s33 = sshll.u32 %s0, 4
      %s34 = int_to_ptr.hbm [resolvable:$true] %s33
      %s35 = sshll.u32 [#allocation2], 4
      %s36 = int_to_ptr.vmem [resolvable:$true] %s35
      %38 = dma.hbm_to_vmem [thread:$0]  %s34, 128, %s36, [#allocation3]
    $region5: #{tpu_custom_call.1} parent=1 // pred_fallthru
      _
    // Predicated region
    $region6: #{tpu_custom_call.1} parent=1 // pred_check
      _
    $region7: #{tpu_custom_call.1} parent=1 // pred_check_branch
      %40 = sbr.rel (0) target = $region9
    $region8: #{tpu_custom_call.1} parent=1 // pred_region
      %42 = vsyncadd [#allocation6], 0
      %s43 = sshll.u32 %s1, 4
      %s44 = int_to_ptr.hbm [resolvable:$true] %s43
      %s45 = sshll.u32 [#allocation5], 4
      %s46 = int_to_ptr.vmem [resolvable:$true] %s45
      %51 = dma.hbm_to_vmem [thread:$0]  %s44, 1024, %s46, [#allocation6], 64, 64, 4
    $region9: #{tpu_custom_call.1} parent=1 // pred_fallthru
      _
    // Predicated region
    $region10: #{tpu_custom_call.1} parent=1 // pred_check
      _
    $region11: #{tpu_custom_call.1} parent=1 // pred_check_branch
      %53 = sbr.rel (0) target = $region13
    $region12: #{tpu_custom_call.1} parent=1 // pred_region
      %55 = vsyncadd [#allocation6], 0
      %s57 = sshll.u32 %s2, 4
      %s58 = int_to_ptr.hbm [resolvable:$true] %s57
      %s59 = sshll.u32 [#allocation7], 4
      %s60 = int_to_ptr.vmem [resolvable:$true] %s59
      %62 = dma.hbm_to_vmem [thread:$0]  %s58, 16, %s60, [#allocation6]
    $region13: #{tpu_custom_call.1} parent=1 // pred_fallthru
      _
    // Predicated region
    $region14: #{tpu_custom_call.1} parent=1 // pred_check
      _
    $region15: #{tpu_custom_call.1} parent=1 // pred_check_branch
      %64 = sbr.rel (0) target = $region17
    $region16: #{tpu_custom_call.1} parent=1 // pred_region
      %66 = vsyncadd [#allocation9], 0
      %s67 = sshll.u32 %s3, 4
      %s68 = int_to_ptr.hbm [resolvable:$true] %s67
      %s69 = sshll.u32 [#allocation8], 4
      %s70 = int_to_ptr.vmem [resolvable:$true] %s69
      %75 = dma.hbm_to_vmem [thread:$0]  %s68, 2048, %s70, [#allocation9], 128, 128, 8
    $region17: #{tpu_custom_call.1} parent=1 // pred_fallthru
      _
    // Predicated region
    $region18: #{tpu_custom_call.1} parent=1 // pred_check
      _
    $region19: #{tpu_custom_call.1} parent=1 // pred_check_branch
      %77 = sbr.rel (0) target = $region21
    $region20: #{tpu_custom_call.1} parent=1 // pred_region
      %79 = vsyncadd [#allocation9], 0
      %s81 = sshll.u32 %s4, 4
      %s82 = int_to_ptr.hbm [resolvable:$true] %s81
      %s83 = sshll.u32 [#allocation10], 4
      %s84 = int_to_ptr.vmem [resolvable:$true] %s83
      %86 = dma.hbm_to_vmem [thread:$0]  %s82, 32, %s84, [#allocation9]
    $region21: #{tpu_custom_call.1} parent=1 // pred_fallthru
      _
    // Predicated region
    $region22: #{tpu_custom_call.1} parent=1 // pred_check
      _
    $region23: #{tpu_custom_call.1} parent=1 // pred_check_branch
      %88 = sbr.rel (0) target = $region25
    $region24: #{tpu_custom_call.1} parent=1 // pred_region
      %90 = vsyncadd [#allocation12], 0
      %s92 = sshll.u32 %s5, 4
      %s93 = int_to_ptr.hbm [resolvable:$true] %s92
      %s94 = sshll.u32 [#allocation11], 4
      %s95 = int_to_ptr.vmem [resolvable:$true] %s94
      %97 = dma.hbm_to_vmem [thread:$0]  %s93, 32, %s95, [#allocation12]
    $region25: #{tpu_custom_call.1} parent=1 // pred_fallthru
      _
    // Predicated region
    $region26: #{tpu_custom_call.1} parent=1 // pred_check
      _
    $region27: #{tpu_custom_call.1} parent=1 // pred_check_branch
      %99 = sbr.rel (0) target = $region29
    $region28: #{tpu_custom_call.1} parent=1 // pred_region
      %101 = vsyncadd [#allocation12], 0
      %s102 = sshll.u32 %s6, 4
      %s103 = int_to_ptr.hbm [resolvable:$true] %s102
      %s104 = sshll.u32 [#allocation13], 4
      %s105 = int_to_ptr.vmem [resolvable:$true] %s104
      %110 = dma.hbm_to_vmem [thread:$0]  %s103, 8192, %s105, [#allocation12], 256, 256, 16
    $region29: #{tpu_custom_call.1} parent=1 // pred_fallthru
      _
    // Predicated region
    $region30: #{tpu_custom_call.1} parent=1 // pred_check
      _
    $region31: #{tpu_custom_call.1} parent=1 // pred_check_branch
      %112 = sbr.rel (0) target = $region33
    $region32: #{tpu_custom_call.1} parent=1 // pred_region
      %114 = vsyncadd [#allocation15], 0
      %s116 = sshll.u32 %s7, 4
      %s117 = int_to_ptr.hbm [resolvable:$true] %s116
      %s118 = sshll.u32 [#allocation14], 4
      %s119 = int_to_ptr.vmem [resolvable:$true] %s118
      %121 = dma.hbm_to_vmem [thread:$0]  %s117, 64, %s119, [#allocation15]
    $region33: #{tpu_custom_call.1} parent=1 // pred_fallthru
      _
    // Predicated region
    $region34: #{tpu_custom_call.1} parent=1 // pred_check
      _
    $region35: #{tpu_custom_call.1} parent=1 // pred_check_branch
      %123 = sbr.rel (0) target = $region37
    $region36: #{tpu_custom_call.1} parent=1 // pred_region
      %125 = vsyncadd [#allocation15], 0
      %s127 = sshll.u32 %s8, 4
      %s128 = int_to_ptr.hbm [resolvable:$true] %s127
      %s129 = sshll.u32 [#allocation16], 4
      %s130 = int_to_ptr.vmem [resolvable:$true] %s129
      %132 = dma.hbm_to_vmem [thread:$0]  %s128, 64, %s130, [#allocation15]
    $region37: #{tpu_custom_call.1} parent=1 // pred_fallthru
      _
    // Predicated region
    $region38: #{tpu_custom_call.1} parent=1 // pred_check
      _
    $region39: #{tpu_custom_call.1} parent=1 // pred_check_branch
      %134 = sbr.rel (0) target = $region41
    $region40: #{tpu_custom_call.1} parent=1 // pred_region
      %136 = vsyncadd [#allocation18], 0
      %s137 = sshll.u32 %s9, 4
      %s138 = int_to_ptr.hbm [resolvable:$true] %s137
      %s139 = sshll.u32 [#allocation17], 4
      %s140 = int_to_ptr.vmem [resolvable:$true] %s139
      %145 = dma.hbm_to_vmem [thread:$0]  %s138, 32768, %s140, [#allocation18], 512, 512, 32
    $region41: #{tpu_custom_call.1} parent=1 // pred_fallthru
      _
    // Predicated region
    $region42: #{tpu_custom_call.1} parent=1 // pred_check
      _
    $region43: #{tpu_custom_call.1} parent=1 // pred_check_branch
      %147 = sbr.rel (0) target = $region45
    $region44: #{tpu_custom_call.1} parent=1 // pred_region
      %149 = vsyncadd [#allocation18], 0
      %s151 = sshll.u32 %s10, 4
      %s152 = int_to_ptr.hbm [resolvable:$true] %s151
      %s153 = sshll.u32 [#allocation19], 4
      %s154 = int_to_ptr.vmem [resolvable:$true] %s153
      %156 = dma.hbm_to_vmem [thread:$0]  %s152, 128, %s154, [#allocation18]
    $region45: #{tpu_custom_call.1} parent=1 // pred_fallthru
      _
    // Predicated region
    $region46: #{tpu_custom_call.1} parent=1 // pred_check
      _
    $region47: #{tpu_custom_call.1} parent=1 // pred_check_branch
      %158 = sbr.rel (0) target = $region49
    $region48: #{tpu_custom_call.1} parent=1 // pred_region
      %160 = vsyncadd [#allocation21], 0
      %s162 = sshll.u32 %s11, 4
      %s163 = int_to_ptr.hbm [resolvable:$true] %s162
      %s164 = sshll.u32 [#allocation20], 4
      %s165 = int_to_ptr.vmem [resolvable:$true] %s164
      %167 = dma.hbm_to_vmem [thread:$0]  %s163, 128, %s165, [#allocation21]
    $region49: #{tpu_custom_call.1} parent=1 // pred_fallthru
      _
    // Predicated region
    $region50: #{tpu_custom_call.1} parent=1 // pred_check
      _
    $region51: #{tpu_custom_call.1} parent=1 // pred_check_branch
      %169 = sbr.rel (0) target = $region53
    $region52: #{tpu_custom_call.1} parent=1 // pred_region
      %171 = vsyncadd [#allocation21], 0
      %s172 = sshll.u32 %s12, 4
      %s173 = int_to_ptr.hbm [resolvable:$true] %s172
      %s174 = sshll.u32 [#allocation22], 4
      %s175 = int_to_ptr.vmem [resolvable:$true] %s174
      %180 = dma.hbm_to_vmem [thread:$0]  %s173, 57344, %s175, [#allocation21], 448, 448, 28
    $region53: #{tpu_custom_call.1} parent=1 // pred_fallthru
      _
    // Predicated region
    $region54: #{tpu_custom_call.1} parent=1 // pred_check
      _
    $region55: #{tpu_custom_call.1} parent=1 // pred_check_branch
      %182 = sbr.rel (0) target = $region57
    $region56: #{tpu_custom_call.1} parent=1 // pred_region
      %184 = vsyncadd [#allocation24], 0
      %s186 = sshll.u32 %s13, 4
      %s187 = int_to_ptr.hbm [resolvable:$true] %s186
      %s188 = sshll.u32 [#allocation23], 4
      %s189 = int_to_ptr.vmem [resolvable:$true] %s188
      %191 = dma.hbm_to_vmem [thread:$0]  %s187, 112, %s189, [#allocation24]
    $region57: #{tpu_custom_call.1} parent=1 // pred_fallthru
      _
    // Predicated region
    $region58: #{tpu_custom_call.1} parent=1 // pred_check
      _
    $region59: #{tpu_custom_call.1} parent=1 // pred_check_branch
      %193 = sbr.rel (0) target = $region61
    $region60: #{tpu_custom_call.1} parent=1 // pred_region
      %195 = dma.done [#allocation3], 128
    $region61: #{tpu_custom_call.1} parent=1 // pred_fallthru
      _
    // Predicated region
    $region62: #{tpu_custom_call.1} parent=1 // pred_check
      _
    $region63: #{tpu_custom_call.1} parent=1 // pred_check_branch
      %197 = sbr.rel (0) target = $region65
    $region64: #{tpu_custom_call.1} parent=1 // pred_region
      %199 = dma.done [#allocation6], 1024
    $region65: #{tpu_custom_call.1} parent=1 // pred_fallthru
      _
    // Predicated region
    $region66: #{tpu_custom_call.1} parent=1 // pred_check
      _
    $region67: #{tpu_custom_call.1} parent=1 // pred_check_branch
      %201 = sbr.rel (0) target = $region69
    $region68: #{tpu_custom_call.1} parent=1 // pred_region
      %203 = dma.done [#allocation6], 16
    $region69: #{tpu_custom_call.1} parent=1 // pred_fallthru
      _
    // Predicated region
    $region70: #{tpu_custom_call.1} parent=1 // pred_check
      _
    $region71: #{tpu_custom_call.1} parent=1 // pred_check_branch
      %205 = sbr.rel (0) target = $region73
    $region72: #{tpu_custom_call.1} parent=1 // pred_region
      %207 = dma.done [#allocation9], 2048
    $region73: #{tpu_custom_call.1} parent=1 // pred_fallthru
      _
    // Predicated region
    $region74: #{tpu_custom_call.1} parent=1 // pred_check
      _
    $region75: #{tpu_custom_call.1} parent=1 // pred_check_branch
      %209 = sbr.rel (0) target = $region77
    $region76: #{tpu_custom_call.1} parent=1 // pred_region
      %211 = dma.done [#allocation9], 32
    $region77: #{tpu_custom_call.1} parent=1 // pred_fallthru
      _
    // Predicated region
    $region78: #{tpu_custom_call.1} parent=1 // pred_check
      _
    $region79: #{tpu_custom_call.1} parent=1 // pred_check_branch
      %213 = sbr.rel (0) target = $region81
    $region80: #{tpu_custom_call.1} parent=1 // pred_region
      %215 = dma.done [#allocation12], 32
    $region81: #{tpu_custom_call.1} parent=1 // pred_fallthru
      _
    // Predicated region
    $region82: #{tpu_custom_call.1} parent=1 // pred_check
      _
    $region83: #{tpu_custom_call.1} parent=1 // pred_check_branch
      %217 = sbr.rel (0) target = $region85
    $region84: #{tpu_custom_call.1} parent=1 // pred_region
      %219 = dma.done [#allocation12], 8192
    $region85: #{tpu_custom_call.1} parent=1 // pred_fallthru
      _
    // Predicated region
    $region86: #{tpu_custom_call.1} parent=1 // pred_check
      _
    $region87: #{tpu_custom_call.1} parent=1 // pred_check_branch
      %221 = sbr.rel (0) target = $region89
    $region88: #{tpu_custom_call.1} parent=1 // pred_region
      %223 = dma.done [#allocation15], 64
    $region89: #{tpu_custom_call.1} parent=1 // pred_fallthru
      _
    // Predicated region
    $region90: #{tpu_custom_call.1} parent=1 // pred_check
      _
    $region91: #{tpu_custom_call.1} parent=1 // pred_check_branch
      %225 = sbr.rel (0) target = $region93
    $region92: #{tpu_custom_call.1} parent=1 // pred_region
      %227 = dma.done [#allocation15], 64
    $region93: #{tpu_custom_call.1} parent=1 // pred_fallthru
      _
    // Predicated region
    $region94: #{tpu_custom_call.1} parent=1 // pred_check
      _
    $region95: #{tpu_custom_call.1} parent=1 // pred_check_branch
      %229 = sbr.rel (0) target = $region97
    $region96: #{tpu_custom_call.1} parent=1 // pred_region
      %231 = dma.done [#allocation18], 32768
    $region97: #{tpu_custom_call.1} parent=1 // pred_fallthru
      _
    // Predicated region
    $region98: #{tpu_custom_call.1} parent=1 // pred_check
      _
    $region99: #{tpu_custom_call.1} parent=1 // pred_check_branch
      %233 = sbr.rel (0) target = $region101
    $region100: #{tpu_custom_call.1} parent=1 // pred_region
      %235 = dma.done [#allocation18], 128
    $region101: #{tpu_custom_call.1} parent=1 // pred_fallthru
      _
    // Predicated region
    $region102: #{tpu_custom_call.1} parent=1 // pred_check
      _
    $region103: #{tpu_custom_call.1} parent=1 // pred_check_branch
      %237 = sbr.rel (0) target = $region105
    $region104: #{tpu_custom_call.1} parent=1 // pred_region
      %239 = dma.done [#allocation21], 128
    $region105: #{tpu_custom_call.1} parent=1 // pred_fallthru
      _
    // Predicated region
    $region106: #{tpu_custom_call.1} parent=1 // pred_check
      _
    $region107: #{tpu_custom_call.1} parent=1 // pred_check_branch
      %241 = sbr.rel (0) target = $region109
    $region108: #{tpu_custom_call.1} parent=1 // pred_region
      %243 = dma.done [#allocation21], 57344
    $region109: #{tpu_custom_call.1} parent=1 // pred_fallthru
      _
    // Predicated region
    $region110: #{tpu_custom_call.1} parent=1 // pred_check
      _
    $region111: #{tpu_custom_call.1} parent=1 // pred_check_branch
      %245 = sbr.rel (0) target = $region113
    $region112: #{tpu_custom_call.1} parent=1 // pred_region
      %247 = dma.done [#allocation24], 112
    $region113: #{tpu_custom_call.1} parent=1 // pred_fallthru
      _
    %v248 = vld [vmem:[#allocation2] sm:$0xff]
    %v249 = vpack.c.bf16 %v248, %v248
    %v250 = vld [vmem:[#allocation5] sm:$0xf]
    %v251 = vld [vmem:[#allocation5 + $0x4] sm:$0xf]
    %v252 = vld [vmem:[#allocation5 + $0x8] sm:$0xf]
    %v253 = vld [vmem:[#allocation5 + $0xc] sm:$0xf]
    %v254 = vld [vmem:[#allocation5 + $0x10] sm:$0xf]
    %v255 = vld [vmem:[#allocation5 + $0x14] sm:$0xf]
    %v256 = vld [vmem:[#allocation5 + $0x18] sm:$0xf]
    %v257 = vld [vmem:[#allocation5 + $0x1c] sm:$0xf]
    %v258 = vld [vmem:[#allocation5 + $0x20] sm:$0xf]
    %v259 = vld [vmem:[#allocation5 + $0x24] sm:$0xf]
    %v260 = vld [vmem:[#allocation5 + $0x28] sm:$0xf]
    %v261 = vld [vmem:[#allocation5 + $0x2c] sm:$0xf]
    %v262 = vld [vmem:[#allocation5 + $0x30] sm:$0xf]
    %v263 = vld [vmem:[#allocation5 + $0x34] sm:$0xf]
    %v264 = vld [vmem:[#allocation5 + $0x38] sm:$0xf]
    %v265 = vld [vmem:[#allocation5 + $0x3c] sm:$0xf]
    %v266 = vld [vmem:[#allocation7] sm:$0x1]
    %v268 = vperm.slane %v266, 0
    %v286 = vunpack.c.l.b16 %v250
    %v287 = vunpack.c.l.b16 %v251
    %v288 = vunpack.c.l.b16 %v252
    %v289 = vunpack.c.l.b16 %v253
    %v290 = vunpack.c.l.b16 %v254
    %v291 = vunpack.c.l.b16 %v255
    %v292 = vunpack.c.l.b16 %v256
    %v293 = vunpack.c.l.b16 %v257
    %v294 = vunpack.c.l.b16 %v258
    %v295 = vunpack.c.l.b16 %v259
    %v296 = vunpack.c.l.b16 %v260
    %v297 = vunpack.c.l.b16 %v261
    %v298 = vunpack.c.l.b16 %v262
    %v299 = vunpack.c.l.b16 %v263
    %v300 = vunpack.c.l.b16 %v264
    %v301 = vunpack.c.l.b16 %v265
    %v302 = vpack.c.b16 %v287, %v286
    %v303 = vpack.c.b16 %v289, %v288
    %v304 = vpack.c.b16 %v291, %v290
    %v305 = vpack.c.b16 %v293, %v292
    %v306 = vpack.c.b16 %v295, %v294
    %v307 = vpack.c.b16 %v297, %v296
    %v308 = vpack.c.b16 %v299, %v298
    %v309 = vpack.c.b16 %v301, %v300
    %318 = vmatpush.bf16.msra.mxu0 %v309
    %319 = vmatpush.bf16.msra.mxu0 %v308
    %320 = vmatpush.bf16.msra.mxu0 %v307
    %321 = vmatpush.bf16.msra.mxu0 %v306
    %322 = vmatpush.bf16.msra.mxu0 %v305
    %323 = vmatpush.bf16.msra.mxu0 %v304
    %324 = vmatpush.bf16.msra.mxu0 %v303
    %325 = vmatpush.bf16.msra.mxu0 %v302
    %326 = vmatmul.bf16.gmra.mxu0 %v249
    %v327 = vpop.f32.mrf.mxu0
    %v328 = vadd.f32 %v268, %v327
    %v329 = vpop.f32.mrf.mxu0
    %330 = vdwg.mxu0
    %vm331 = vcmp.gt.f32.partialorder %v328, 0.0
    %v332 = vmul.f32 %v328, 0.2
    %v333 = vsel %vm331, %v328, %v332
    %v334 = vpack.c.bf16 %v333, %v333
    %v335 = vld [vmem:[#allocation8] sm:$0xff]
    %v336 = vld [vmem:[#allocation8 + $0x8] sm:$0xff]
    %v337 = vld [vmem:[#allocation8 + $0x10] sm:$0xff]
    %v338 = vld [vmem:[#allocation8 + $0x18] sm:$0xff]
    %v339 = vld [vmem:[#allocation8 + $0x20] sm:$0xff]
    %v340 = vld [vmem:[#allocation8 + $0x28] sm:$0xff]
    %v341 = vld [vmem:[#allocation8 + $0x30] sm:$0xff]
    %v342 = vld [vmem:[#allocation8 + $0x38] sm:$0xff]
    %v343 = vld [vmem:[#allocation8 + $0x40] sm:$0xff]
    %v344 = vld [vmem:[#allocation8 + $0x48] sm:$0xff]
    %v345 = vld [vmem:[#allocation8 + $0x50] sm:$0xff]
    %v346 = vld [vmem:[#allocation8 + $0x58] sm:$0xff]
    %v347 = vld [vmem:[#allocation8 + $0x60] sm:$0xff]
    %v348 = vld [vmem:[#allocation8 + $0x68] sm:$0xff]
    %v349 = vld [vmem:[#allocation8 + $0x70] sm:$0xff]
    %v350 = vld [vmem:[#allocation8 + $0x78] sm:$0xff]
    %v367 = vunpack.c.l.b16 %v335
    %v368 = vunpack.c.h.b16 %v335
    %v369 = vunpack.c.l.b16 %v336
    %v370 = vunpack.c.h.b16 %v336
    %v371 = vunpack.c.l.b16 %v337
    %v372 = vunpack.c.h.b16 %v337
    %v373 = vunpack.c.l.b16 %v338
    %v374 = vunpack.c.h.b16 %v338
    %v375 = vunpack.c.l.b16 %v339
    %v376 = vunpack.c.h.b16 %v339
    %v377 = vunpack.c.l.b16 %v340
    %v378 = vunpack.c.h.b16 %v340
    %v379 = vunpack.c.l.b16 %v341
    %v380 = vunpack.c.h.b16 %v341
    %v381 = vunpack.c.l.b16 %v342
    %v382 = vunpack.c.h.b16 %v342
    %v383 = vunpack.c.l.b16 %v343
    %v384 = vunpack.c.h.b16 %v343
    %v385 = vunpack.c.l.b16 %v344
    %v386 = vunpack.c.h.b16 %v344
    %v387 = vunpack.c.l.b16 %v345
    %v388 = vunpack.c.h.b16 %v345
    %v389 = vunpack.c.l.b16 %v346
    %v390 = vunpack.c.h.b16 %v346
    %v391 = vunpack.c.l.b16 %v347
    %v392 = vunpack.c.h.b16 %v347
    %v393 = vunpack.c.l.b16 %v348
    %v394 = vunpack.c.h.b16 %v348
    %v395 = vunpack.c.l.b16 %v349
    %v396 = vunpack.c.h.b16 %v349
    %v397 = vunpack.c.l.b16 %v350
    %v398 = vunpack.c.h.b16 %v350
    %v399 = vpack.c.b16 %v369, %v367
    %v400 = vpack.c.b16 %v370, %v368
    %v401 = vpack.c.b16 %v373, %v371
    %v402 = vpack.c.b16 %v374, %v372
    %v403 = vpack.c.b16 %v377, %v375
    %v404 = vpack.c.b16 %v378, %v376
    %v405 = vpack.c.b16 %v381, %v379
    %v406 = vpack.c.b16 %v382, %v380
    %v407 = vpack.c.b16 %v385, %v383
    %v408 = vpack.c.b16 %v386, %v384
    %v409 = vpack.c.b16 %v389, %v387
    %v410 = vpack.c.b16 %v390, %v388
    %v411 = vpack.c.b16 %v393, %v391
    %v412 = vpack.c.b16 %v394, %v392
    %v413 = vpack.c.b16 %v397, %v395
    %v414 = vpack.c.b16 %v398, %v396
    %431 = vmatpush.bf16.msra.mxu0 %v413
    %432 = vmatpush.bf16.msra.mxu0 %v411
    %433 = vmatpush.bf16.msra.mxu0 %v409
    %434 = vmatpush.bf16.msra.mxu0 %v407
    %435 = vmatpush.bf16.msra.mxu0 %v405
    %436 = vmatpush.bf16.msra.mxu0 %v403
    %437 = vmatpush.bf16.msra.mxu0 %v401
    %438 = vmatpush.bf16.msra.mxu0 %v399
    %439 = vmatmul.bf16.gmra.mxu0 %v334
    %v440 = vpop.f32.mrf.mxu0
    %v441 = vadd.f32 0.0, %v440
    %v442 = vpop.f32.mrf.mxu0
    %443 = vdwg.mxu0
    %444 = vmatpush.bf16.msra.mxu0 %v414
    %445 = vmatpush.bf16.msra.mxu0 %v412
    %446 = vmatpush.bf16.msra.mxu0 %v410
    %447 = vmatpush.bf16.msra.mxu0 %v408
    %448 = vmatpush.bf16.msra.mxu0 %v406
    %449 = vmatpush.bf16.msra.mxu0 %v404
    %450 = vmatpush.bf16.msra.mxu0 %v402
    %451 = vmatpush.bf16.msra.mxu0 %v400
    %452 = vmatmul.bf16.gmra.mxu0 %v334
    %v453 = vpop.f32.mrf.mxu0
    %v454 = vadd.f32 0.0, %v453
    %v455 = vpop.f32.mrf.mxu0
    %456 = vdwg.mxu0
    %v457 = vrot.slane %v441, 4
    %v458 = vadd.f32 %v441, %v457
    %v459 = vrot.slane %v458, 2
    %v460 = vadd.f32 %v458, %v459
    %v461 = vrot.slane %v460, 1
    %v462 = vadd.f32 %v460, %v461
    %v463 = vrot.slane %v454, 4
    %v464 = vadd.f32 %v454, %v463
    %v465 = vrot.slane %v464, 2
    %v466 = vadd.f32 %v464, %v465
    %v467 = vrot.slane %v466, 1
    %v468 = vadd.f32 %v466, %v467
    %v469 = vrcp.pop 8.0
    %v470 = vmul.f32 8.0, %v469
    %v471 = vsub.f32 1.0, %v470
    %v472 = vmul.f32 %v469, %v471
    %v473 = vadd.f32 %v469, %v472
    %vm474 = vweird.f32 %v469
    %v475 = vsel %vm474, %v469, %v473
    %v476 = vmul.f32 %v462, %v475
    %v477 = vmul.f32 %v468, %v475
    %v478 = vmul.f32 %v441, %v441
    %v479 = vmul.f32 %v454, %v454
    %v480 = vrot.slane %v478, 4
    %v481 = vadd.f32 %v478, %v480
    %v482 = vrot.slane %v481, 2
    %v483 = vadd.f32 %v481, %v482
    %v484 = vrot.slane %v483, 1
    %v485 = vadd.f32 %v483, %v484
    %v486 = vrot.slane %v479, 4
    %v487 = vadd.f32 %v479, %v486
    %v488 = vrot.slane %v487, 2
    %v489 = vadd.f32 %v487, %v488
    %v490 = vrot.slane %v489, 1
    %v491 = vadd.f32 %v489, %v490
    %v492 = vmul.f32 %v485, %v475
    %v493 = vmul.f32 %v491, %v475
    %v494 = vmul.f32 %v476, %v476
    %v495 = vmul.f32 %v477, %v477
    %v496 = vsub.f32 %v492, %v494
    %v497 = vsub.f32 %v493, %v495
    %v498 = vld [vmem:[#allocation10] sm:$0x3]
    %v499 = vadd.f32 %v496, 0.8
    %v500 = vadd.f32 %v497, 0.8
    %v501 = vrsqrt.pop %v499
    %v502 = vmul.f32 %v501, %v499
    %v503 = vmul.f32 %v502, %v501
    %v504 = vmul.f32 0.5, %v503
    %v505 = vsub.f32 1.5, %v504
    %v506 = vmul.f32 %v501, %v505
    %vm507 = vweird.f32 %v499
    %vm508 = vweird.f32 %v501
    %vm509 = vmor %vm507, %vm508
    %v510 = vsel %vm509, %v501, %v506
    %v511 = vrsqrt.pop %v500
    %v512 = vmul.f32 %v511, %v500
    %v513 = vmul.f32 %v512, %v511
    %v514 = vmul.f32 0.5, %v513
    %v515 = vsub.f32 1.5, %v514
    %v516 = vmul.f32 %v511, %v515
    %vm517 = vweird.f32 %v500
    %vm518 = vweird.f32 %v511
    %vm519 = vmor %vm517, %vm518
    %v520 = vsel %vm519, %v511, %v516
    %v523 = vrot.slane %v520, 7
    %vm524 = vcmask 1040384
    %v525 = vsel %vm524, %v510, %v523
    %v527 = vmul.f32 %v498, %v525
    %v528 = vld [vmem:[#allocation11] sm:$0x3]
    %v530 = vperm.slane %v527, 0
    %v531 = vperm.slane %v527, 1
    %v534 = vmul.f32 %v476, %v530
    %v535 = vmul.f32 %v477, %v531
    %v538 = vrot.slane %v535, 7
    %v539 = vsel %vm524, %v534, %v538
    %v541 = vsub.f32 %v528, %v539
    %v542 = vmul.f32 %v441, %v530
    %v543 = vmul.f32 %v454, %v531
    %v545 = vperm.slane %v541, 0
    %v546 = vperm.slane %v541, 1
    %v549 = vadd.f32 %v542, %v545
    %v550 = vadd.f32 %v543, %v546
    %vm551 = vcmp.gt.f32.partialorder %v549, 0.0
    %vm552 = vcmp.gt.f32.partialorder %v550, 0.0
    %v553 = vmul.f32 %v549, 0.2
    %v554 = vmul.f32 %v550, 0.2
    %v555 = vsel %vm551, %v549, %v553
    %v556 = vsel %vm552, %v550, %v554
    %v557 = vpack.c.bf16 %v555, %v555
    %v558 = vpack.c.bf16 %v556, %v556
    %v559 = vld [vmem:[#allocation13] sm:$0xff]
    %v560 = vld [vmem:[#allocation13 + $0x8] sm:$0xff]
    %v561 = vld [vmem:[#allocation13 + $0x10] sm:$0xff]
    %v562 = vld [vmem:[#allocation13 + $0x18] sm:$0xff]
    %v563 = vld [vmem:[#allocation13 + $0x20] sm:$0xff]
    %v564 = vld [vmem:[#allocation13 + $0x28] sm:$0xff]
    %v565 = vld [vmem:[#allocation13 + $0x30] sm:$0xff]
    %v566 = vld [vmem:[#allocation13 + $0x38] sm:$0xff]
    %v567 = vld [vmem:[#allocation13 + $0x40] sm:$0xff]
    %v568 = vld [vmem:[#allocation13 + $0x48] sm:$0xff]
    %v569 = vld [vmem:[#allocation13 + $0x50] sm:$0xff]
    %v570 = vld [vmem:[#allocation13 + $0x58] sm:$0xff]
    %v571 = vld [vmem:[#allocation13 + $0x60] sm:$0xff]
    %v572 = vld [vmem:[#allocation13 + $0x68] sm:$0xff]
    %v573 = vld [vmem:[#allocation13 + $0x70] sm:$0xff]
    %v574 = vld [vmem:[#allocation13 + $0x78] sm:$0xff]
    %v575 = vld [vmem:[#allocation13 + $0x80] sm:$0xff]
    %v576 = vld [vmem:[#allocation13 + $0x88] sm:$0xff]
    %v577 = vld [vmem:[#allocation13 + $0x90] sm:$0xff]
    %v578 = vld [vmem:[#allocation13 + $0x98] sm:$0xff]
    %v579 = vld [vmem:[#allocation13 + $0xa0] sm:$0xff]
    %v580 = vld [vmem:[#allocation13 + $0xa8] sm:$0xff]
    %v581 = vld [vmem:[#allocation13 + $0xb0] sm:$0xff]
    %v582 = vld [vmem:[#allocation13 + $0xb8] sm:$0xff]
    %v583 = vld [vmem:[#allocation13 + $0xc0] sm:$0xff]
    %v584 = vld [vmem:[#allocation13 + $0xc8] sm:$0xff]
    %v585 = vld [vmem:[#allocation13 + $0xd0] sm:$0xff]
    %v586 = vld [vmem:[#allocation13 + $0xd8] sm:$0xff]
    %v587 = vld [vmem:[#allocation13 + $0xe0] sm:$0xff]
    %v588 = vld [vmem:[#allocation13 + $0xe8] sm:$0xff]
    %v589 = vld [vmem:[#allocation13 + $0xf0] sm:$0xff]
    %v590 = vld [vmem:[#allocation13 + $0xf8] sm:$0xff]
    %v591 = vld [vmem:[#allocation13 + $0x100] sm:$0xff]
    %v592 = vld [vmem:[#allocation13 + $0x108] sm:$0xff]
    %v593 = vld [vmem:[#allocation13 + $0x110] sm:$0xff]
    %v594 = vld [vmem:[#allocation13 + $0x118] sm:$0xff]
    %v595 = vld [vmem:[#allocation13 + $0x120] sm:$0xff]
    %v596 = vld [vmem:[#allocation13 + $0x128] sm:$0xff]
    %v597 = vld [vmem:[#allocation13 + $0x130] sm:$0xff]
    %v598 = vld [vmem:[#allocation13 + $0x138] sm:$0xff]
    %v599 = vld [vmem:[#allocation13 + $0x140] sm:$0xff]
    %v600 = vld [vmem:[#allocation13 + $0x148] sm:$0xff]
    %v601 = vld [vmem:[#allocation13 + $0x150] sm:$0xff]
    %v602 = vld [vmem:[#allocation13 + $0x158] sm:$0xff]
    %v603 = vld [vmem:[#allocation13 + $0x160] sm:$0xff]
    %v604 = vld [vmem:[#allocation13 + $0x168] sm:$0xff]
    %v605 = vld [vmem:[#allocation13 + $0x170] sm:$0xff]
    %v606 = vld [vmem:[#allocation13 + $0x178] sm:$0xff]
    %v607 = vld [vmem:[#allocation13 + $0x180] sm:$0xff]
    %v608 = vld [vmem:[#allocation13 + $0x188] sm:$0xff]
    %v609 = vld [vmem:[#allocation13 + $0x190] sm:$0xff]
    %v610 = vld [vmem:[#allocation13 + $0x198] sm:$0xff]
    %v611 = vld [vmem:[#allocation13 + $0x1a0] sm:$0xff]
    %v612 = vld [vmem:[#allocation13 + $0x1a8] sm:$0xff]
    %v613 = vld [vmem:[#allocation13 + $0x1b0] sm:$0xff]
    %v614 = vld [vmem:[#allocation13 + $0x1b8] sm:$0xff]
    %v615 = vld [vmem:[#allocation13 + $0x1c0] sm:$0xff]
    %v616 = vld [vmem:[#allocation13 + $0x1c8] sm:$0xff]
    %v617 = vld [vmem:[#allocation13 + $0x1d0] sm:$0xff]
    %v618 = vld [vmem:[#allocation13 + $0x1d8] sm:$0xff]
    %v619 = vld [vmem:[#allocation13 + $0x1e0] sm:$0xff]
    %v620 = vld [vmem:[#allocation13 + $0x1e8] sm:$0xff]
    %v621 = vld [vmem:[#allocation13 + $0x1f0] sm:$0xff]
    %v622 = vld [vmem:[#allocation13 + $0x1f8] sm:$0xff]
    %v687 = vunpack.c.l.b16 %v559
    %v688 = vunpack.c.h.b16 %v559
    %v689 = vunpack.c.l.b16 %v560
    %v690 = vunpack.c.h.b16 %v560
    %v691 = vunpack.c.l.b16 %v561
    %v692 = vunpack.c.h.b16 %v561
    %v693 = vunpack.c.l.b16 %v562
    %v694 = vunpack.c.h.b16 %v562
    %v695 = vunpack.c.l.b16 %v563
    %v696 = vunpack.c.h.b16 %v563
    %v697 = vunpack.c.l.b16 %v564
    %v698 = vunpack.c.h.b16 %v564
    %v699 = vunpack.c.l.b16 %v565
    %v700 = vunpack.c.h.b16 %v565
    %v701 = vunpack.c.l.b16 %v566
    %v702 = vunpack.c.h.b16 %v566
    %v703 = vunpack.c.l.b16 %v567
    %v704 = vunpack.c.h.b16 %v567
    %v705 = vunpack.c.l.b16 %v568
    %v706 = vunpack.c.h.b16 %v568
    %v707 = vunpack.c.l.b16 %v569
    %v708 = vunpack.c.h.b16 %v569
    %v709 = vunpack.c.l.b16 %v570
    %v710 = vunpack.c.h.b16 %v570
    %v711 = vunpack.c.l.b16 %v571
    %v712 = vunpack.c.h.b16 %v571
    %v713 = vunpack.c.l.b16 %v572
    %v714 = vunpack.c.h.b16 %v572
    %v715 = vunpack.c.l.b16 %v573
    %v716 = vunpack.c.h.b16 %v573
    %v717 = vunpack.c.l.b16 %v574
    %v718 = vunpack.c.h.b16 %v574
    %v719 = vunpack.c.l.b16 %v575
    %v720 = vunpack.c.h.b16 %v575
    %v721 = vunpack.c.l.b16 %v576
    %v722 = vunpack.c.h.b16 %v576
    %v723 = vunpack.c.l.b16 %v577
    %v724 = vunpack.c.h.b16 %v577
    %v725 = vunpack.c.l.b16 %v578
    %v726 = vunpack.c.h.b16 %v578
    %v727 = vunpack.c.l.b16 %v579
    %v728 = vunpack.c.h.b16 %v579
    %v729 = vunpack.c.l.b16 %v580
    %v730 = vunpack.c.h.b16 %v580
    %v731 = vunpack.c.l.b16 %v581
    %v732 = vunpack.c.h.b16 %v581
    %v733 = vunpack.c.l.b16 %v582
    %v734 = vunpack.c.h.b16 %v582
    %v735 = vunpack.c.l.b16 %v583
    %v736 = vunpack.c.h.b16 %v583
    %v737 = vunpack.c.l.b16 %v584
    %v738 = vunpack.c.h.b16 %v584
    %v739 = vunpack.c.l.b16 %v585
    %v740 = vunpack.c.h.b16 %v585
    %v741 = vunpack.c.l.b16 %v586
    %v742 = vunpack.c.h.b16 %v586
    %v743 = vunpack.c.l.b16 %v587
    %v744 = vunpack.c.h.b16 %v587
    %v745 = vunpack.c.l.b16 %v588
    %v746 = vunpack.c.h.b16 %v588
    %v747 = vunpack.c.l.b16 %v589
    %v748 = vunpack.c.h.b16 %v589
    %v749 = vunpack.c.l.b16 %v590
    %v750 = vunpack.c.h.b16 %v590
    %v751 = vunpack.c.l.b16 %v591
    %v752 = vunpack.c.h.b16 %v591
    %v753 = vunpack.c.l.b16 %v592
    %v754 = vunpack.c.h.b16 %v592
    %v755 = vunpack.c.l.b16 %v593
    %v756 = vunpack.c.h.b16 %v593
    %v757 = vunpack.c.l.b16 %v594
    %v758 = vunpack.c.h.b16 %v594
    %v759 = vunpack.c.l.b16 %v595
    %v760 = vunpack.c.h.b16 %v595
    %v761 = vunpack.c.l.b16 %v596
    %v762 = vunpack.c.h.b16 %v596
    %v763 = vunpack.c.l.b16 %v597
    %v764 = vunpack.c.h.b16 %v597
    %v765 = vunpack.c.l.b16 %v598
    %v766 = vunpack.c.h.b16 %v598
    %v767 = vunpack.c.l.b16 %v599
    %v768 = vunpack.c.h.b16 %v599
    %v769 = vunpack.c.l.b16 %v600
    %v770 = vunpack.c.h.b16 %v600
    %v771 = vunpack.c.l.b16 %v601
    %v772 = vunpack.c.h.b16 %v601
    %v773 = vunpack.c.l.b16 %v602
    %v774 = vunpack.c.h.b16 %v602
    %v775 = vunpack.c.l.b16 %v603
    %v776 = vunpack.c.h.b16 %v603
    %v777 = vunpack.c.l.b16 %v604
    %v778 = vunpack.c.h.b16 %v604
    %v779 = vunpack.c.l.b16 %v605
    %v780 = vunpack.c.h.b16 %v605
    %v781 = vunpack.c.l.b16 %v606
    %v782 = vunpack.c.h.b16 %v606
    %v783 = vunpack.c.l.b16 %v607
    %v784 = vunpack.c.h.b16 %v607
    %v785 = vunpack.c.l.b16 %v608
    %v786 = vunpack.c.h.b16 %v608
    %v787 = vunpack.c.l.b16 %v609
    %v788 = vunpack.c.h.b16 %v609
    %v789 = vunpack.c.l.b16 %v610
    %v790 = vunpack.c.h.b16 %v610
    %v791 = vunpack.c.l.b16 %v611
    %v792 = vunpack.c.h.b16 %v611
    %v793 = vunpack.c.l.b16 %v612
    %v794 = vunpack.c.h.b16 %v612
    %v795 = vunpack.c.l.b16 %v613
    %v796 = vunpack.c.h.b16 %v613
    %v797 = vunpack.c.l.b16 %v614
    %v798 = vunpack.c.h.b16 %v614
    %v799 = vunpack.c.l.b16 %v615
    %v800 = vunpack.c.h.b16 %v615
    %v801 = vunpack.c.l.b16 %v616
    %v802 = vunpack.c.h.b16 %v616
    %v803 = vunpack.c.l.b16 %v617
    %v804 = vunpack.c.h.b16 %v617
    %v805 = vunpack.c.l.b16 %v618
    %v806 = vunpack.c.h.b16 %v618
    %v807 = vunpack.c.l.b16 %v619
    %v808 = vunpack.c.h.b16 %v619
    %v809 = vunpack.c.l.b16 %v620
    %v810 = vunpack.c.h.b16 %v620
    %v811 = vunpack.c.l.b16 %v621
    %v812 = vunpack.c.h.b16 %v621
    %v813 = vunpack.c.l.b16 %v622
    %v814 = vunpack.c.h.b16 %v622
    %v815 = vpack.c.b16 %v691, %v687
    %v816 = vpack.c.b16 %v692, %v688
    %v817 = vpack.c.b16 %v693, %v689
    %v818 = vpack.c.b16 %v694, %v690
    %v819 = vpack.c.b16 %v699, %v695
    %v820 = vpack.c.b16 %v700, %v696
    %v821 = vpack.c.b16 %v701, %v697
    %v822 = vpack.c.b16 %v702, %v698
    %v823 = vpack.c.b16 %v707, %v703
    %v824 = vpack.c.b16 %v708, %v704
    %v825 = vpack.c.b16 %v709, %v705
    %v826 = vpack.c.b16 %v710, %v706
    %v827 = vpack.c.b16 %v715, %v711
    %v828 = vpack.c.b16 %v716, %v712
    %v829 = vpack.c.b16 %v717, %v713
    %v830 = vpack.c.b16 %v718, %v714
    %v831 = vpack.c.b16 %v723, %v719
    %v832 = vpack.c.b16 %v724, %v720
    %v833 = vpack.c.b16 %v725, %v721
    %v834 = vpack.c.b16 %v726, %v722
    %v835 = vpack.c.b16 %v731, %v727
    %v836 = vpack.c.b16 %v732, %v728
    %v837 = vpack.c.b16 %v733, %v729
    %v838 = vpack.c.b16 %v734, %v730
    %v839 = vpack.c.b16 %v739, %v735
    %v840 = vpack.c.b16 %v740, %v736
    %v841 = vpack.c.b16 %v741, %v737
    %v842 = vpack.c.b16 %v742, %v738
    %v843 = vpack.c.b16 %v747, %v743
    %v844 = vpack.c.b16 %v748, %v744
    %v845 = vpack.c.b16 %v749, %v745
    %v846 = vpack.c.b16 %v750, %v746
    %v847 = vpack.c.b16 %v755, %v751
    %v848 = vpack.c.b16 %v756, %v752
    %v849 = vpack.c.b16 %v757, %v753
    %v850 = vpack.c.b16 %v758, %v754
    %v851 = vpack.c.b16 %v763, %v759
    %v852 = vpack.c.b16 %v764, %v760
    %v853 = vpack.c.b16 %v765, %v761
    %v854 = vpack.c.b16 %v766, %v762
    %v855 = vpack.c.b16 %v771, %v767
    %v856 = vpack.c.b16 %v772, %v768
    %v857 = vpack.c.b16 %v773, %v769
    %v858 = vpack.c.b16 %v774, %v770
    %v859 = vpack.c.b16 %v779, %v775
    %v860 = vpack.c.b16 %v780, %v776
    %v861 = vpack.c.b16 %v781, %v777
    %v862 = vpack.c.b16 %v782, %v778
    %v863 = vpack.c.b16 %v787, %v783
    %v864 = vpack.c.b16 %v788, %v784
    %v865 = vpack.c.b16 %v789, %v785
    %v866 = vpack.c.b16 %v790, %v786
    %v867 = vpack.c.b16 %v795, %v791
    %v868 = vpack.c.b16 %v796, %v792
    %v869 = vpack.c.b16 %v797, %v793
    %v870 = vpack.c.b16 %v798, %v794
    %v871 = vpack.c.b16 %v803, %v799
    %v872 = vpack.c.b16 %v804, %v800
    %v873 = vpack.c.b16 %v805, %v801
    %v874 = vpack.c.b16 %v806, %v802
    %v875 = vpack.c.b16 %v811, %v807
    %v876 = vpack.c.b16 %v812, %v808
    %v877 = vpack.c.b16 %v813, %v809
    %v878 = vpack.c.b16 %v814, %v810
    %943 = vmatpush.bf16.msra.mxu0 %v843
    %944 = vmatpush.bf16.msra.mxu0 %v839
    %945 = vmatpush.bf16.msra.mxu0 %v835
    %946 = vmatpush.bf16.msra.mxu0 %v831
    %947 = vmatpush.bf16.msra.mxu0 %v827
    %948 = vmatpush.bf16.msra.mxu0 %v823
    %949 = vmatpush.bf16.msra.mxu0 %v819
    %950 = vmatpush.bf16.msra.mxu0 %v815
    %951 = vmatmul.bf16.gmra.mxu0 %v557
    %v952 = vpop.f32.mrf.mxu0
    %v953 = vadd.f32 0.0, %v952
    %v954 = vpop.f32.mrf.mxu0
    %955 = vdwg.mxu0
    %956 = vmatpush.bf16.msra.mxu0 %v875
    %957 = vmatpush.bf16.msra.mxu0 %v871
    %958 = vmatpush.bf16.msra.mxu0 %v867
    %959 = vmatpush.bf16.msra.mxu0 %v863
    %960 = vmatpush.bf16.msra.mxu0 %v859
    %961 = vmatpush.bf16.msra.mxu0 %v855
    %962 = vmatpush.bf16.msra.mxu0 %v851
    %963 = vmatpush.bf16.msra.mxu0 %v847
    %964 = vmatmul.bf16.gmra.mxu0 %v558
    %v965 = vpop.f32.mrf.mxu0
    %v966 = vadd.f32 %v953, %v965
    %v967 = vpop.f32.mrf.mxu0
    %968 = vdwg.mxu0
    %969 = vmatpush.bf16.msra.mxu0 %v844
    %970 = vmatpush.bf16.msra.mxu0 %v840
    %971 = vmatpush.bf16.msra.mxu0 %v836
    %972 = vmatpush.bf16.msra.mxu0 %v832
    %973 = vmatpush.bf16.msra.mxu0 %v828
    %974 = vmatpush.bf16.msra.mxu0 %v824
    %975 = vmatpush.bf16.msra.mxu0 %v820
    %976 = vmatpush.bf16.msra.mxu0 %v816
    %977 = vmatmul.bf16.gmra.mxu0 %v557
    %v978 = vpop.f32.mrf.mxu0
    %v979 = vadd.f32 0.0, %v978
    %v980 = vpop.f32.mrf.mxu0
    %981 = vdwg.mxu0
    %982 = vmatpush.bf16.msra.mxu0 %v876
    %983 = vmatpush.bf16.msra.mxu0 %v872
    %984 = vmatpush.bf16.msra.mxu0 %v868
    %985 = vmatpush.bf16.msra.mxu0 %v864
    %986 = vmatpush.bf16.msra.mxu0 %v860
    %987 = vmatpush.bf16.msra.mxu0 %v856
    %988 = vmatpush.bf16.msra.mxu0 %v852
    %989 = vmatpush.bf16.msra.mxu0 %v848
    %990 = vmatmul.bf16.gmra.mxu0 %v558
    %v991 = vpop.f32.mrf.mxu0
    %v992 = vadd.f32 %v979, %v991
    %v993 = vpop.f32.mrf.mxu0
    %994 = vdwg.mxu0
    %995 = vmatpush.bf16.msra.mxu0 %v845
    %996 = vmatpush.bf16.msra.mxu0 %v841
    %997 = vmatpush.bf16.msra.mxu0 %v837
    %998 = vmatpush.bf16.msra.mxu0 %v833
    %999 = vmatpush.bf16.msra.mxu0 %v829
    %1000 = vmatpush.bf16.msra.mxu0 %v825
    %1001 = vmatpush.bf16.msra.mxu0 %v821
    %1002 = vmatpush.bf16.msra.mxu0 %v817
    %1003 = vmatmul.bf16.gmra.mxu0 %v557
    %v1004 = vpop.f32.mrf.mxu0
    %v1005 = vadd.f32 0.0, %v1004
    %v1006 = vpop.f32.mrf.mxu0
    %1007 = vdwg.mxu0
    %1008 = vmatpush.bf16.msra.mxu0 %v877
    %1009 = vmatpush.bf16.msra.mxu0 %v873
    %1010 = vmatpush.bf16.msra.mxu0 %v869
    %1011 = vmatpush.bf16.msra.mxu0 %v865
    %1012 = vmatpush.bf16.msra.mxu0 %v861
    %1013 = vmatpush.bf16.msra.mxu0 %v857
    %1014 = vmatpush.bf16.msra.mxu0 %v853
    %1015 = vmatpush.bf16.msra.mxu0 %v849
    %1016 = vmatmul.bf16.gmra.mxu0 %v558
    %v1017 = vpop.f32.mrf.mxu0
    %v1018 = vadd.f32 %v1005, %v1017
    %v1019 = vpop.f32.mrf.mxu0
    %1020 = vdwg.mxu0
    %1021 = vmatpush.bf16.msra.mxu0 %v846
    %1022 = vmatpush.bf16.msra.mxu0 %v842
    %1023 = vmatpush.bf16.msra.mxu0 %v838
    %1024 = vmatpush.bf16.msra.mxu0 %v834
    %1025 = vmatpush.bf16.msra.mxu0 %v830
    %1026 = vmatpush.bf16.msra.mxu0 %v826
    %1027 = vmatpush.bf16.msra.mxu0 %v822
    %1028 = vmatpush.bf16.msra.mxu0 %v818
    %1029 = vmatmul.bf16.gmra.mxu0 %v557
    %v1030 = vpop.f32.mrf.mxu0
    %v1031 = vadd.f32 0.0, %v1030
    %v1032 = vpop.f32.mrf.mxu0
    %1033 = vdwg.mxu0
    %1034 = vmatpush.bf16.msra.mxu0 %v878
    %1035 = vmatpush.bf16.msra.mxu0 %v874
    %1036 = vmatpush.bf16.msra.mxu0 %v870
    %1037 = vmatpush.bf16.msra.mxu0 %v866
    %1038 = vmatpush.bf16.msra.mxu0 %v862
    %1039 = vmatpush.bf16.msra.mxu0 %v858
    %1040 = vmatpush.bf16.msra.mxu0 %v854
    %1041 = vmatpush.bf16.msra.mxu0 %v850
    %1042 = vmatmul.bf16.gmra.mxu0 %v558
    %v1043 = vpop.f32.mrf.mxu0
    %v1044 = vadd.f32 %v1031, %v1043
    %v1045 = vpop.f32.mrf.mxu0
    %1046 = vdwg.mxu0
    %v1047 = vrot.slane %v966, 4
    %v1048 = vadd.f32 %v966, %v1047
    %v1049 = vrot.slane %v1048, 2
    %v1050 = vadd.f32 %v1048, %v1049
    %v1051 = vrot.slane %v1050, 1
    %v1052 = vadd.f32 %v1050, %v1051
    %v1053 = vrot.slane %v992, 4
    %v1054 = vadd.f32 %v992, %v1053
    %v1055 = vrot.slane %v1054, 2
    %v1056 = vadd.f32 %v1054, %v1055
    %v1057 = vrot.slane %v1056, 1
    %v1058 = vadd.f32 %v1056, %v1057
    %v1059 = vrot.slane %v1018, 4
    %v1060 = vadd.f32 %v1018, %v1059
    %v1061 = vrot.slane %v1060, 2
    %v1062 = vadd.f32 %v1060, %v1061
    %v1063 = vrot.slane %v1062, 1
    %v1064 = vadd.f32 %v1062, %v1063
    %v1065 = vrot.slane %v1044, 4
    %v1066 = vadd.f32 %v1044, %v1065
    %v1067 = vrot.slane %v1066, 2
    %v1068 = vadd.f32 %v1066, %v1067
    %v1069 = vrot.slane %v1068, 1
    %v1070 = vadd.f32 %v1068, %v1069
    %v1071 = vmul.f32 %v1052, %v475
    %v1072 = vmul.f32 %v1058, %v475
    %v1073 = vmul.f32 %v1064, %v475
    %v1074 = vmul.f32 %v1070, %v475
    %v1075 = vmul.f32 %v966, %v966
    %v1076 = vmul.f32 %v992, %v992
    %v1077 = vmul.f32 %v1018, %v1018
    %v1078 = vmul.f32 %v1044, %v1044
    %v1079 = vrot.slane %v1075, 4
    %v1080 = vadd.f32 %v1075, %v1079
    %v1081 = vrot.slane %v1080, 2
    %v1082 = vadd.f32 %v1080, %v1081
    %v1083 = vrot.slane %v1082, 1
    %v1084 = vadd.f32 %v1082, %v1083
    %v1085 = vrot.slane %v1076, 4
    %v1086 = vadd.f32 %v1076, %v1085
    %v1087 = vrot.slane %v1086, 2
    %v1088 = vadd.f32 %v1086, %v1087
    %v1089 = vrot.slane %v1088, 1
    %v1090 = vadd.f32 %v1088, %v1089
    %v1091 = vrot.slane %v1077, 4
    %v1092 = vadd.f32 %v1077, %v1091
    %v1093 = vrot.slane %v1092, 2
    %v1094 = vadd.f32 %v1092, %v1093
    %v1095 = vrot.slane %v1094, 1
    %v1096 = vadd.f32 %v1094, %v1095
    %v1097 = vrot.slane %v1078, 4
    %v1098 = vadd.f32 %v1078, %v1097
    %v1099 = vrot.slane %v1098, 2
    %v1100 = vadd.f32 %v1098, %v1099
    %v1101 = vrot.slane %v1100, 1
    %v1102 = vadd.f32 %v1100, %v1101
    %v1103 = vmul.f32 %v1084, %v475
    %v1104 = vmul.f32 %v1090, %v475
    %v1105 = vmul.f32 %v1096, %v475
    %v1106 = vmul.f32 %v1102, %v475
    %v1107 = vmul.f32 %v1071, %v1071
    %v1108 = vmul.f32 %v1072, %v1072
    %v1109 = vmul.f32 %v1073, %v1073
    %v1110 = vmul.f32 %v1074, %v1074
    %v1111 = vsub.f32 %v1103, %v1107
    %v1112 = vsub.f32 %v1104, %v1108
    %v1113 = vsub.f32 %v1105, %v1109
    %v1114 = vsub.f32 %v1106, %v1110
    %v1115 = vld [vmem:[#allocation14] sm:$0xf]
    %v1116 = vadd.f32 %v1111, 0.8
    %v1117 = vadd.f32 %v1112, 0.8
    %v1118 = vadd.f32 %v1113, 0.8
    %v1119 = vadd.f32 %v1114, 0.8
    %v1120 = vrsqrt.pop %v1116
    %v1121 = vmul.f32 %v1120, %v1116
    %v1122 = vmul.f32 %v1121, %v1120
    %v1123 = vmul.f32 0.5, %v1122
    %v1124 = vsub.f32 1.5, %v1123
    %v1125 = vmul.f32 %v1120, %v1124
    %vm1126 = vweird.f32 %v1116
    %vm1127 = vweird.f32 %v1120
    %vm1128 = vmor %vm1126, %vm1127
    %v1129 = vsel %vm1128, %v1120, %v1125
    %v1130 = vrsqrt.pop %v1117
    %v1131 = vmul.f32 %v1130, %v1117
    %v1132 = vmul.f32 %v1131, %v1130
    %v1133 = vmul.f32 0.5, %v1132
    %v1134 = vsub.f32 1.5, %v1133
    %v1135 = vmul.f32 %v1130, %v1134
    %vm1136 = vweird.f32 %v1117
    %vm1137 = vweird.f32 %v1130
    %vm1138 = vmor %vm1136, %vm1137
    %v1139 = vsel %vm1138, %v1130, %v1135
    %v1140 = vrsqrt.pop %v1118
    %v1141 = vmul.f32 %v1140, %v1118
    %v1142 = vmul.f32 %v1141, %v1140
    %v1143 = vmul.f32 0.5, %v1142
    %v1144 = vsub.f32 1.5, %v1143
    %v1145 = vmul.f32 %v1140, %v1144
    %vm1146 = vweird.f32 %v1118
    %vm1147 = vweird.f32 %v1140
    %vm1148 = vmor %vm1146, %vm1147
    %v1149 = vsel %vm1148, %v1140, %v1145
    %v1150 = vrsqrt.pop %v1119
    %v1151 = vmul.f32 %v1150, %v1119
    %v1152 = vmul.f32 %v1151, %v1150
    %v1153 = vmul.f32 0.5, %v1152
    %v1154 = vsub.f32 1.5, %v1153
    %v1155 = vmul.f32 %v1150, %v1154
    %vm1156 = vweird.f32 %v1119
    %vm1157 = vweird.f32 %v1150
    %vm1158 = vmor %vm1156, %vm1157
    %v1159 = vsel %vm1158, %v1150, %v1155
    %v1164 = vrot.slane %v1139, 7
    %v1165 = vrot.slane %v1149, 6
    %v1166 = vrot.slane %v1159, 5
    %v1167 = vsel %vm524, %v1129, %v1164
    %vm1168 = vcmask 1042434
    %v1169 = vsel %vm1168, %v1165, %v1166
    %vm1170 = vcmask 1041408
    %v1171 = vsel %vm1170, %v1167, %v1169
    %v1173 = vmul.f32 %v1115, %v1171
    %v1174 = vld [vmem:[#allocation16] sm:$0xf]
    %v1176 = vperm.slane %v1173, 0
    %v1177 = vperm.slane %v1173, 1
    %v1178 = vperm.slane %v1173, 2
    %v1179 = vperm.slane %v1173, 3
    %v1184 = vmul.f32 %v1071, %v1176
    %v1185 = vmul.f32 %v1072, %v1177
    %v1186 = vmul.f32 %v1073, %v1178
    %v1187 = vmul.f32 %v1074, %v1179
    %v1192 = vrot.slane %v1185, 7
    %v1193 = vrot.slane %v1186, 6
    %v1194 = vrot.slane %v1187, 5
    %v1195 = vsel %vm524, %v1184, %v1192
    %v1196 = vsel %vm1168, %v1193, %v1194
    %v1197 = vsel %vm1170, %v1195, %v1196
    %v1199 = vsub.f32 %v1174, %v1197
    %v1200 = vmul.f32 %v966, %v1176
    %v1201 = vmul.f32 %v992, %v1177
    %v1202 = vmul.f32 %v1018, %v1178
    %v1203 = vmul.f32 %v1044, %v1179
    %v1205 = vperm.slane %v1199, 0
    %v1206 = vperm.slane %v1199, 1
    %v1207 = vperm.slane %v1199, 2
    %v1208 = vperm.slane %v1199, 3
    %v1213 = vadd.f32 %v1200, %v1205
    %v1214 = vadd.f32 %v1201, %v1206
    %v1215 = vadd.f32 %v1202, %v1207
    %v1216 = vadd.f32 %v1203, %v1208
    %vm1217 = vcmp.gt.f32.partialorder %v1213, 0.0
    %vm1218 = vcmp.gt.f32.partialorder %v1214, 0.0
    %vm1219 = vcmp.gt.f32.partialorder %v1215, 0.0
    %vm1220 = vcmp.gt.f32.partialorder %v1216, 0.0
    %v1221 = vmul.f32 %v1213, 0.2
    %v1222 = vmul.f32 %v1214, 0.2
    %v1223 = vmul.f32 %v1215, 0.2
    %v1224 = vmul.f32 %v1216, 0.2
    %v1225 = vsel %vm1217, %v1213, %v1221
    %v1226 = vsel %vm1218, %v1214, %v1222
    %v1227 = vsel %vm1219, %v1215, %v1223
    %v1228 = vsel %vm1220, %v1216, %v1224
    %v1229 = vpack.c.bf16 %v1225, %v1225
    %v1230 = vpack.c.bf16 %v1226, %v1226
    %v1231 = vpack.c.bf16 %v1227, %v1227
    %v1232 = vpack.c.bf16 %v1228, %v1228
    %v1233 = vld [vmem:[#allocation17] sm:$0xff]
    %v1234 = vld [vmem:[#allocation17 + $0x8] sm:$0xff]
    %v1235 = vld [vmem:[#allocation17 + $0x10] sm:$0xff]
    %v1236 = vld [vmem:[#allocation17 + $0x18] sm:$0xff]
    %v1237 = vld [vmem:[#allocation17 + $0x20] sm:$0xff]
    %v1238 = vld [vmem:[#allocation17 + $0x28] sm:$0xff]
    %v1239 = vld [vmem:[#allocation17 + $0x30] sm:$0xff]
    %v1240 = vld [vmem:[#allocation17 + $0x38] sm:$0xff]
    %v1241 = vld [vmem:[#allocation17 + $0x40] sm:$0xff]
    %v1242 = vld [vmem:[#allocation17 + $0x48] sm:$0xff]
    %v1243 = vld [vmem:[#allocation17 + $0x50] sm:$0xff]
    %v1244 = vld [vmem:[#allocation17 + $0x58] sm:$0xff]
    %v1245 = vld [vmem:[#allocation17 + $0x60] sm:$0xff]
    %v1246 = vld [vmem:[#allocation17 + $0x68] sm:$0xff]
    %v1247 = vld [vmem:[#allocation17 + $0x70] sm:$0xff]
    %v1248 = vld [vmem:[#allocation17 + $0x78] sm:$0xff]
    %v1249 = vld [vmem:[#allocation17 + $0x80] sm:$0xff]
    %v1250 = vld [vmem:[#allocation17 + $0x88] sm:$0xff]
    %v1251 = vld [vmem:[#allocation17 + $0x90] sm:$0xff]
    %v1252 = vld [vmem:[#allocation17 + $0x98] sm:$0xff]
    %v1253 = vld [vmem:[#allocation17 + $0xa0] sm:$0xff]
    %v1254 = vld [vmem:[#allocation17 + $0xa8] sm:$0xff]
    %v1255 = vld [vmem:[#allocation17 + $0xb0] sm:$0xff]
    %v1256 = vld [vmem:[#allocation17 + $0xb8] sm:$0xff]
    %v1257 = vld [vmem:[#allocation17 + $0xc0] sm:$0xff]
    %v1258 = vld [vmem:[#allocation17 + $0xc8] sm:$0xff]
    %v1259 = vld [vmem:[#allocation17 + $0xd0] sm:$0xff]
    %v1260 = vld [vmem:[#allocation17 + $0xd8] sm:$0xff]
    %v1261 = vld [vmem:[#allocation17 + $0xe0] sm:$0xff]
    %v1262 = vld [vmem:[#allocation17 + $0xe8] sm:$0xff]
    %v1263 = vld [vmem:[#allocation17 + $0xf0] sm:$0xff]
    %v1264 = vld [vmem:[#allocation17 + $0xf8] sm:$0xff]
    %v1265 = vld [vmem:[#allocation17 + $0x100] sm:$0xff]
    %v1266 = vld [vmem:[#allocation17 + $0x108] sm:$0xff]
    %v1267 = vld [vmem:[#allocation17 + $0x110] sm:$0xff]
    %v1268 = vld [vmem:[#allocation17 + $0x118] sm:$0xff]
    %v1269 = vld [vmem:[#allocation17 + $0x120] sm:$0xff]
    %v1270 = vld [vmem:[#allocation17 + $0x128] sm:$0xff]
    %v1271 = vld [vmem:[#allocation17 + $0x130] sm:$0xff]
    %v1272 = vld [vmem:[#allocation17 + $0x138] sm:$0xff]
    %v1273 = vld [vmem:[#allocation17 + $0x140] sm:$0xff]
    %v1274 = vld [vmem:[#allocation17 + $0x148] sm:$0xff]
    %v1275 = vld [vmem:[#allocation17 + $0x150] sm:$0xff]
    %v1276 = vld [vmem:[#allocation17 + $0x158] sm:$0xff]
    %v1277 = vld [vmem:[#allocation17 + $0x160] sm:$0xff]
    %v1278 = vld [vmem:[#allocation17 + $0x168] sm:$0xff]
    %v1279 = vld [vmem:[#allocation17 + $0x170] sm:$0xff]
    %v1280 = vld [vmem:[#allocation17 + $0x178] sm:$0xff]
    %v1281 = vld [vmem:[#allocation17 + $0x180] sm:$0xff]
    %v1282 = vld [vmem:[#allocation17 + $0x188] sm:$0xff]
    %v1283 = vld [vmem:[#allocation17 + $0x190] sm:$0xff]
    %v1284 = vld [vmem:[#allocation17 + $0x198] sm:$0xff]
    %v1285 = vld [vmem:[#allocation17 + $0x1a0] sm:$0xff]
    %v1286 = vld [vmem:[#allocation17 + $0x1a8] sm:$0xff]
    %v1287 = vld [vmem:[#allocation17 + $0x1b0] sm:$0xff]
    %v1288 = vld [vmem:[#allocation17 + $0x1b8] sm:$0xff]
    %v1289 = vld [vmem:[#allocation17 + $0x1c0] sm:$0xff]
    %v1290 = vld [vmem:[#allocation17 + $0x1c8] sm:$0xff]
    %v1291 = vld [vmem:[#allocation17 + $0x1d0] sm:$0xff]
    %v1292 = vld [vmem:[#allocation17 + $0x1d8] sm:$0xff]
    %v1293 = vld [vmem:[#allocation17 + $0x1e0] sm:$0xff]
    %v1294 = vld [vmem:[#allocation17 + $0x1e8] sm:$0xff]
    %v1295 = vld [vmem:[#allocation17 + $0x1f0] sm:$0xff]
    %v1296 = vld [vmem:[#allocation17 + $0x1f8] sm:$0xff]
    %v1297 = vld [vmem:[#allocation17 + $0x200] sm:$0xff]
    %v1298 = vld [vmem:[#allocation17 + $0x208] sm:$0xff]
    %v1299 = vld [vmem:[#allocation17 + $0x210] sm:$0xff]
    %v1300 = vld [vmem:[#allocation17 + $0x218] sm:$0xff]
    %v1301 = vld [vmem:[#allocation17 + $0x220] sm:$0xff]
    %v1302 = vld [vmem:[#allocation17 + $0x228] sm:$0xff]
    %v1303 = vld [vmem:[#allocation17 + $0x230] sm:$0xff]
    %v1304 = vld [vmem:[#allocation17 + $0x238] sm:$0xff]
    %v1305 = vld [vmem:[#allocation17 + $0x240] sm:$0xff]
    %v1306 = vld [vmem:[#allocation17 + $0x248] sm:$0xff]
    %v1307 = vld [vmem:[#allocation17 + $0x250] sm:$0xff]
    %v1308 = vld [vmem:[#allocation17 + $0x258] sm:$0xff]
    %v1309 = vld [vmem:[#allocation17 + $0x260] sm:$0xff]
    %v1310 = vld [vmem:[#allocation17 + $0x268] sm:$0xff]
    %v1311 = vld [vmem:[#allocation17 + $0x270] sm:$0xff]
    %v1312 = vld [vmem:[#allocation17 + $0x278] sm:$0xff]
    %v1313 = vld [vmem:[#allocation17 + $0x280] sm:$0xff]
    %v1314 = vld [vmem:[#allocation17 + $0x288] sm:$0xff]
    %v1315 = vld [vmem:[#allocation17 + $0x290] sm:$0xff]
    %v1316 = vld [vmem:[#allocation17 + $0x298] sm:$0xff]
    %v1317 = vld [vmem:[#allocation17 + $0x2a0] sm:$0xff]
    %v1318 = vld [vmem:[#allocation17 + $0x2a8] sm:$0xff]
    %v1319 = vld [vmem:[#allocation17 + $0x2b0] sm:$0xff]
    %v1320 = vld [vmem:[#allocation17 + $0x2b8] sm:$0xff]
    %v1321 = vld [vmem:[#allocation17 + $0x2c0] sm:$0xff]
    %v1322 = vld [vmem:[#allocation17 + $0x2c8] sm:$0xff]
    %v1323 = vld [vmem:[#allocation17 + $0x2d0] sm:$0xff]
    %v1324 = vld [vmem:[#allocation17 + $0x2d8] sm:$0xff]
    %v1325 = vld [vmem:[#allocation17 + $0x2e0] sm:$0xff]
    %v1326 = vld [vmem:[#allocation17 + $0x2e8] sm:$0xff]
    %v1327 = vld [vmem:[#allocation17 + $0x2f0] sm:$0xff]
    %v1328 = vld [vmem:[#allocation17 + $0x2f8] sm:$0xff]
    %v1329 = vld [vmem:[#allocation17 + $0x300] sm:$0xff]
    %v1330 = vld [vmem:[#allocation17 + $0x308] sm:$0xff]
    %v1331 = vld [vmem:[#allocation17 + $0x310] sm:$0xff]
    %v1332 = vld [vmem:[#allocation17 + $0x318] sm:$0xff]
    %v1333 = vld [vmem:[#allocation17 + $0x320] sm:$0xff]
    %v1334 = vld [vmem:[#allocation17 + $0x328] sm:$0xff]
    %v1335 = vld [vmem:[#allocation17 + $0x330] sm:$0xff]
    %v1336 = vld [vmem:[#allocation17 + $0x338] sm:$0xff]
    %v1337 = vld [vmem:[#allocation17 + $0x340] sm:$0xff]
    %v1338 = vld [vmem:[#allocation17 + $0x348] sm:$0xff]
    %v1339 = vld [vmem:[#allocation17 + $0x350] sm:$0xff]
    %v1340 = vld [vmem:[#allocation17 + $0x358] sm:$0xff]
    %v1341 = vld [vmem:[#allocation17 + $0x360] sm:$0xff]
    %v1342 = vld [vmem:[#allocation17 + $0x368] sm:$0xff]
    %v1343 = vld [vmem:[#allocation17 + $0x370] sm:$0xff]
    %v1344 = vld [vmem:[#allocation17 + $0x378] sm:$0xff]
    %v1345 = vld [vmem:[#allocation17 + $0x380] sm:$0xff]
    %v1346 = vld [vmem:[#allocation17 + $0x388] sm:$0xff]
    %v1347 = vld [vmem:[#allocation17 + $0x390] sm:$0xff]
    %v1348 = vld [vmem:[#allocation17 + $0x398] sm:$0xff]
    %v1349 = vld [vmem:[#allocation17 + $0x3a0] sm:$0xff]
    %v1350 = vld [vmem:[#allocation17 + $0x3a8] sm:$0xff]
    %v1351 = vld [vmem:[#allocation17 + $0x3b0] sm:$0xff]
    %v1352 = vld [vmem:[#allocation17 + $0x3b8] sm:$0xff]
    %v1353 = vld [vmem:[#allocation17 + $0x3c0] sm:$0xff]
    %v1354 = vld [vmem:[#allocation17 + $0x3c8] sm:$0xff]
    %v1355 = vld [vmem:[#allocation17 + $0x3d0] sm:$0xff]
    %v1356 = vld [vmem:[#allocation17 + $0x3d8] sm:$0xff]
    %v1357 = vld [vmem:[#allocation17 + $0x3e0] sm:$0xff]
    %v1358 = vld [vmem:[#allocation17 + $0x3e8] sm:$0xff]
    %v1359 = vld [vmem:[#allocation17 + $0x3f0] sm:$0xff]
    %v1360 = vld [vmem:[#allocation17 + $0x3f8] sm:$0xff]
    %v1361 = vld [vmem:[#allocation17 + $0x400] sm:$0xff]
    %v1362 = vld [vmem:[#allocation17 + $0x408] sm:$0xff]
    %v1363 = vld [vmem:[#allocation17 + $0x410] sm:$0xff]
    %v1364 = vld [vmem:[#allocation17 + $0x418] sm:$0xff]
    %v1365 = vld [vmem:[#allocation17 + $0x420] sm:$0xff]
    %v1366 = vld [vmem:[#allocation17 + $0x428] sm:$0xff]
    %v1367 = vld [vmem:[#allocation17 + $0x430] sm:$0xff]
    %v1368 = vld [vmem:[#allocation17 + $0x438] sm:$0xff]
    %v1369 = vld [vmem:[#allocation17 + $0x440] sm:$0xff]
    %v1370 = vld [vmem:[#allocation17 + $0x448] sm:$0xff]
    %v1371 = vld [vmem:[#allocation17 + $0x450] sm:$0xff]
    %v1372 = vld [vmem:[#allocation17 + $0x458] sm:$0xff]
    %v1373 = vld [vmem:[#allocation17 + $0x460] sm:$0xff]
    %v1374 = vld [vmem:[#allocation17 + $0x468] sm:$0xff]
    %v1375 = vld [vmem:[#allocation17 + $0x470] sm:$0xff]
    %v1376 = vld [vmem:[#allocation17 + $0x478] sm:$0xff]
    %v1377 = vld [vmem:[#allocation17 + $0x480] sm:$0xff]
    %v1378 = vld [vmem:[#allocation17 + $0x488] sm:$0xff]
    %v1379 = vld [vmem:[#allocation17 + $0x490] sm:$0xff]
    %v1380 = vld [vmem:[#allocation17 + $0x498] sm:$0xff]
    %v1381 = vld [vmem:[#allocation17 + $0x4a0] sm:$0xff]
    %v1382 = vld [vmem:[#allocation17 + $0x4a8] sm:$0xff]
    %v1383 = vld [vmem:[#allocation17 + $0x4b0] sm:$0xff]
    %v1384 = vld [vmem:[#allocation17 + $0x4b8] sm:$0xff]
    %v1385 = vld [vmem:[#allocation17 + $0x4c0] sm:$0xff]
    %v1386 = vld [vmem:[#allocation17 + $0x4c8] sm:$0xff]
    %v1387 = vld [vmem:[#allocation17 + $0x4d0] sm:$0xff]
    %v1388 = vld [vmem:[#allocation17 + $0x4d8] sm:$0xff]
    %v1389 = vld [vmem:[#allocation17 + $0x4e0] sm:$0xff]
    %v1390 = vld [vmem:[#allocation17 + $0x4e8] sm:$0xff]
    %v1391 = vld [vmem:[#allocation17 + $0x4f0] sm:$0xff]
    %v1392 = vld [vmem:[#allocation17 + $0x4f8] sm:$0xff]
    %v1393 = vld [vmem:[#allocation17 + $0x500] sm:$0xff]
    %v1394 = vld [vmem:[#allocation17 + $0x508] sm:$0xff]
    %v1395 = vld [vmem:[#allocation17 + $0x510] sm:$0xff]
    %v1396 = vld [vmem:[#allocation17 + $0x518] sm:$0xff]
    %v1397 = vld [vmem:[#allocation17 + $0x520] sm:$0xff]
    %v1398 = vld [vmem:[#allocation17 + $0x528] sm:$0xff]
    %v1399 = vld [vmem:[#allocation17 + $0x530] sm:$0xff]
    %v1400 = vld [vmem:[#allocation17 + $0x538] sm:$0xff]
    %v1401 = vld [vmem:[#allocation17 + $0x540] sm:$0xff]
    %v1402 = vld [vmem:[#allocation17 + $0x548] sm:$0xff]
    %v1403 = vld [vmem:[#allocation17 + $0x550] sm:$0xff]
    %v1404 = vld [vmem:[#allocation17 + $0x558] sm:$0xff]
    %v1405 = vld [vmem:[#allocation17 + $0x560] sm:$0xff]
    %v1406 = vld [vmem:[#allocation17 + $0x568] sm:$0xff]
    %v1407 = vld [vmem:[#allocation17 + $0x570] sm:$0xff]
    %v1408 = vld [vmem:[#allocation17 + $0x578] sm:$0xff]
    %v1409 = vld [vmem:[#allocation17 + $0x580] sm:$0xff]
    %v1410 = vld [vmem:[#allocation17 + $0x588] sm:$0xff]
    %v1411 = vld [vmem:[#allocation17 + $0x590] sm:$0xff]
    %v1412 = vld [vmem:[#allocation17 + $0x598] sm:$0xff]
    %v1413 = vld [vmem:[#allocation17 + $0x5a0] sm:$0xff]
    %v1414 = vld [vmem:[#allocation17 + $0x5a8] sm:$0xff]
    %v1415 = vld [vmem:[#allocation17 + $0x5b0] sm:$0xff]
    %v1416 = vld [vmem:[#allocation17 + $0x5b8] sm:$0xff]
    %v1417 = vld [vmem:[#allocation17 + $0x5c0] sm:$0xff]
    %v1418 = vld [vmem:[#allocation17 + $0x5c8] sm:$0xff]
    %v1419 = vld [vmem:[#allocation17 + $0x5d0] sm:$0xff]
    %v1420 = vld [vmem:[#allocation17 + $0x5d8] sm:$0xff]
    %v1421 = vld [vmem:[#allocation17 + $0x5e0] sm:$0xff]
    %v1422 = vld [vmem:[#allocation17 + $0x5e8] sm:$0xff]
    %v1423 = vld [vmem:[#allocation17 + $0x5f0] sm:$0xff]
    %v1424 = vld [vmem:[#allocation17 + $0x5f8] sm:$0xff]
    %v1425 = vld [vmem:[#allocation17 + $0x600] sm:$0xff]
    %v1426 = vld [vmem:[#allocation17 + $0x608] sm:$0xff]
    %v1427 = vld [vmem:[#allocation17 + $0x610] sm:$0xff]
    %v1428 = vld [vmem:[#allocation17 + $0x618] sm:$0xff]
    %v1429 = vld [vmem:[#allocation17 + $0x620] sm:$0xff]
    %v1430 = vld [vmem:[#allocation17 + $0x628] sm:$0xff]
    %v1431 = vld [vmem:[#allocation17 + $0x630] sm:$0xff]
    %v1432 = vld [vmem:[#allocation17 + $0x638] sm:$0xff]
    %v1433 = vld [vmem:[#allocation17 + $0x640] sm:$0xff]
    %v1434 = vld [vmem:[#allocation17 + $0x648] sm:$0xff]
    %v1435 = vld [vmem:[#allocation17 + $0x650] sm:$0xff]
    %v1436 = vld [vmem:[#allocation17 + $0x658] sm:$0xff]
    %v1437 = vld [vmem:[#allocation17 + $0x660] sm:$0xff]
    %v1438 = vld [vmem:[#allocation17 + $0x668] sm:$0xff]
    %v1439 = vld [vmem:[#allocation17 + $0x670] sm:$0xff]
    %v1440 = vld [vmem:[#allocation17 + $0x678] sm:$0xff]
    %v1441 = vld [vmem:[#allocation17 + $0x680] sm:$0xff]
    %v1442 = vld [vmem:[#allocation17 + $0x688] sm:$0xff]
    %v1443 = vld [vmem:[#allocation17 + $0x690] sm:$0xff]
    %v1444 = vld [vmem:[#allocation17 + $0x698] sm:$0xff]
    %v1445 = vld [vmem:[#allocation17 + $0x6a0] sm:$0xff]
    %v1446 = vld [vmem:[#allocation17 + $0x6a8] sm:$0xff]
    %v1447 = vld [vmem:[#allocation17 + $0x6b0] sm:$0xff]
    %v1448 = vld [vmem:[#allocation17 + $0x6b8] sm:$0xff]
    %v1449 = vld [vmem:[#allocation17 + $0x6c0] sm:$0xff]
    %v1450 = vld [vmem:[#allocation17 + $0x6c8] sm:$0xff]
    %v1451 = vld [vmem:[#allocation17 + $0x6d0] sm:$0xff]
    %v1452 = vld [vmem:[#allocation17 + $0x6d8] sm:$0xff]
    %v1453 = vld [vmem:[#allocation17 + $0x6e0] sm:$0xff]
    %v1454 = vld [vmem:[#allocation17 + $0x6e8] sm:$0xff]
    %v1455 = vld [vmem:[#allocation17 + $0x6f0] sm:$0xff]
    %v1456 = vld [vmem:[#allocation17 + $0x6f8] sm:$0xff]
    %v1457 = vld [vmem:[#allocation17 + $0x700] sm:$0xff]
    %v1458 = vld [vmem:[#allocation17 + $0x708] sm:$0xff]
    %v1459 = vld [vmem:[#allocation17 + $0x710] sm:$0xff]
    %v1460 = vld [vmem:[#allocation17 + $0x718] sm:$0xff]
    %v1461 = vld [vmem:[#allocation17 + $0x720] sm:$0xff]
    %v1462 = vld [vmem:[#allocation17 + $0x728] sm:$0xff]
    %v1463 = vld [vmem:[#allocation17 + $0x730] sm:$0xff]
    %v1464 = vld [vmem:[#allocation17 + $0x738] sm:$0xff]
    %v1465 = vld [vmem:[#allocation17 + $0x740] sm:$0xff]
    %v1466 = vld [vmem:[#allocation17 + $0x748] sm:$0xff]
    %v1467 = vld [vmem:[#allocation17 + $0x750] sm:$0xff]
    %v1468 = vld [vmem:[#allocation17 + $0x758] sm:$0xff]
    %v1469 = vld [vmem:[#allocation17 + $0x760] sm:$0xff]
    %v1470 = vld [vmem:[#allocation17 + $0x768] sm:$0xff]
    %v1471 = vld [vmem:[#allocation17 + $0x770] sm:$0xff]
    %v1472 = vld [vmem:[#allocation17 + $0x778] sm:$0xff]
    %v1473 = vld [vmem:[#allocation17 + $0x780] sm:$0xff]
    %v1474 = vld [vmem:[#allocation17 + $0x788] sm:$0xff]
    %v1475 = vld [vmem:[#allocation17 + $0x790] sm:$0xff]
    %v1476 = vld [vmem:[#allocation17 + $0x798] sm:$0xff]
    %v1477 = vld [vmem:[#allocation17 + $0x7a0] sm:$0xff]
    %v1478 = vld [vmem:[#allocation17 + $0x7a8] sm:$0xff]
    %v1479 = vld [vmem:[#allocation17 + $0x7b0] sm:$0xff]
    %v1480 = vld [vmem:[#allocation17 + $0x7b8] sm:$0xff]
    %v1481 = vld [vmem:[#allocation17 + $0x7c0] sm:$0xff]
    %v1482 = vld [vmem:[#allocation17 + $0x7c8] sm:$0xff]
    %v1483 = vld [vmem:[#allocation17 + $0x7d0] sm:$0xff]
    %v1484 = vld [vmem:[#allocation17 + $0x7d8] sm:$0xff]
    %v1485 = vld [vmem:[#allocation17 + $0x7e0] sm:$0xff]
    %v1486 = vld [vmem:[#allocation17 + $0x7e8] sm:$0xff]
    %v1487 = vld [vmem:[#allocation17 + $0x7f0] sm:$0xff]
    %v1488 = vld [vmem:[#allocation17 + $0x7f8] sm:$0xff]
    %v1745 = vunpack.c.l.b16 %v1233
    %v1746 = vunpack.c.h.b16 %v1233
    %v1747 = vunpack.c.l.b16 %v1234
    %v1748 = vunpack.c.h.b16 %v1234
    %v1749 = vunpack.c.l.b16 %v1235
    %v1750 = vunpack.c.h.b16 %v1235
    %v1751 = vunpack.c.l.b16 %v1236
    %v1752 = vunpack.c.h.b16 %v1236
    %v1753 = vunpack.c.l.b16 %v1237
    %v1754 = vunpack.c.h.b16 %v1237
    %v1755 = vunpack.c.l.b16 %v1238
    %v1756 = vunpack.c.h.b16 %v1238
    %v1757 = vunpack.c.l.b16 %v1239
    %v1758 = vunpack.c.h.b16 %v1239
    %v1759 = vunpack.c.l.b16 %v1240
    %v1760 = vunpack.c.h.b16 %v1240
    %v1761 = vunpack.c.l.b16 %v1241
    %v1762 = vunpack.c.h.b16 %v1241
    %v1763 = vunpack.c.l.b16 %v1242
    %v1764 = vunpack.c.h.b16 %v1242
    %v1765 = vunpack.c.l.b16 %v1243
    %v1766 = vunpack.c.h.b16 %v1243
    %v1767 = vunpack.c.l.b16 %v1244
    %v1768 = vunpack.c.h.b16 %v1244
    %v1769 = vunpack.c.l.b16 %v1245
    %v1770 = vunpack.c.h.b16 %v1245
    %v1771 = vunpack.c.l.b16 %v1246
    %v1772 = vunpack.c.h.b16 %v1246
    %v1773 = vunpack.c.l.b16 %v1247
    %v1774 = vunpack.c.h.b16 %v1247
    %v1775 = vunpack.c.l.b16 %v1248
    %v1776 = vunpack.c.h.b16 %v1248
    %v1777 = vunpack.c.l.b16 %v1249
    %v1778 = vunpack.c.h.b16 %v1249
    %v1779 = vunpack.c.l.b16 %v1250
    %v1780 = vunpack.c.h.b16 %v1250
    %v1781 = vunpack.c.l.b16 %v1251
    %v1782 = vunpack.c.h.b16 %v1251
    %v1783 = vunpack.c.l.b16 %v1252
    %v1784 = vunpack.c.h.b16 %v1252
    %v1785 = vunpack.c.l.b16 %v1253
    %v1786 = vunpack.c.h.b16 %v1253
    %v1787 = vunpack.c.l.b16 %v1254
    %v1788 = vunpack.c.h.b16 %v1254
    %v1789 = vunpack.c.l.b16 %v1255
    %v1790 = vunpack.c.h.b16 %v1255
    %v1791 = vunpack.c.l.b16 %v1256
    %v1792 = vunpack.c.h.b16 %v1256
    %v1793 = vunpack.c.l.b16 %v1257
    %v1794 = vunpack.c.h.b16 %v1257
    %v1795 = vunpack.c.l.b16 %v1258
    %v1796 = vunpack.c.h.b16 %v1258
    %v1797 = vunpack.c.l.b16 %v1259
    %v1798 = vunpack.c.h.b16 %v1259
    %v1799 = vunpack.c.l.b16 %v1260
    %v1800 = vunpack.c.h.b16 %v1260
    %v1801 = vunpack.c.l.b16 %v1261
    %v1802 = vunpack.c.h.b16 %v1261
    %v1803 = vunpack.c.l.b16 %v1262
    %v1804 = vunpack.c.h.b16 %v1262
    %v1805 = vunpack.c.l.b16 %v1263
    %v1806 = vunpack.c.h.b16 %v1263
    %v1807 = vunpack.c.l.b16 %v1264
    %v1808 = vunpack.c.h.b16 %v1264
    %v1809 = vunpack.c.l.b16 %v1265
    %v1810 = vunpack.c.h.b16 %v1265
    %v1811 = vunpack.c.l.b16 %v1266
    %v1812 = vunpack.c.h.b16 %v1266
    %v1813 = vunpack.c.l.b16 %v1267
    %v1814 = vunpack.c.h.b16 %v1267
    %v1815 = vunpack.c.l.b16 %v1268
    %v1816 = vunpack.c.h.b16 %v1268
    %v1817 = vunpack.c.l.b16 %v1269
    %v1818 = vunpack.c.h.b16 %v1269
    %v1819 = vunpack.c.l.b16 %v1270
    %v1820 = vunpack.c.h.b16 %v1270
    %v1821 = vunpack.c.l.b16 %v1271
    %v1822 = vunpack.c.h.b16 %v1271
    %v1823 = vunpack.c.l.b16 %v1272
    %v1824 = vunpack.c.h.b16 %v1272
    %v1825 = vunpack.c.l.b16 %v1273
    %v1826 = vunpack.c.h.b16 %v1273
    %v1827 = vunpack.c.l.b16 %v1274
    %v1828 = vunpack.c.h.b16 %v1274
    %v1829 = vunpack.c.l.b16 %v1275
    %v1830 = vunpack.c.h.b16 %v1275
    %v1831 = vunpack.c.l.b16 %v1276
    %v1832 = vunpack.c.h.b16 %v1276
    %v1833 = vunpack.c.l.b16 %v1277
    %v1834 = vunpack.c.h.b16 %v1277
    %v1835 = vunpack.c.l.b16 %v1278
    %v1836 = vunpack.c.h.b16 %v1278
    %v1837 = vunpack.c.l.b16 %v1279
    %v1838 = vunpack.c.h.b16 %v1279
    %v1839 = vunpack.c.l.b16 %v1280
    %v1840 = vunpack.c.h.b16 %v1280
    %v1841 = vunpack.c.l.b16 %v1281
    %v1842 = vunpack.c.h.b16 %v1281
    %v1843 = vunpack.c.l.b16 %v1282
    %v1844 = vunpack.c.h.b16 %v1282
    %v1845 = vunpack.c.l.b16 %v1283
    %v1846 = vunpack.c.h.b16 %v1283
    %v1847 = vunpack.c.l.b16 %v1284
    %v1848 = vunpack.c.h.b16 %v1284
    %v1849 = vunpack.c.l.b16 %v1285
    %v1850 = vunpack.c.h.b16 %v1285
    %v1851 = vunpack.c.l.b16 %v1286
    %v1852 = vunpack.c.h.b16 %v1286
    %v1853 = vunpack.c.l.b16 %v1287
    %v1854 = vunpack.c.h.b16 %v1287
    %v1855 = vunpack.c.l.b16 %v1288
    %v1856 = vunpack.c.h.b16 %v1288
    %v1857 = vunpack.c.l.b16 %v1289
    %v1858 = vunpack.c.h.b16 %v1289
    %v1859 = vunpack.c.l.b16 %v1290
    %v1860 = vunpack.c.h.b16 %v1290
    %v1861 = vunpack.c.l.b16 %v1291
    %v1862 = vunpack.c.h.b16 %v1291
    %v1863 = vunpack.c.l.b16 %v1292
    %v1864 = vunpack.c.h.b16 %v1292
    %v1865 = vunpack.c.l.b16 %v1293
    %v1866 = vunpack.c.h.b16 %v1293
    %v1867 = vunpack.c.l.b16 %v1294
    %v1868 = vunpack.c.h.b16 %v1294
    %v1869 = vunpack.c.l.b16 %v1295
    %v1870 = vunpack.c.h.b16 %v1295
    %v1871 = vunpack.c.l.b16 %v1296
    %v1872 = vunpack.c.h.b16 %v1296
    %v1873 = vunpack.c.l.b16 %v1297
    %v1874 = vunpack.c.h.b16 %v1297
    %v1875 = vunpack.c.l.b16 %v1298
    %v1876 = vunpack.c.h.b16 %v1298
    %v1877 = vunpack.c.l.b16 %v1299
    %v1878 = vunpack.c.h.b16 %v1299
    %v1879 = vunpack.c.l.b16 %v1300
    %v1880 = vunpack.c.h.b16 %v1300
    %v1881 = vunpack.c.l.b16 %v1301
    %v1882 = vunpack.c.h.b16 %v1301
    %v1883 = vunpack.c.l.b16 %v1302
    %v1884 = vunpack.c.h.b16 %v1302
    %v1885 = vunpack.c.l.b16 %v1303
    %v1886 = vunpack.c.h.b16 %v1303
    %v1887 = vunpack.c.l.b16 %v1304
    %v1888 = vunpack.c.h.b16 %v1304
    %v1889 = vunpack.c.l.b16 %v1305
    %v1890 = vunpack.c.h.b16 %v1305
    %v1891 = vunpack.c.l.b16 %v1306
    %v1892 = vunpack.c.h.b16 %v1306
    %v1893 = vunpack.c.l.b16 %v1307
    %v1894 = vunpack.c.h.b16 %v1307
    %v1895 = vunpack.c.l.b16 %v1308
    %v1896 = vunpack.c.h.b16 %v1308
    %v1897 = vunpack.c.l.b16 %v1309
    %v1898 = vunpack.c.h.b16 %v1309
    %v1899 = vunpack.c.l.b16 %v1310
    %v1900 = vunpack.c.h.b16 %v1310
    %v1901 = vunpack.c.l.b16 %v1311
    %v1902 = vunpack.c.h.b16 %v1311
    %v1903 = vunpack.c.l.b16 %v1312
    %v1904 = vunpack.c.h.b16 %v1312
    %v1905 = vunpack.c.l.b16 %v1313
    %v1906 = vunpack.c.h.b16 %v1313
    %v1907 = vunpack.c.l.b16 %v1314
    %v1908 = vunpack.c.h.b16 %v1314
    %v1909 = vunpack.c.l.b16 %v1315
    %v1910 = vunpack.c.h.b16 %v1315
    %v1911 = vunpack.c.l.b16 %v1316
    %v1912 = vunpack.c.h.b16 %v1316
    %v1913 = vunpack.c.l.b16 %v1317
    %v1914 = vunpack.c.h.b16 %v1317
    %v1915 = vunpack.c.l.b16 %v1318
    %v1916 = vunpack.c.h.b16 %v1318
    %v1917 = vunpack.c.l.b16 %v1319
    %v1918 = vunpack.c.h.b16 %v1319
    %v1919 = vunpack.c.l.b16 %v1320
    %v1920 = vunpack.c.h.b16 %v1320
    %v1921 = vunpack.c.l.b16 %v1321
    %v1922 = vunpack.c.h.b16 %v1321
    %v1923 = vunpack.c.l.b16 %v1322
    %v1924 = vunpack.c.h.b16 %v1322
    %v1925 = vunpack.c.l.b16 %v1323
    %v1926 = vunpack.c.h.b16 %v1323
    %v1927 = vunpack.c.l.b16 %v1324
    %v1928 = vunpack.c.h.b16 %v1324
    %v1929 = vunpack.c.l.b16 %v1325
    %v1930 = vunpack.c.h.b16 %v1325
    %v1931 = vunpack.c.l.b16 %v1326
    %v1932 = vunpack.c.h.b16 %v1326
    %v1933 = vunpack.c.l.b16 %v1327
    %v1934 = vunpack.c.h.b16 %v1327
    %v1935 = vunpack.c.l.b16 %v1328
    %v1936 = vunpack.c.h.b16 %v1328
    %v1937 = vunpack.c.l.b16 %v1329
    %v1938 = vunpack.c.h.b16 %v1329
    %v1939 = vunpack.c.l.b16 %v1330
    %v1940 = vunpack.c.h.b16 %v1330
    %v1941 = vunpack.c.l.b16 %v1331
    %v1942 = vunpack.c.h.b16 %v1331
    %v1943 = vunpack.c.l.b16 %v1332
    %v1944 = vunpack.c.h.b16 %v1332
    %v1945 = vunpack.c.l.b16 %v1333
    %v1946 = vunpack.c.h.b16 %v1333
    %v1947 = vunpack.c.l.b16 %v1334
    %v1948 = vunpack.c.h.b16 %v1334
    %v1949 = vunpack.c.l.b16 %v1335
    %v1950 = vunpack.c.h.b16 %v1335
    %v1951 = vunpack.c.l.b16 %v1336
    %v1952 = vunpack.c.h.b16 %v1336
    %v1953 = vunpack.c.l.b16 %v1337
    %v1954 = vunpack.c.h.b16 %v1337
    %v1955 = vunpack.c.l.b16 %v1338
    %v1956 = vunpack.c.h.b16 %v1338
    %v1957 = vunpack.c.l.b16 %v1339
    %v1958 = vunpack.c.h.b16 %v1339
    %v1959 = vunpack.c.l.b16 %v1340
    %v1960 = vunpack.c.h.b16 %v1340
    %v1961 = vunpack.c.l.b16 %v1341
    %v1962 = vunpack.c.h.b16 %v1341
    %v1963 = vunpack.c.l.b16 %v1342
    %v1964 = vunpack.c.h.b16 %v1342
    %v1965 = vunpack.c.l.b16 %v1343
    %v1966 = vunpack.c.h.b16 %v1343
    %v1967 = vunpack.c.l.b16 %v1344
    %v1968 = vunpack.c.h.b16 %v1344
    %v1969 = vunpack.c.l.b16 %v1345
    %v1970 = vunpack.c.h.b16 %v1345
    %v1971 = vunpack.c.l.b16 %v1346
    %v1972 = vunpack.c.h.b16 %v1346
    %v1973 = vunpack.c.l.b16 %v1347
    %v1974 = vunpack.c.h.b16 %v1347
    %v1975 = vunpack.c.l.b16 %v1348
    %v1976 = vunpack.c.h.b16 %v1348
    %v1977 = vunpack.c.l.b16 %v1349
    %v1978 = vunpack.c.h.b16 %v1349
    %v1979 = vunpack.c.l.b16 %v1350
    %v1980 = vunpack.c.h.b16 %v1350
    %v1981 = vunpack.c.l.b16 %v1351
    %v1982 = vunpack.c.h.b16 %v1351
    %v1983 = vunpack.c.l.b16 %v1352
    %v1984 = vunpack.c.h.b16 %v1352
    %v1985 = vunpack.c.l.b16 %v1353
    %v1986 = vunpack.c.h.b16 %v1353
    %v1987 = vunpack.c.l.b16 %v1354
    %v1988 = vunpack.c.h.b16 %v1354
    %v1989 = vunpack.c.l.b16 %v1355
    %v1990 = vunpack.c.h.b16 %v1355
    %v1991 = vunpack.c.l.b16 %v1356
    %v1992 = vunpack.c.h.b16 %v1356
    %v1993 = vunpack.c.l.b16 %v1357
    %v1994 = vunpack.c.h.b16 %v1357
    %v1995 = vunpack.c.l.b16 %v1358
    %v1996 = vunpack.c.h.b16 %v1358
    %v1997 = vunpack.c.l.b16 %v1359
    %v1998 = vunpack.c.h.b16 %v1359
    %v1999 = vunpack.c.l.b16 %v1360
    %v2000 = vunpack.c.h.b16 %v1360
    %v2001 = vunpack.c.l.b16 %v1361
    %v2002 = vunpack.c.h.b16 %v1361
    %v2003 = vunpack.c.l.b16 %v1362
    %v2004 = vunpack.c.h.b16 %v1362
    %v2005 = vunpack.c.l.b16 %v1363
    %v2006 = vunpack.c.h.b16 %v1363
    %v2007 = vunpack.c.l.b16 %v1364
    %v2008 = vunpack.c.h.b16 %v1364
    %v2009 = vunpack.c.l.b16 %v1365
    %v2010 = vunpack.c.h.b16 %v1365
    %v2011 = vunpack.c.l.b16 %v1366
    %v2012 = vunpack.c.h.b16 %v1366
    %v2013 = vunpack.c.l.b16 %v1367
    %v2014 = vunpack.c.h.b16 %v1367
    %v2015 = vunpack.c.l.b16 %v1368
    %v2016 = vunpack.c.h.b16 %v1368
    %v2017 = vunpack.c.l.b16 %v1369
    %v2018 = vunpack.c.h.b16 %v1369
    %v2019 = vunpack.c.l.b16 %v1370
    %v2020 = vunpack.c.h.b16 %v1370
    %v2021 = vunpack.c.l.b16 %v1371
    %v2022 = vunpack.c.h.b16 %v1371
    %v2023 = vunpack.c.l.b16 %v1372
    %v2024 = vunpack.c.h.b16 %v1372
    %v2025 = vunpack.c.l.b16 %v1373
    %v2026 = vunpack.c.h.b16 %v1373
    %v2027 = vunpack.c.l.b16 %v1374
    %v2028 = vunpack.c.h.b16 %v1374
    %v2029 = vunpack.c.l.b16 %v1375
    %v2030 = vunpack.c.h.b16 %v1375
    %v2031 = vunpack.c.l.b16 %v1376
    %v2032 = vunpack.c.h.b16 %v1376
    %v2033 = vunpack.c.l.b16 %v1377
    %v2034 = vunpack.c.h.b16 %v1377
    %v2035 = vunpack.c.l.b16 %v1378
    %v2036 = vunpack.c.h.b16 %v1378
    %v2037 = vunpack.c.l.b16 %v1379
    %v2038 = vunpack.c.h.b16 %v1379
    %v2039 = vunpack.c.l.b16 %v1380
    %v2040 = vunpack.c.h.b16 %v1380
    %v2041 = vunpack.c.l.b16 %v1381
    %v2042 = vunpack.c.h.b16 %v1381
    %v2043 = vunpack.c.l.b16 %v1382
    %v2044 = vunpack.c.h.b16 %v1382
    %v2045 = vunpack.c.l.b16 %v1383
    %v2046 = vunpack.c.h.b16 %v1383
    %v2047 = vunpack.c.l.b16 %v1384
    %v2048 = vunpack.c.h.b16 %v1384
    %v2049 = vunpack.c.l.b16 %v1385
    %v2050 = vunpack.c.h.b16 %v1385
    %v2051 = vunpack.c.l.b16 %v1386
    %v2052 = vunpack.c.h.b16 %v1386
    %v2053 = vunpack.c.l.b16 %v1387
    %v2054 = vunpack.c.h.b16 %v1387
    %v2055 = vunpack.c.l.b16 %v1388
    %v2056 = vunpack.c.h.b16 %v1388
    %v2057 = vunpack.c.l.b16 %v1389
    %v2058 = vunpack.c.h.b16 %v1389
    %v2059 = vunpack.c.l.b16 %v1390
    %v2060 = vunpack.c.h.b16 %v1390
    %v2061 = vunpack.c.l.b16 %v1391
    %v2062 = vunpack.c.h.b16 %v1391
    %v2063 = vunpack.c.l.b16 %v1392
    %v2064 = vunpack.c.h.b16 %v1392
    %v2065 = vunpack.c.l.b16 %v1393
    %v2066 = vunpack.c.h.b16 %v1393
    %v2067 = vunpack.c.l.b16 %v1394
    %v2068 = vunpack.c.h.b16 %v1394
    %v2069 = vunpack.c.l.b16 %v1395
    %v2070 = vunpack.c.h.b16 %v1395
    %v2071 = vunpack.c.l.b16 %v1396
    %v2072 = vunpack.c.h.b16 %v1396
    %v2073 = vunpack.c.l.b16 %v1397
    %v2074 = vunpack.c.h.b16 %v1397
    %v2075 = vunpack.c.l.b16 %v1398
    %v2076 = vunpack.c.h.b16 %v1398
    %v2077 = vunpack.c.l.b16 %v1399
    %v2078 = vunpack.c.h.b16 %v1399
    %v2079 = vunpack.c.l.b16 %v1400
    %v2080 = vunpack.c.h.b16 %v1400
    %v2081 = vunpack.c.l.b16 %v1401
    %v2082 = vunpack.c.h.b16 %v1401
    %v2083 = vunpack.c.l.b16 %v1402
    %v2084 = vunpack.c.h.b16 %v1402
    %v2085 = vunpack.c.l.b16 %v1403
    %v2086 = vunpack.c.h.b16 %v1403
    %v2087 = vunpack.c.l.b16 %v1404
    %v2088 = vunpack.c.h.b16 %v1404
    %v2089 = vunpack.c.l.b16 %v1405
    %v2090 = vunpack.c.h.b16 %v1405
    %v2091 = vunpack.c.l.b16 %v1406
    %v2092 = vunpack.c.h.b16 %v1406
    %v2093 = vunpack.c.l.b16 %v1407
    %v2094 = vunpack.c.h.b16 %v1407
    %v2095 = vunpack.c.l.b16 %v1408
    %v2096 = vunpack.c.h.b16 %v1408
    %v2097 = vunpack.c.l.b16 %v1409
    %v2098 = vunpack.c.h.b16 %v1409
    %v2099 = vunpack.c.l.b16 %v1410
    %v2100 = vunpack.c.h.b16 %v1410
    %v2101 = vunpack.c.l.b16 %v1411
    %v2102 = vunpack.c.h.b16 %v1411
    %v2103 = vunpack.c.l.b16 %v1412
    %v2104 = vunpack.c.h.b16 %v1412
    %v2105 = vunpack.c.l.b16 %v1413
    %v2106 = vunpack.c.h.b16 %v1413
    %v2107 = vunpack.c.l.b16 %v1414
    %v2108 = vunpack.c.h.b16 %v1414
    %v2109 = vunpack.c.l.b16 %v1415
    %v2110 = vunpack.c.h.b16 %v1415
    %v2111 = vunpack.c.l.b16 %v1416
    %v2112 = vunpack.c.h.b16 %v1416
    %v2113 = vunpack.c.l.b16 %v1417
    %v2114 = vunpack.c.h.b16 %v1417
    %v2115 = vunpack.c.l.b16 %v1418
    %v2116 = vunpack.c.h.b16 %v1418
    %v2117 = vunpack.c.l.b16 %v1419
    %v2118 = vunpack.c.h.b16 %v1419
    %v2119 = vunpack.c.l.b16 %v1420
    %v2120 = vunpack.c.h.b16 %v1420
    %v2121 = vunpack.c.l.b16 %v1421
    %v2122 = vunpack.c.h.b16 %v1421
    %v2123 = vunpack.c.l.b16 %v1422
    %v2124 = vunpack.c.h.b16 %v1422
    %v2125 = vunpack.c.l.b16 %v1423
    %v2126 = vunpack.c.h.b16 %v1423
    %v2127 = vunpack.c.l.b16 %v1424
    %v2128 = vunpack.c.h.b16 %v1424
    %v2129 = vunpack.c.l.b16 %v1425
    %v2130 = vunpack.c.h.b16 %v1425
    %v2131 = vunpack.c.l.b16 %v1426
    %v2132 = vunpack.c.h.b16 %v1426
    %v2133 = vunpack.c.l.b16 %v1427
    %v2134 = vunpack.c.h.b16 %v1427
    %v2135 = vunpack.c.l.b16 %v1428
    %v2136 = vunpack.c.h.b16 %v1428
    %v2137 = vunpack.c.l.b16 %v1429
    %v2138 = vunpack.c.h.b16 %v1429
    %v2139 = vunpack.c.l.b16 %v1430
    %v2140 = vunpack.c.h.b16 %v1430
    %v2141 = vunpack.c.l.b16 %v1431
    %v2142 = vunpack.c.h.b16 %v1431
    %v2143 = vunpack.c.l.b16 %v1432
    %v2144 = vunpack.c.h.b16 %v1432
    %v2145 = vunpack.c.l.b16 %v1433
    %v2146 = vunpack.c.h.b16 %v1433
    %v2147 = vunpack.c.l.b16 %v1434
    %v2148 = vunpack.c.h.b16 %v1434
    %v2149 = vunpack.c.l.b16 %v1435
    %v2150 = vunpack.c.h.b16 %v1435
    %v2151 = vunpack.c.l.b16 %v1436
    %v2152 = vunpack.c.h.b16 %v1436
    %v2153 = vunpack.c.l.b16 %v1437
    %v2154 = vunpack.c.h.b16 %v1437
    %v2155 = vunpack.c.l.b16 %v1438
    %v2156 = vunpack.c.h.b16 %v1438
    %v2157 = vunpack.c.l.b16 %v1439
    %v2158 = vunpack.c.h.b16 %v1439
    %v2159 = vunpack.c.l.b16 %v1440
    %v2160 = vunpack.c.h.b16 %v1440
    %v2161 = vunpack.c.l.b16 %v1441
    %v2162 = vunpack.c.h.b16 %v1441
    %v2163 = vunpack.c.l.b16 %v1442
    %v2164 = vunpack.c.h.b16 %v1442
    %v2165 = vunpack.c.l.b16 %v1443
    %v2166 = vunpack.c.h.b16 %v1443
    %v2167 = vunpack.c.l.b16 %v1444
    %v2168 = vunpack.c.h.b16 %v1444
    %v2169 = vunpack.c.l.b16 %v1445
    %v2170 = vunpack.c.h.b16 %v1445
    %v2171 = vunpack.c.l.b16 %v1446
    %v2172 = vunpack.c.h.b16 %v1446
    %v2173 = vunpack.c.l.b16 %v1447
    %v2174 = vunpack.c.h.b16 %v1447
    %v2175 = vunpack.c.l.b16 %v1448
    %v2176 = vunpack.c.h.b16 %v1448
    %v2177 = vunpack.c.l.b16 %v1449
    %v2178 = vunpack.c.h.b16 %v1449
    %v2179 = vunpack.c.l.b16 %v1450
    %v2180 = vunpack.c.h.b16 %v1450
    %v2181 = vunpack.c.l.b16 %v1451
    %v2182 = vunpack.c.h.b16 %v1451
    %v2183 = vunpack.c.l.b16 %v1452
    %v2184 = vunpack.c.h.b16 %v1452
    %v2185 = vunpack.c.l.b16 %v1453
    %v2186 = vunpack.c.h.b16 %v1453
    %v2187 = vunpack.c.l.b16 %v1454
    %v2188 = vunpack.c.h.b16 %v1454
    %v2189 = vunpack.c.l.b16 %v1455
    %v2190 = vunpack.c.h.b16 %v1455
    %v2191 = vunpack.c.l.b16 %v1456
    %v2192 = vunpack.c.h.b16 %v1456
    %v2193 = vunpack.c.l.b16 %v1457
    %v2194 = vunpack.c.h.b16 %v1457
    %v2195 = vunpack.c.l.b16 %v1458
    %v2196 = vunpack.c.h.b16 %v1458
    %v2197 = vunpack.c.l.b16 %v1459
    %v2198 = vunpack.c.h.b16 %v1459
    %v2199 = vunpack.c.l.b16 %v1460
    %v2200 = vunpack.c.h.b16 %v1460
    %v2201 = vunpack.c.l.b16 %v1461
    %v2202 = vunpack.c.h.b16 %v1461
    %v2203 = vunpack.c.l.b16 %v1462
    %v2204 = vunpack.c.h.b16 %v1462
    %v2205 = vunpack.c.l.b16 %v1463
    %v2206 = vunpack.c.h.b16 %v1463
    %v2207 = vunpack.c.l.b16 %v1464
    %v2208 = vunpack.c.h.b16 %v1464
    %v2209 = vunpack.c.l.b16 %v1465
    %v2210 = vunpack.c.h.b16 %v1465
    %v2211 = vunpack.c.l.b16 %v1466
    %v2212 = vunpack.c.h.b16 %v1466
    %v2213 = vunpack.c.l.b16 %v1467
    %v2214 = vunpack.c.h.b16 %v1467
    %v2215 = vunpack.c.l.b16 %v1468
    %v2216 = vunpack.c.h.b16 %v1468
    %v2217 = vunpack.c.l.b16 %v1469
    %v2218 = vunpack.c.h.b16 %v1469
    %v2219 = vunpack.c.l.b16 %v1470
    %v2220 = vunpack.c.h.b16 %v1470
    %v2221 = vunpack.c.l.b16 %v1471
    %v2222 = vunpack.c.h.b16 %v1471
    %v2223 = vunpack.c.l.b16 %v1472
    %v2224 = vunpack.c.h.b16 %v1472
    %v2225 = vunpack.c.l.b16 %v1473
    %v2226 = vunpack.c.h.b16 %v1473
    %v2227 = vunpack.c.l.b16 %v1474
    %v2228 = vunpack.c.h.b16 %v1474
    %v2229 = vunpack.c.l.b16 %v1475
    %v2230 = vunpack.c.h.b16 %v1475
    %v2231 = vunpack.c.l.b16 %v1476
    %v2232 = vunpack.c.h.b16 %v1476
    %v2233 = vunpack.c.l.b16 %v1477
    %v2234 = vunpack.c.h.b16 %v1477
    %v2235 = vunpack.c.l.b16 %v1478
    %v2236 = vunpack.c.h.b16 %v1478
    %v2237 = vunpack.c.l.b16 %v1479
    %v2238 = vunpack.c.h.b16 %v1479
    %v2239 = vunpack.c.l.b16 %v1480
    %v2240 = vunpack.c.h.b16 %v1480
    %v2241 = vunpack.c.l.b16 %v1481
    %v2242 = vunpack.c.h.b16 %v1481
    %v2243 = vunpack.c.l.b16 %v1482
    %v2244 = vunpack.c.h.b16 %v1482
    %v2245 = vunpack.c.l.b16 %v1483
    %v2246 = vunpack.c.h.b16 %v1483
    %v2247 = vunpack.c.l.b16 %v1484
    %v2248 = vunpack.c.h.b16 %v1484
    %v2249 = vunpack.c.l.b16 %v1485
    %v2250 = vunpack.c.h.b16 %v1485
    %v2251 = vunpack.c.l.b16 %v1486
    %v2252 = vunpack.c.h.b16 %v1486
    %v2253 = vunpack.c.l.b16 %v1487
    %v2254 = vunpack.c.h.b16 %v1487
    %v2255 = vunpack.c.l.b16 %v1488
    %v2256 = vunpack.c.h.b16 %v1488
    %v2257 = vpack.c.b16 %v1753, %v1745
    %v2258 = vpack.c.b16 %v1754, %v1746
    %v2259 = vpack.c.b16 %v1755, %v1747
    %v2260 = vpack.c.b16 %v1756, %v1748
    %v2261 = vpack.c.b16 %v1757, %v1749
    %v2262 = vpack.c.b16 %v1758, %v1750
    %v2263 = vpack.c.b16 %v1759, %v1751
    %v2264 = vpack.c.b16 %v1760, %v1752
    %v2265 = vpack.c.b16 %v1769, %v1761
    %v2266 = vpack.c.b16 %v1770, %v1762
    %v2267 = vpack.c.b16 %v1771, %v1763
    %v2268 = vpack.c.b16 %v1772, %v1764
    %v2269 = vpack.c.b16 %v1773, %v1765
    %v2270 = vpack.c.b16 %v1774, %v1766
    %v2271 = vpack.c.b16 %v1775, %v1767
    %v2272 = vpack.c.b16 %v1776, %v1768
    %v2273 = vpack.c.b16 %v1785, %v1777
    %v2274 = vpack.c.b16 %v1786, %v1778
    %v2275 = vpack.c.b16 %v1787, %v1779
    %v2276 = vpack.c.b16 %v1788, %v1780
    %v2277 = vpack.c.b16 %v1789, %v1781
    %v2278 = vpack.c.b16 %v1790, %v1782
    %v2279 = vpack.c.b16 %v1791, %v1783
    %v2280 = vpack.c.b16 %v1792, %v1784
    %v2281 = vpack.c.b16 %v1801, %v1793
    %v2282 = vpack.c.b16 %v1802, %v1794
    %v2283 = vpack.c.b16 %v1803, %v1795
    %v2284 = vpack.c.b16 %v1804, %v1796
    %v2285 = vpack.c.b16 %v1805, %v1797
    %v2286 = vpack.c.b16 %v1806, %v1798
    %v2287 = vpack.c.b16 %v1807, %v1799
    %v2288 = vpack.c.b16 %v1808, %v1800
    %v2289 = vpack.c.b16 %v1817, %v1809
    %v2290 = vpack.c.b16 %v1818, %v1810
    %v2291 = vpack.c.b16 %v1819, %v1811
    %v2292 = vpack.c.b16 %v1820, %v1812
    %v2293 = vpack.c.b16 %v1821, %v1813
    %v2294 = vpack.c.b16 %v1822, %v1814
    %v2295 = vpack.c.b16 %v1823, %v1815
    %v2296 = vpack.c.b16 %v1824, %v1816
    %v2297 = vpack.c.b16 %v1833, %v1825
    %v2298 = vpack.c.b16 %v1834, %v1826
    %v2299 = vpack.c.b16 %v1835, %v1827
    %v2300 = vpack.c.b16 %v1836, %v1828
    %v2301 = vpack.c.b16 %v1837, %v1829
    %v2302 = vpack.c.b16 %v1838, %v1830
    %v2303 = vpack.c.b16 %v1839, %v1831
    %v2304 = vpack.c.b16 %v1840, %v1832
    %v2305 = vpack.c.b16 %v1849, %v1841
    %v2306 = vpack.c.b16 %v1850, %v1842
    %v2307 = vpack.c.b16 %v1851, %v1843
    %v2308 = vpack.c.b16 %v1852, %v1844
    %v2309 = vpack.c.b16 %v1853, %v1845
    %v2310 = vpack.c.b16 %v1854, %v1846
    %v2311 = vpack.c.b16 %v1855, %v1847
    %v2312 = vpack.c.b16 %v1856, %v1848
    %v2313 = vpack.c.b16 %v1865, %v1857
    %v2314 = vpack.c.b16 %v1866, %v1858
    %v2315 = vpack.c.b16 %v1867, %v1859
    %v2316 = vpack.c.b16 %v1868, %v1860
    %v2317 = vpack.c.b16 %v1869, %v1861
    %v2318 = vpack.c.b16 %v1870, %v1862
    %v2319 = vpack.c.b16 %v1871, %v1863
    %v2320 = vpack.c.b16 %v1872, %v1864
    %v2321 = vpack.c.b16 %v1881, %v1873
    %v2322 = vpack.c.b16 %v1882, %v1874
    %v2323 = vpack.c.b16 %v1883, %v1875
    %v2324 = vpack.c.b16 %v1884, %v1876
    %v2325 = vpack.c.b16 %v1885, %v1877
    %v2326 = vpack.c.b16 %v1886, %v1878
    %v2327 = vpack.c.b16 %v1887, %v1879
    %v2328 = vpack.c.b16 %v1888, %v1880
    %v2329 = vpack.c.b16 %v1897, %v1889
    %v2330 = vpack.c.b16 %v1898, %v1890
    %v2331 = vpack.c.b16 %v1899, %v1891
    %v2332 = vpack.c.b16 %v1900, %v1892
    %v2333 = vpack.c.b16 %v1901, %v1893
    %v2334 = vpack.c.b16 %v1902, %v1894
    %v2335 = vpack.c.b16 %v1903, %v1895
    %v2336 = vpack.c.b16 %v1904, %v1896
    %v2337 = vpack.c.b16 %v1913, %v1905
    %v2338 = vpack.c.b16 %v1914, %v1906
    %v2339 = vpack.c.b16 %v1915, %v1907
    %v2340 = vpack.c.b16 %v1916, %v1908
    %v2341 = vpack.c.b16 %v1917, %v1909
    %v2342 = vpack.c.b16 %v1918, %v1910
    %v2343 = vpack.c.b16 %v1919, %v1911
    %v2344 = vpack.c.b16 %v1920, %v1912
    %v2345 = vpack.c.b16 %v1929, %v1921
    %v2346 = vpack.c.b16 %v1930, %v1922
    %v2347 = vpack.c.b16 %v1931, %v1923
    %v2348 = vpack.c.b16 %v1932, %v1924
    %v2349 = vpack.c.b16 %v1933, %v1925
    %v2350 = vpack.c.b16 %v1934, %v1926
    %v2351 = vpack.c.b16 %v1935, %v1927
    %v2352 = vpack.c.b16 %v1936, %v1928
    %v2353 = vpack.c.b16 %v1945, %v1937
    %v2354 = vpack.c.b16 %v1946, %v1938
    %v2355 = vpack.c.b16 %v1947, %v1939
    %v2356 = vpack.c.b16 %v1948, %v1940
    %v2357 = vpack.c.b16 %v1949, %v1941
    %v2358 = vpack.c.b16 %v1950, %v1942
    %v2359 = vpack.c.b16 %v1951, %v1943
    %v2360 = vpack.c.b16 %v1952, %v1944
    %v2361 = vpack.c.b16 %v1961, %v1953
    %v2362 = vpack.c.b16 %v1962, %v1954
    %v2363 = vpack.c.b16 %v1963, %v1955
    %v2364 = vpack.c.b16 %v1964, %v1956
    %v2365 = vpack.c.b16 %v1965, %v1957
    %v2366 = vpack.c.b16 %v1966, %v1958
    %v2367 = vpack.c.b16 %v1967, %v1959
    %v2368 = vpack.c.b16 %v1968, %v1960
    %v2369 = vpack.c.b16 %v1977, %v1969
    %v2370 = vpack.c.b16 %v1978, %v1970
    %v2371 = vpack.c.b16 %v1979, %v1971
    %v2372 = vpack.c.b16 %v1980, %v1972
    %v2373 = vpack.c.b16 %v1981, %v1973
    %v2374 = vpack.c.b16 %v1982, %v1974
    %v2375 = vpack.c.b16 %v1983, %v1975
    %v2376 = vpack.c.b16 %v1984, %v1976
    %v2377 = vpack.c.b16 %v1993, %v1985
    %v2378 = vpack.c.b16 %v1994, %v1986
    %v2379 = vpack.c.b16 %v1995, %v1987
    %v2380 = vpack.c.b16 %v1996, %v1988
    %v2381 = vpack.c.b16 %v1997, %v1989
    %v2382 = vpack.c.b16 %v1998, %v1990
    %v2383 = vpack.c.b16 %v1999, %v1991
    %v2384 = vpack.c.b16 %v2000, %v1992
    %v2385 = vpack.c.b16 %v2009, %v2001
    %v2386 = vpack.c.b16 %v2010, %v2002
    %v2387 = vpack.c.b16 %v2011, %v2003
    %v2388 = vpack.c.b16 %v2012, %v2004
    %v2389 = vpack.c.b16 %v2013, %v2005
    %v2390 = vpack.c.b16 %v2014, %v2006
    %v2391 = vpack.c.b16 %v2015, %v2007
    %v2392 = vpack.c.b16 %v2016, %v2008
    %v2393 = vpack.c.b16 %v2025, %v2017
    %v2394 = vpack.c.b16 %v2026, %v2018
    %v2395 = vpack.c.b16 %v2027, %v2019
    %v2396 = vpack.c.b16 %v2028, %v2020
    %v2397 = vpack.c.b16 %v2029, %v2021
    %v2398 = vpack.c.b16 %v2030, %v2022
    %v2399 = vpack.c.b16 %v2031, %v2023
    %v2400 = vpack.c.b16 %v2032, %v2024
    %v2401 = vpack.c.b16 %v2041, %v2033
    %v2402 = vpack.c.b16 %v2042, %v2034
    %v2403 = vpack.c.b16 %v2043, %v2035
    %v2404 = vpack.c.b16 %v2044, %v2036
    %v2405 = vpack.c.b16 %v2045, %v2037
    %v2406 = vpack.c.b16 %v2046, %v2038
    %v2407 = vpack.c.b16 %v2047, %v2039
    %v2408 = vpack.c.b16 %v2048, %v2040
    %v2409 = vpack.c.b16 %v2057, %v2049
    %v2410 = vpack.c.b16 %v2058, %v2050
    %v2411 = vpack.c.b16 %v2059, %v2051
    %v2412 = vpack.c.b16 %v2060, %v2052
    %v2413 = vpack.c.b16 %v2061, %v2053
    %v2414 = vpack.c.b16 %v2062, %v2054
    %v2415 = vpack.c.b16 %v2063, %v2055
    %v2416 = vpack.c.b16 %v2064, %v2056
    %v2417 = vpack.c.b16 %v2073, %v2065
    %v2418 = vpack.c.b16 %v2074, %v2066
    %v2419 = vpack.c.b16 %v2075, %v2067
    %v2420 = vpack.c.b16 %v2076, %v2068
    %v2421 = vpack.c.b16 %v2077, %v2069
    %v2422 = vpack.c.b16 %v2078, %v2070
    %v2423 = vpack.c.b16 %v2079, %v2071
    %v2424 = vpack.c.b16 %v2080, %v2072
    %v2425 = vpack.c.b16 %v2089, %v2081
    %v2426 = vpack.c.b16 %v2090, %v2082
    %v2427 = vpack.c.b16 %v2091, %v2083
    %v2428 = vpack.c.b16 %v2092, %v2084
    %v2429 = vpack.c.b16 %v2093, %v2085
    %v2430 = vpack.c.b16 %v2094, %v2086
    %v2431 = vpack.c.b16 %v2095, %v2087
    %v2432 = vpack.c.b16 %v2096, %v2088
    %v2433 = vpack.c.b16 %v2105, %v2097
    %v2434 = vpack.c.b16 %v2106, %v2098
    %v2435 = vpack.c.b16 %v2107, %v2099
    %v2436 = vpack.c.b16 %v2108, %v2100
    %v2437 = vpack.c.b16 %v2109, %v2101
    %v2438 = vpack.c.b16 %v2110, %v2102
    %v2439 = vpack.c.b16 %v2111, %v2103
    %v2440 = vpack.c.b16 %v2112, %v2104
    %v2441 = vpack.c.b16 %v2121, %v2113
    %v2442 = vpack.c.b16 %v2122, %v2114
    %v2443 = vpack.c.b16 %v2123, %v2115
    %v2444 = vpack.c.b16 %v2124, %v2116
    %v2445 = vpack.c.b16 %v2125, %v2117
    %v2446 = vpack.c.b16 %v2126, %v2118
    %v2447 = vpack.c.b16 %v2127, %v2119
    %v2448 = vpack.c.b16 %v2128, %v2120
    %v2449 = vpack.c.b16 %v2137, %v2129
    %v2450 = vpack.c.b16 %v2138, %v2130
    %v2451 = vpack.c.b16 %v2139, %v2131
    %v2452 = vpack.c.b16 %v2140, %v2132
    %v2453 = vpack.c.b16 %v2141, %v2133
    %v2454 = vpack.c.b16 %v2142, %v2134
    %v2455 = vpack.c.b16 %v2143, %v2135
    %v2456 = vpack.c.b16 %v2144, %v2136
    %v2457 = vpack.c.b16 %v2153, %v2145
    %v2458 = vpack.c.b16 %v2154, %v2146
    %v2459 = vpack.c.b16 %v2155, %v2147
    %v2460 = vpack.c.b16 %v2156, %v2148
    %v2461 = vpack.c.b16 %v2157, %v2149
    %v2462 = vpack.c.b16 %v2158, %v2150
    %v2463 = vpack.c.b16 %v2159, %v2151
    %v2464 = vpack.c.b16 %v2160, %v2152
    %v2465 = vpack.c.b16 %v2169, %v2161
    %v2466 = vpack.c.b16 %v2170, %v2162
    %v2467 = vpack.c.b16 %v2171, %v2163
    %v2468 = vpack.c.b16 %v2172, %v2164
    %v2469 = vpack.c.b16 %v2173, %v2165
    %v2470 = vpack.c.b16 %v2174, %v2166
    %v2471 = vpack.c.b16 %v2175, %v2167
    %v2472 = vpack.c.b16 %v2176, %v2168
    %v2473 = vpack.c.b16 %v2185, %v2177
    %v2474 = vpack.c.b16 %v2186, %v2178
    %v2475 = vpack.c.b16 %v2187, %v2179
    %v2476 = vpack.c.b16 %v2188, %v2180
    %v2477 = vpack.c.b16 %v2189, %v2181
    %v2478 = vpack.c.b16 %v2190, %v2182
    %v2479 = vpack.c.b16 %v2191, %v2183
    %v2480 = vpack.c.b16 %v2192, %v2184
    %v2481 = vpack.c.b16 %v2201, %v2193
    %v2482 = vpack.c.b16 %v2202, %v2194
    %v2483 = vpack.c.b16 %v2203, %v2195
    %v2484 = vpack.c.b16 %v2204, %v2196
    %v2485 = vpack.c.b16 %v2205, %v2197
    %v2486 = vpack.c.b16 %v2206, %v2198
    %v2487 = vpack.c.b16 %v2207, %v2199
    %v2488 = vpack.c.b16 %v2208, %v2200
    %v2489 = vpack.c.b16 %v2217, %v2209
    %v2490 = vpack.c.b16 %v2218, %v2210
    %v2491 = vpack.c.b16 %v2219, %v2211
    %v2492 = vpack.c.b16 %v2220, %v2212
    %v2493 = vpack.c.b16 %v2221, %v2213
    %v2494 = vpack.c.b16 %v2222, %v2214
    %v2495 = vpack.c.b16 %v2223, %v2215
    %v2496 = vpack.c.b16 %v2224, %v2216
    %v2497 = vpack.c.b16 %v2233, %v2225
    %v2498 = vpack.c.b16 %v2234, %v2226
    %v2499 = vpack.c.b16 %v2235, %v2227
    %v2500 = vpack.c.b16 %v2236, %v2228
    %v2501 = vpack.c.b16 %v2237, %v2229
    %v2502 = vpack.c.b16 %v2238, %v2230
    %v2503 = vpack.c.b16 %v2239, %v2231
    %v2504 = vpack.c.b16 %v2240, %v2232
    %v2505 = vpack.c.b16 %v2249, %v2241
    %v2506 = vpack.c.b16 %v2250, %v2242
    %v2507 = vpack.c.b16 %v2251, %v2243
    %v2508 = vpack.c.b16 %v2252, %v2244
    %v2509 = vpack.c.b16 %v2253, %v2245
    %v2510 = vpack.c.b16 %v2254, %v2246
    %v2511 = vpack.c.b16 %v2255, %v2247
    %v2512 = vpack.c.b16 %v2256, %v2248
    %2769 = vmatpush.bf16.msra.mxu0 %v2313
    %2770 = vmatpush.bf16.msra.mxu0 %v2305
    %2771 = vmatpush.bf16.msra.mxu0 %v2297
    %2772 = vmatpush.bf16.msra.mxu0 %v2289
    %2773 = vmatpush.bf16.msra.mxu0 %v2281
    %2774 = vmatpush.bf16.msra.mxu0 %v2273
    %2775 = vmatpush.bf16.msra.mxu0 %v2265
    %2776 = vmatpush.bf16.msra.mxu0 %v2257
    %2777 = vmatmul.bf16.gmra.mxu0 %v1229
    %v2778 = vpop.f32.mrf.mxu0
    %v2779 = vadd.f32 0.0, %v2778
    %v2780 = vpop.f32.mrf.mxu0
    %2781 = vdwg.mxu0
    %2782 = vmatpush.bf16.msra.mxu0 %v2377
    %2783 = vmatpush.bf16.msra.mxu0 %v2369
    %2784 = vmatpush.bf16.msra.mxu0 %v2361
    %2785 = vmatpush.bf16.msra.mxu0 %v2353
    %2786 = vmatpush.bf16.msra.mxu0 %v2345
    %2787 = vmatpush.bf16.msra.mxu0 %v2337
    %2788 = vmatpush.bf16.msra.mxu0 %v2329
    %2789 = vmatpush.bf16.msra.mxu0 %v2321
    %2790 = vmatmul.bf16.gmra.mxu0 %v1230
    %v2791 = vpop.f32.mrf.mxu0
    %v2792 = vadd.f32 %v2779, %v2791
    %v2793 = vpop.f32.mrf.mxu0
    %2794 = vdwg.mxu0
    %2795 = vmatpush.bf16.msra.mxu0 %v2441
    %2796 = vmatpush.bf16.msra.mxu0 %v2433
    %2797 = vmatpush.bf16.msra.mxu0 %v2425
    %2798 = vmatpush.bf16.msra.mxu0 %v2417
    %2799 = vmatpush.bf16.msra.mxu0 %v2409
    %2800 = vmatpush.bf16.msra.mxu0 %v2401
    %2801 = vmatpush.bf16.msra.mxu0 %v2393
    %2802 = vmatpush.bf16.msra.mxu0 %v2385
    %2803 = vmatmul.bf16.gmra.mxu0 %v1231
    %v2804 = vpop.f32.mrf.mxu0
    %v2805 = vadd.f32 %v2792, %v2804
    %v2806 = vpop.f32.mrf.mxu0
    %2807 = vdwg.mxu0
    %2808 = vmatpush.bf16.msra.mxu0 %v2505
    %2809 = vmatpush.bf16.msra.mxu0 %v2497
    %2810 = vmatpush.bf16.msra.mxu0 %v2489
    %2811 = vmatpush.bf16.msra.mxu0 %v2481
    %2812 = vmatpush.bf16.msra.mxu0 %v2473
    %2813 = vmatpush.bf16.msra.mxu0 %v2465
    %2814 = vmatpush.bf16.msra.mxu0 %v2457
    %2815 = vmatpush.bf16.msra.mxu0 %v2449
    %2816 = vmatmul.bf16.gmra.mxu0 %v1232
    %v2817 = vpop.f32.mrf.mxu0
    %v2818 = vadd.f32 %v2805, %v2817
    %v2819 = vpop.f32.mrf.mxu0
    %2820 = vdwg.mxu0
    %2821 = vmatpush.bf16.msra.mxu0 %v2314
    %2822 = vmatpush.bf16.msra.mxu0 %v2306
    %2823 = vmatpush.bf16.msra.mxu0 %v2298
    %2824 = vmatpush.bf16.msra.mxu0 %v2290
    %2825 = vmatpush.bf16.msra.mxu0 %v2282
    %2826 = vmatpush.bf16.msra.mxu0 %v2274
    %2827 = vmatpush.bf16.msra.mxu0 %v2266
    %2828 = vmatpush.bf16.msra.mxu0 %v2258
    %2829 = vmatmul.bf16.gmra.mxu0 %v1229
    %v2830 = vpop.f32.mrf.mxu0
    %v2831 = vadd.f32 0.0, %v2830
    %v2832 = vpop.f32.mrf.mxu0
    %2833 = vdwg.mxu0
    %2834 = vmatpush.bf16.msra.mxu0 %v2378
    %2835 = vmatpush.bf16.msra.mxu0 %v2370
    %2836 = vmatpush.bf16.msra.mxu0 %v2362
    %2837 = vmatpush.bf16.msra.mxu0 %v2354
    %2838 = vmatpush.bf16.msra.mxu0 %v2346
    %2839 = vmatpush.bf16.msra.mxu0 %v2338
    %2840 = vmatpush.bf16.msra.mxu0 %v2330
    %2841 = vmatpush.bf16.msra.mxu0 %v2322
    %2842 = vmatmul.bf16.gmra.mxu0 %v1230
    %v2843 = vpop.f32.mrf.mxu0
    %v2844 = vadd.f32 %v2831, %v2843
    %v2845 = vpop.f32.mrf.mxu0
    %2846 = vdwg.mxu0
    %2847 = vmatpush.bf16.msra.mxu0 %v2442
    %2848 = vmatpush.bf16.msra.mxu0 %v2434
    %2849 = vmatpush.bf16.msra.mxu0 %v2426
    %2850 = vmatpush.bf16.msra.mxu0 %v2418
    %2851 = vmatpush.bf16.msra.mxu0 %v2410
    %2852 = vmatpush.bf16.msra.mxu0 %v2402
    %2853 = vmatpush.bf16.msra.mxu0 %v2394
    %2854 = vmatpush.bf16.msra.mxu0 %v2386
    %2855 = vmatmul.bf16.gmra.mxu0 %v1231
    %v2856 = vpop.f32.mrf.mxu0
    %v2857 = vadd.f32 %v2844, %v2856
    %v2858 = vpop.f32.mrf.mxu0
    %2859 = vdwg.mxu0
    %2860 = vmatpush.bf16.msra.mxu0 %v2506
    %2861 = vmatpush.bf16.msra.mxu0 %v2498
    %2862 = vmatpush.bf16.msra.mxu0 %v2490
    %2863 = vmatpush.bf16.msra.mxu0 %v2482
    %2864 = vmatpush.bf16.msra.mxu0 %v2474
    %2865 = vmatpush.bf16.msra.mxu0 %v2466
    %2866 = vmatpush.bf16.msra.mxu0 %v2458
    %2867 = vmatpush.bf16.msra.mxu0 %v2450
    %2868 = vmatmul.bf16.gmra.mxu0 %v1232
    %v2869 = vpop.f32.mrf.mxu0
    %v2870 = vadd.f32 %v2857, %v2869
    %v2871 = vpop.f32.mrf.mxu0
    %2872 = vdwg.mxu0
    %2873 = vmatpush.bf16.msra.mxu0 %v2315
    %2874 = vmatpush.bf16.msra.mxu0 %v2307
    %2875 = vmatpush.bf16.msra.mxu0 %v2299
    %2876 = vmatpush.bf16.msra.mxu0 %v2291
    %2877 = vmatpush.bf16.msra.mxu0 %v2283
    %2878 = vmatpush.bf16.msra.mxu0 %v2275
    %2879 = vmatpush.bf16.msra.mxu0 %v2267
    %2880 = vmatpush.bf16.msra.mxu0 %v2259
    %2881 = vmatmul.bf16.gmra.mxu0 %v1229
    %v2882 = vpop.f32.mrf.mxu0
    %v2883 = vadd.f32 0.0, %v2882
    %v2884 = vpop.f32.mrf.mxu0
    %2885 = vdwg.mxu0
    %2886 = vmatpush.bf16.msra.mxu0 %v2379
    %2887 = vmatpush.bf16.msra.mxu0 %v2371
    %2888 = vmatpush.bf16.msra.mxu0 %v2363
    %2889 = vmatpush.bf16.msra.mxu0 %v2355
    %2890 = vmatpush.bf16.msra.mxu0 %v2347
    %2891 = vmatpush.bf16.msra.mxu0 %v2339
    %2892 = vmatpush.bf16.msra.mxu0 %v2331
    %2893 = vmatpush.bf16.msra.mxu0 %v2323
    %2894 = vmatmul.bf16.gmra.mxu0 %v1230
    %v2895 = vpop.f32.mrf.mxu0
    %v2896 = vadd.f32 %v2883, %v2895
    %v2897 = vpop.f32.mrf.mxu0
    %2898 = vdwg.mxu0
    %2899 = vmatpush.bf16.msra.mxu0 %v2443
    %2900 = vmatpush.bf16.msra.mxu0 %v2435
    %2901 = vmatpush.bf16.msra.mxu0 %v2427
    %2902 = vmatpush.bf16.msra.mxu0 %v2419
    %2903 = vmatpush.bf16.msra.mxu0 %v2411
    %2904 = vmatpush.bf16.msra.mxu0 %v2403
    %2905 = vmatpush.bf16.msra.mxu0 %v2395
    %2906 = vmatpush.bf16.msra.mxu0 %v2387
    %2907 = vmatmul.bf16.gmra.mxu0 %v1231
    %v2908 = vpop.f32.mrf.mxu0
    %v2909 = vadd.f32 %v2896, %v2908
    %v2910 = vpop.f32.mrf.mxu0
    %2911 = vdwg.mxu0
    %2912 = vmatpush.bf16.msra.mxu0 %v2507
    %2913 = vmatpush.bf16.msra.mxu0 %v2499
    %2914 = vmatpush.bf16.msra.mxu0 %v2491
    %2915 = vmatpush.bf16.msra.mxu0 %v2483
    %2916 = vmatpush.bf16.msra.mxu0 %v2475
    %2917 = vmatpush.bf16.msra.mxu0 %v2467
    %2918 = vmatpush.bf16.msra.mxu0 %v2459
    %2919 = vmatpush.bf16.msra.mxu0 %v2451
    %2920 = vmatmul.bf16.gmra.mxu0 %v1232
    %v2921 = vpop.f32.mrf.mxu0
    %v2922 = vadd.f32 %v2909, %v2921
    %v2923 = vpop.f32.mrf.mxu0
    %2924 = vdwg.mxu0
    %2925 = vmatpush.bf16.msra.mxu0 %v2316
    %2926 = vmatpush.bf16.msra.mxu0 %v2308
    %2927 = vmatpush.bf16.msra.mxu0 %v2300
    %2928 = vmatpush.bf16.msra.mxu0 %v2292
    %2929 = vmatpush.bf16.msra.mxu0 %v2284
    %2930 = vmatpush.bf16.msra.mxu0 %v2276
    %2931 = vmatpush.bf16.msra.mxu0 %v2268
    %2932 = vmatpush.bf16.msra.mxu0 %v2260
    %2933 = vmatmul.bf16.gmra.mxu0 %v1229
    %v2934 = vpop.f32.mrf.mxu0
    %v2935 = vadd.f32 0.0, %v2934
    %v2936 = vpop.f32.mrf.mxu0
    %2937 = vdwg.mxu0
    %2938 = vmatpush.bf16.msra.mxu0 %v2380
    %2939 = vmatpush.bf16.msra.mxu0 %v2372
    %2940 = vmatpush.bf16.msra.mxu0 %v2364
    %2941 = vmatpush.bf16.msra.mxu0 %v2356
    %2942 = vmatpush.bf16.msra.mxu0 %v2348
    %2943 = vmatpush.bf16.msra.mxu0 %v2340
    %2944 = vmatpush.bf16.msra.mxu0 %v2332
    %2945 = vmatpush.bf16.msra.mxu0 %v2324
    %2946 = vmatmul.bf16.gmra.mxu0 %v1230
    %v2947 = vpop.f32.mrf.mxu0
    %v2948 = vadd.f32 %v2935, %v2947
    %v2949 = vpop.f32.mrf.mxu0
    %2950 = vdwg.mxu0
    %2951 = vmatpush.bf16.msra.mxu0 %v2444
    %2952 = vmatpush.bf16.msra.mxu0 %v2436
    %2953 = vmatpush.bf16.msra.mxu0 %v2428
    %2954 = vmatpush.bf16.msra.mxu0 %v2420
    %2955 = vmatpush.bf16.msra.mxu0 %v2412
    %2956 = vmatpush.bf16.msra.mxu0 %v2404
    %2957 = vmatpush.bf16.msra.mxu0 %v2396
    %2958 = vmatpush.bf16.msra.mxu0 %v2388
    %2959 = vmatmul.bf16.gmra.mxu0 %v1231
    %v2960 = vpop.f32.mrf.mxu0
    %v2961 = vadd.f32 %v2948, %v2960
    %v2962 = vpop.f32.mrf.mxu0
    %2963 = vdwg.mxu0
    %2964 = vmatpush.bf16.msra.mxu0 %v2508
    %2965 = vmatpush.bf16.msra.mxu0 %v2500
    %2966 = vmatpush.bf16.msra.mxu0 %v2492
    %2967 = vmatpush.bf16.msra.mxu0 %v2484
    %2968 = vmatpush.bf16.msra.mxu0 %v2476
    %2969 = vmatpush.bf16.msra.mxu0 %v2468
    %2970 = vmatpush.bf16.msra.mxu0 %v2460
    %2971 = vmatpush.bf16.msra.mxu0 %v2452
    %2972 = vmatmul.bf16.gmra.mxu0 %v1232
    %v2973 = vpop.f32.mrf.mxu0
    %v2974 = vadd.f32 %v2961, %v2973
    %v2975 = vpop.f32.mrf.mxu0
    %2976 = vdwg.mxu0
    %2977 = vmatpush.bf16.msra.mxu0 %v2317
    %2978 = vmatpush.bf16.msra.mxu0 %v2309
    %2979 = vmatpush.bf16.msra.mxu0 %v2301
    %2980 = vmatpush.bf16.msra.mxu0 %v2293
    %2981 = vmatpush.bf16.msra.mxu0 %v2285
    %2982 = vmatpush.bf16.msra.mxu0 %v2277
    %2983 = vmatpush.bf16.msra.mxu0 %v2269
    %2984 = vmatpush.bf16.msra.mxu0 %v2261
    %2985 = vmatmul.bf16.gmra.mxu0 %v1229
    %v2986 = vpop.f32.mrf.mxu0
    %v2987 = vadd.f32 0.0, %v2986
    %v2988 = vpop.f32.mrf.mxu0
    %2989 = vdwg.mxu0
    %2990 = vmatpush.bf16.msra.mxu0 %v2381
    %2991 = vmatpush.bf16.msra.mxu0 %v2373
    %2992 = vmatpush.bf16.msra.mxu0 %v2365
    %2993 = vmatpush.bf16.msra.mxu0 %v2357
    %2994 = vmatpush.bf16.msra.mxu0 %v2349
    %2995 = vmatpush.bf16.msra.mxu0 %v2341
    %2996 = vmatpush.bf16.msra.mxu0 %v2333
    %2997 = vmatpush.bf16.msra.mxu0 %v2325
    %2998 = vmatmul.bf16.gmra.mxu0 %v1230
    %v2999 = vpop.f32.mrf.mxu0
    %v3000 = vadd.f32 %v2987, %v2999
    %v3001 = vpop.f32.mrf.mxu0
    %3002 = vdwg.mxu0
    %3003 = vmatpush.bf16.msra.mxu0 %v2445
    %3004 = vmatpush.bf16.msra.mxu0 %v2437
    %3005 = vmatpush.bf16.msra.mxu0 %v2429
    %3006 = vmatpush.bf16.msra.mxu0 %v2421
    %3007 = vmatpush.bf16.msra.mxu0 %v2413
    %3008 = vmatpush.bf16.msra.mxu0 %v2405
    %3009 = vmatpush.bf16.msra.mxu0 %v2397
    %3010 = vmatpush.bf16.msra.mxu0 %v2389
    %3011 = vmatmul.bf16.gmra.mxu0 %v1231
    %v3012 = vpop.f32.mrf.mxu0
    %v3013 = vadd.f32 %v3000, %v3012
    %v3014 = vpop.f32.mrf.mxu0
    %3015 = vdwg.mxu0
    %3016 = vmatpush.bf16.msra.mxu0 %v2509
    %3017 = vmatpush.bf16.msra.mxu0 %v2501
    %3018 = vmatpush.bf16.msra.mxu0 %v2493
    %3019 = vmatpush.bf16.msra.mxu0 %v2485
    %3020 = vmatpush.bf16.msra.mxu0 %v2477
    %3021 = vmatpush.bf16.msra.mxu0 %v2469
    %3022 = vmatpush.bf16.msra.mxu0 %v2461
    %3023 = vmatpush.bf16.msra.mxu0 %v2453
    %3024 = vmatmul.bf16.gmra.mxu0 %v1232
    %v3025 = vpop.f32.mrf.mxu0
    %v3026 = vadd.f32 %v3013, %v3025
    %v3027 = vpop.f32.mrf.mxu0
    %3028 = vdwg.mxu0
    %3029 = vmatpush.bf16.msra.mxu0 %v2318
    %3030 = vmatpush.bf16.msra.mxu0 %v2310
    %3031 = vmatpush.bf16.msra.mxu0 %v2302
    %3032 = vmatpush.bf16.msra.mxu0 %v2294
    %3033 = vmatpush.bf16.msra.mxu0 %v2286
    %3034 = vmatpush.bf16.msra.mxu0 %v2278
    %3035 = vmatpush.bf16.msra.mxu0 %v2270
    %3036 = vmatpush.bf16.msra.mxu0 %v2262
    %3037 = vmatmul.bf16.gmra.mxu0 %v1229
    %v3038 = vpop.f32.mrf.mxu0
    %v3039 = vadd.f32 0.0, %v3038
    %v3040 = vpop.f32.mrf.mxu0
    %3041 = vdwg.mxu0
    %3042 = vmatpush.bf16.msra.mxu0 %v2382
    %3043 = vmatpush.bf16.msra.mxu0 %v2374
    %3044 = vmatpush.bf16.msra.mxu0 %v2366
    %3045 = vmatpush.bf16.msra.mxu0 %v2358
    %3046 = vmatpush.bf16.msra.mxu0 %v2350
    %3047 = vmatpush.bf16.msra.mxu0 %v2342
    %3048 = vmatpush.bf16.msra.mxu0 %v2334
    %3049 = vmatpush.bf16.msra.mxu0 %v2326
    %3050 = vmatmul.bf16.gmra.mxu0 %v1230
    %v3051 = vpop.f32.mrf.mxu0
    %v3052 = vadd.f32 %v3039, %v3051
    %v3053 = vpop.f32.mrf.mxu0
    %3054 = vdwg.mxu0
    %3055 = vmatpush.bf16.msra.mxu0 %v2446
    %3056 = vmatpush.bf16.msra.mxu0 %v2438
    %3057 = vmatpush.bf16.msra.mxu0 %v2430
    %3058 = vmatpush.bf16.msra.mxu0 %v2422
    %3059 = vmatpush.bf16.msra.mxu0 %v2414
    %3060 = vmatpush.bf16.msra.mxu0 %v2406
    %3061 = vmatpush.bf16.msra.mxu0 %v2398
    %3062 = vmatpush.bf16.msra.mxu0 %v2390
    %3063 = vmatmul.bf16.gmra.mxu0 %v1231
    %v3064 = vpop.f32.mrf.mxu0
    %v3065 = vadd.f32 %v3052, %v3064
    %v3066 = vpop.f32.mrf.mxu0
    %3067 = vdwg.mxu0
    %3068 = vmatpush.bf16.msra.mxu0 %v2510
    %3069 = vmatpush.bf16.msra.mxu0 %v2502
    %3070 = vmatpush.bf16.msra.mxu0 %v2494
    %3071 = vmatpush.bf16.msra.mxu0 %v2486
    %3072 = vmatpush.bf16.msra.mxu0 %v2478
    %3073 = vmatpush.bf16.msra.mxu0 %v2470
    %3074 = vmatpush.bf16.msra.mxu0 %v2462
    %3075 = vmatpush.bf16.msra.mxu0 %v2454
    %3076 = vmatmul.bf16.gmra.mxu0 %v1232
    %v3077 = vpop.f32.mrf.mxu0
    %v3078 = vadd.f32 %v3065, %v3077
    %v3079 = vpop.f32.mrf.mxu0
    %3080 = vdwg.mxu0
    %3081 = vmatpush.bf16.msra.mxu0 %v2319
    %3082 = vmatpush.bf16.msra.mxu0 %v2311
    %3083 = vmatpush.bf16.msra.mxu0 %v2303
    %3084 = vmatpush.bf16.msra.mxu0 %v2295
    %3085 = vmatpush.bf16.msra.mxu0 %v2287
    %3086 = vmatpush.bf16.msra.mxu0 %v2279
    %3087 = vmatpush.bf16.msra.mxu0 %v2271
    %3088 = vmatpush.bf16.msra.mxu0 %v2263
    %3089 = vmatmul.bf16.gmra.mxu0 %v1229
    %v3090 = vpop.f32.mrf.mxu0
    %v3091 = vadd.f32 0.0, %v3090
    %v3092 = vpop.f32.mrf.mxu0
    %3093 = vdwg.mxu0
    %3094 = vmatpush.bf16.msra.mxu0 %v2383
    %3095 = vmatpush.bf16.msra.mxu0 %v2375
    %3096 = vmatpush.bf16.msra.mxu0 %v2367
    %3097 = vmatpush.bf16.msra.mxu0 %v2359
    %3098 = vmatpush.bf16.msra.mxu0 %v2351
    %3099 = vmatpush.bf16.msra.mxu0 %v2343
    %3100 = vmatpush.bf16.msra.mxu0 %v2335
    %3101 = vmatpush.bf16.msra.mxu0 %v2327
    %3102 = vmatmul.bf16.gmra.mxu0 %v1230
    %v3103 = vpop.f32.mrf.mxu0
    %v3104 = vadd.f32 %v3091, %v3103
    %v3105 = vpop.f32.mrf.mxu0
    %3106 = vdwg.mxu0
    %3107 = vmatpush.bf16.msra.mxu0 %v2447
    %3108 = vmatpush.bf16.msra.mxu0 %v2439
    %3109 = vmatpush.bf16.msra.mxu0 %v2431
    %3110 = vmatpush.bf16.msra.mxu0 %v2423
    %3111 = vmatpush.bf16.msra.mxu0 %v2415
    %3112 = vmatpush.bf16.msra.mxu0 %v2407
    %3113 = vmatpush.bf16.msra.mxu0 %v2399
    %3114 = vmatpush.bf16.msra.mxu0 %v2391
    %3115 = vmatmul.bf16.gmra.mxu0 %v1231
    %v3116 = vpop.f32.mrf.mxu0
    %v3117 = vadd.f32 %v3104, %v3116
    %v3118 = vpop.f32.mrf.mxu0
    %3119 = vdwg.mxu0
    %3120 = vmatpush.bf16.msra.mxu0 %v2511
    %3121 = vmatpush.bf16.msra.mxu0 %v2503
    %3122 = vmatpush.bf16.msra.mxu0 %v2495
    %3123 = vmatpush.bf16.msra.mxu0 %v2487
    %3124 = vmatpush.bf16.msra.mxu0 %v2479
    %3125 = vmatpush.bf16.msra.mxu0 %v2471
    %3126 = vmatpush.bf16.msra.mxu0 %v2463
    %3127 = vmatpush.bf16.msra.mxu0 %v2455
    %3128 = vmatmul.bf16.gmra.mxu0 %v1232
    %v3129 = vpop.f32.mrf.mxu0
    %v3130 = vadd.f32 %v3117, %v3129
    %v3131 = vpop.f32.mrf.mxu0
    %3132 = vdwg.mxu0
    %3133 = vmatpush.bf16.msra.mxu0 %v2320
    %3134 = vmatpush.bf16.msra.mxu0 %v2312
    %3135 = vmatpush.bf16.msra.mxu0 %v2304
    %3136 = vmatpush.bf16.msra.mxu0 %v2296
    %3137 = vmatpush.bf16.msra.mxu0 %v2288
    %3138 = vmatpush.bf16.msra.mxu0 %v2280
    %3139 = vmatpush.bf16.msra.mxu0 %v2272
    %3140 = vmatpush.bf16.msra.mxu0 %v2264
    %3141 = vmatmul.bf16.gmra.mxu0 %v1229
    %v3142 = vpop.f32.mrf.mxu0
    %v3143 = vadd.f32 0.0, %v3142
    %v3144 = vpop.f32.mrf.mxu0
    %3145 = vdwg.mxu0
    %3146 = vmatpush.bf16.msra.mxu0 %v2384
    %3147 = vmatpush.bf16.msra.mxu0 %v2376
    %3148 = vmatpush.bf16.msra.mxu0 %v2368
    %3149 = vmatpush.bf16.msra.mxu0 %v2360
    %3150 = vmatpush.bf16.msra.mxu0 %v2352
    %3151 = vmatpush.bf16.msra.mxu0 %v2344
    %3152 = vmatpush.bf16.msra.mxu0 %v2336
    %3153 = vmatpush.bf16.msra.mxu0 %v2328
    %3154 = vmatmul.bf16.gmra.mxu0 %v1230
    %v3155 = vpop.f32.mrf.mxu0
    %v3156 = vadd.f32 %v3143, %v3155
    %v3157 = vpop.f32.mrf.mxu0
    %3158 = vdwg.mxu0
    %3159 = vmatpush.bf16.msra.mxu0 %v2448
    %3160 = vmatpush.bf16.msra.mxu0 %v2440
    %3161 = vmatpush.bf16.msra.mxu0 %v2432
    %3162 = vmatpush.bf16.msra.mxu0 %v2424
    %3163 = vmatpush.bf16.msra.mxu0 %v2416
    %3164 = vmatpush.bf16.msra.mxu0 %v2408
    %3165 = vmatpush.bf16.msra.mxu0 %v2400
    %3166 = vmatpush.bf16.msra.mxu0 %v2392
    %3167 = vmatmul.bf16.gmra.mxu0 %v1231
    %v3168 = vpop.f32.mrf.mxu0
    %v3169 = vadd.f32 %v3156, %v3168
    %v3170 = vpop.f32.mrf.mxu0
    %3171 = vdwg.mxu0
    %3172 = vmatpush.bf16.msra.mxu0 %v2512
    %3173 = vmatpush.bf16.msra.mxu0 %v2504
    %3174 = vmatpush.bf16.msra.mxu0 %v2496
    %3175 = vmatpush.bf16.msra.mxu0 %v2488
    %3176 = vmatpush.bf16.msra.mxu0 %v2480
    %3177 = vmatpush.bf16.msra.mxu0 %v2472
    %3178 = vmatpush.bf16.msra.mxu0 %v2464
    %3179 = vmatpush.bf16.msra.mxu0 %v2456
    %3180 = vmatmul.bf16.gmra.mxu0 %v1232
    %v3181 = vpop.f32.mrf.mxu0
    %v3182 = vadd.f32 %v3169, %v3181
    %v3183 = vpop.f32.mrf.mxu0
    %3184 = vdwg.mxu0
    %v3185 = vrot.slane %v2818, 4
    %v3186 = vadd.f32 %v2818, %v3185
    %v3187 = vrot.slane %v3186, 2
    %v3188 = vadd.f32 %v3186, %v3187
    %v3189 = vrot.slane %v3188, 1
    %v3190 = vadd.f32 %v3188, %v3189
    %v3191 = vrot.slane %v2870, 4
    %v3192 = vadd.f32 %v2870, %v3191
    %v3193 = vrot.slane %v3192, 2
    %v3194 = vadd.f32 %v3192, %v3193
    %v3195 = vrot.slane %v3194, 1
    %v3196 = vadd.f32 %v3194, %v3195
    %v3197 = vrot.slane %v2922, 4
    %v3198 = vadd.f32 %v2922, %v3197
    %v3199 = vrot.slane %v3198, 2
    %v3200 = vadd.f32 %v3198, %v3199
    %v3201 = vrot.slane %v3200, 1
    %v3202 = vadd.f32 %v3200, %v3201
    %v3203 = vrot.slane %v2974, 4
    %v3204 = vadd.f32 %v2974, %v3203
    %v3205 = vrot.slane %v3204, 2
    %v3206 = vadd.f32 %v3204, %v3205
    %v3207 = vrot.slane %v3206, 1
    %v3208 = vadd.f32 %v3206, %v3207
    %v3209 = vrot.slane %v3026, 4
    %v3210 = vadd.f32 %v3026, %v3209
    %v3211 = vrot.slane %v3210, 2
    %v3212 = vadd.f32 %v3210, %v3211
    %v3213 = vrot.slane %v3212, 1
    %v3214 = vadd.f32 %v3212, %v3213
    %v3215 = vrot.slane %v3078, 4
    %v3216 = vadd.f32 %v3078, %v3215
    %v3217 = vrot.slane %v3216, 2
    %v3218 = vadd.f32 %v3216, %v3217
    %v3219 = vrot.slane %v3218, 1
    %v3220 = vadd.f32 %v3218, %v3219
    %v3221 = vrot.slane %v3130, 4
    %v3222 = vadd.f32 %v3130, %v3221
    %v3223 = vrot.slane %v3222, 2
    %v3224 = vadd.f32 %v3222, %v3223
    %v3225 = vrot.slane %v3224, 1
    %v3226 = vadd.f32 %v3224, %v3225
    %v3227 = vrot.slane %v3182, 4
    %v3228 = vadd.f32 %v3182, %v3227
    %v3229 = vrot.slane %v3228, 2
    %v3230 = vadd.f32 %v3228, %v3229
    %v3231 = vrot.slane %v3230, 1
    %v3232 = vadd.f32 %v3230, %v3231
    %v3233 = vmul.f32 %v3190, %v475
    %v3234 = vmul.f32 %v3196, %v475
    %v3235 = vmul.f32 %v3202, %v475
    %v3236 = vmul.f32 %v3208, %v475
    %v3237 = vmul.f32 %v3214, %v475
    %v3238 = vmul.f32 %v3220, %v475
    %v3239 = vmul.f32 %v3226, %v475
    %v3240 = vmul.f32 %v3232, %v475
    %v3241 = vmul.f32 %v2818, %v2818
    %v3242 = vmul.f32 %v2870, %v2870
    %v3243 = vmul.f32 %v2922, %v2922
    %v3244 = vmul.f32 %v2974, %v2974
    %v3245 = vmul.f32 %v3026, %v3026
    %v3246 = vmul.f32 %v3078, %v3078
    %v3247 = vmul.f32 %v3130, %v3130
    %v3248 = vmul.f32 %v3182, %v3182
    %v3249 = vrot.slane %v3241, 4
    %v3250 = vadd.f32 %v3241, %v3249
    %v3251 = vrot.slane %v3250, 2
    %v3252 = vadd.f32 %v3250, %v3251
    %v3253 = vrot.slane %v3252, 1
    %v3254 = vadd.f32 %v3252, %v3253
    %v3255 = vrot.slane %v3242, 4
    %v3256 = vadd.f32 %v3242, %v3255
    %v3257 = vrot.slane %v3256, 2
    %v3258 = vadd.f32 %v3256, %v3257
    %v3259 = vrot.slane %v3258, 1
    %v3260 = vadd.f32 %v3258, %v3259
    %v3261 = vrot.slane %v3243, 4
    %v3262 = vadd.f32 %v3243, %v3261
    %v3263 = vrot.slane %v3262, 2
    %v3264 = vadd.f32 %v3262, %v3263
    %v3265 = vrot.slane %v3264, 1
    %v3266 = vadd.f32 %v3264, %v3265
    %v3267 = vrot.slane %v3244, 4
    %v3268 = vadd.f32 %v3244, %v3267
    %v3269 = vrot.slane %v3268, 2
    %v3270 = vadd.f32 %v3268, %v3269
    %v3271 = vrot.slane %v3270, 1
    %v3272 = vadd.f32 %v3270, %v3271
    %v3273 = vrot.slane %v3245, 4
    %v3274 = vadd.f32 %v3245, %v3273
    %v3275 = vrot.slane %v3274, 2
    %v3276 = vadd.f32 %v3274, %v3275
    %v3277 = vrot.slane %v3276, 1
    %v3278 = vadd.f32 %v3276, %v3277
    %v3279 = vrot.slane %v3246, 4
    %v3280 = vadd.f32 %v3246, %v3279
    %v3281 = vrot.slane %v3280, 2
    %v3282 = vadd.f32 %v3280, %v3281
    %v3283 = vrot.slane %v3282, 1
    %v3284 = vadd.f32 %v3282, %v3283
    %v3285 = vrot.slane %v3247, 4
    %v3286 = vadd.f32 %v3247, %v3285
    %v3287 = vrot.slane %v3286, 2
    %v3288 = vadd.f32 %v3286, %v3287
    %v3289 = vrot.slane %v3288, 1
    %v3290 = vadd.f32 %v3288, %v3289
    %v3291 = vrot.slane %v3248, 4
    %v3292 = vadd.f32 %v3248, %v3291
    %v3293 = vrot.slane %v3292, 2
    %v3294 = vadd.f32 %v3292, %v3293
    %v3295 = vrot.slane %v3294, 1
    %v3296 = vadd.f32 %v3294, %v3295
    %v3297 = vmul.f32 %v3254, %v475
    %v3298 = vmul.f32 %v3260, %v475
    %v3299 = vmul.f32 %v3266, %v475
    %v3300 = vmul.f32 %v3272, %v475
    %v3301 = vmul.f32 %v3278, %v475
    %v3302 = vmul.f32 %v3284, %v475
    %v3303 = vmul.f32 %v3290, %v475
    %v3304 = vmul.f32 %v3296, %v475
    %v3305 = vmul.f32 %v3233, %v3233
    %v3306 = vmul.f32 %v3234, %v3234
    %v3307 = vmul.f32 %v3235, %v3235
    %v3308 = vmul.f32 %v3236, %v3236
    %v3309 = vmul.f32 %v3237, %v3237
    %v3310 = vmul.f32 %v3238, %v3238
    %v3311 = vmul.f32 %v3239, %v3239
    %v3312 = vmul.f32 %v3240, %v3240
    %v3313 = vsub.f32 %v3297, %v3305
    %v3314 = vsub.f32 %v3298, %v3306
    %v3315 = vsub.f32 %v3299, %v3307
    %v3316 = vsub.f32 %v3300, %v3308
    %v3317 = vsub.f32 %v3301, %v3309
    %v3318 = vsub.f32 %v3302, %v3310
    %v3319 = vsub.f32 %v3303, %v3311
    %v3320 = vsub.f32 %v3304, %v3312
    %v3321 = vld [vmem:[#allocation19] sm:$0xff]
    %v3322 = vadd.f32 %v3313, 0.8
    %v3323 = vadd.f32 %v3314, 0.8
    %v3324 = vadd.f32 %v3315, 0.8
    %v3325 = vadd.f32 %v3316, 0.8
    %v3326 = vadd.f32 %v3317, 0.8
    %v3327 = vadd.f32 %v3318, 0.8
    %v3328 = vadd.f32 %v3319, 0.8
    %v3329 = vadd.f32 %v3320, 0.8
    %v3330 = vrsqrt.pop %v3322
    %v3331 = vmul.f32 %v3330, %v3322
    %v3332 = vmul.f32 %v3331, %v3330
    %v3333 = vmul.f32 0.5, %v3332
    %v3334 = vsub.f32 1.5, %v3333
    %v3335 = vmul.f32 %v3330, %v3334
    %vm3336 = vweird.f32 %v3322
    %vm3337 = vweird.f32 %v3330
    %vm3338 = vmor %vm3336, %vm3337
    %v3339 = vsel %vm3338, %v3330, %v3335
    %v3340 = vrsqrt.pop %v3323
    %v3341 = vmul.f32 %v3340, %v3323
    %v3342 = vmul.f32 %v3341, %v3340
    %v3343 = vmul.f32 0.5, %v3342
    %v3344 = vsub.f32 1.5, %v3343
    %v3345 = vmul.f32 %v3340, %v3344
    %vm3346 = vweird.f32 %v3323
    %vm3347 = vweird.f32 %v3340
    %vm3348 = vmor %vm3346, %vm3347
    %v3349 = vsel %vm3348, %v3340, %v3345
    %v3350 = vrsqrt.pop %v3324
    %v3351 = vmul.f32 %v3350, %v3324
    %v3352 = vmul.f32 %v3351, %v3350
    %v3353 = vmul.f32 0.5, %v3352
    %v3354 = vsub.f32 1.5, %v3353
    %v3355 = vmul.f32 %v3350, %v3354
    %vm3356 = vweird.f32 %v3324
    %vm3357 = vweird.f32 %v3350
    %vm3358 = vmor %vm3356, %vm3357
    %v3359 = vsel %vm3358, %v3350, %v3355
    %v3360 = vrsqrt.pop %v3325
    %v3361 = vmul.f32 %v3360, %v3325
    %v3362 = vmul.f32 %v3361, %v3360
    %v3363 = vmul.f32 0.5, %v3362
    %v3364 = vsub.f32 1.5, %v3363
    %v3365 = vmul.f32 %v3360, %v3364
    %vm3366 = vweird.f32 %v3325
    %vm3367 = vweird.f32 %v3360
    %vm3368 = vmor %vm3366, %vm3367
    %v3369 = vsel %vm3368, %v3360, %v3365
    %v3370 = vrsqrt.pop %v3326
    %v3371 = vmul.f32 %v3370, %v3326
    %v3372 = vmul.f32 %v3371, %v3370
    %v3373 = vmul.f32 0.5, %v3372
    %v3374 = vsub.f32 1.5, %v3373
    %v3375 = vmul.f32 %v3370, %v3374
    %vm3376 = vweird.f32 %v3326
    %vm3377 = vweird.f32 %v3370
    %vm3378 = vmor %vm3376, %vm3377
    %v3379 = vsel %vm3378, %v3370, %v3375
    %v3380 = vrsqrt.pop %v3327
    %v3381 = vmul.f32 %v3380, %v3327
    %v3382 = vmul.f32 %v3381, %v3380
    %v3383 = vmul.f32 0.5, %v3382
    %v3384 = vsub.f32 1.5, %v3383
    %v3385 = vmul.f32 %v3380, %v3384
    %vm3386 = vweird.f32 %v3327
    %vm3387 = vweird.f32 %v3380
    %vm3388 = vmor %vm3386, %vm3387
    %v3389 = vsel %vm3388, %v3380, %v3385
    %v3390 = vrsqrt.pop %v3328
    %v3391 = vmul.f32 %v3390, %v3328
    %v3392 = vmul.f32 %v3391, %v3390
    %v3393 = vmul.f32 0.5, %v3392
    %v3394 = vsub.f32 1.5, %v3393
    %v3395 = vmul.f32 %v3390, %v3394
    %vm3396 = vweird.f32 %v3328
    %vm3397 = vweird.f32 %v3390
    %vm3398 = vmor %vm3396, %vm3397
    %v3399 = vsel %vm3398, %v3390, %v3395
    %v3400 = vrsqrt.pop %v3329
    %v3401 = vmul.f32 %v3400, %v3329
    %v3402 = vmul.f32 %v3401, %v3400
    %v3403 = vmul.f32 0.5, %v3402
    %v3404 = vsub.f32 1.5, %v3403
    %v3405 = vmul.f32 %v3400, %v3404
    %vm3406 = vweird.f32 %v3329
    %vm3407 = vweird.f32 %v3400
    %vm3408 = vmor %vm3406, %vm3407
    %v3409 = vsel %vm3408, %v3400, %v3405
    %v3418 = vrot.slane %v3349, 7
    %v3419 = vrot.slane %v3359, 6
    %v3420 = vrot.slane %v3369, 5
    %v3421 = vrot.slane %v3379, 4
    %v3422 = vrot.slane %v3389, 3
    %v3423 = vrot.slane %v3399, 2
    %v3424 = vrot.slane %v3409, 1
    %v3425 = vsel %vm524, %v3339, %v3418
    %v3426 = vsel %vm1168, %v3419, %v3420
    %v3427 = vsel %vm1170, %v3425, %v3426
    %vm3428 = vcmask 1044484
    %v3429 = vsel %vm3428, %v3421, %v3422
    %vm3430 = vcmask 1046534
    %v3431 = vsel %vm3430, %v3423, %v3424
    %vm3432 = vcmask 1045508
    %v3433 = vsel %vm3432, %v3429, %v3431
    %vm3434 = vcmask 1043456
    %v3435 = vsel %vm3434, %v3427, %v3433
    %v3437 = vmul.f32 %v3321, %v3435
    %v3438 = vld [vmem:[#allocation20] sm:$0xff]
    %v3440 = vperm.slane %v3437, 0
    %v3441 = vperm.slane %v3437, 1
    %v3442 = vperm.slane %v3437, 2
    %v3443 = vperm.slane %v3437, 3
    %v3444 = vperm.slane %v3437, 4
    %v3445 = vperm.slane %v3437, 5
    %v3446 = vperm.slane %v3437, 6
    %v3447 = vperm.slane %v3437, 7
    %v3456 = vmul.f32 %v3233, %v3440
    %v3457 = vmul.f32 %v3234, %v3441
    %v3458 = vmul.f32 %v3235, %v3442
    %v3459 = vmul.f32 %v3236, %v3443
    %v3460 = vmul.f32 %v3237, %v3444
    %v3461 = vmul.f32 %v3238, %v3445
    %v3462 = vmul.f32 %v3239, %v3446
    %v3463 = vmul.f32 %v3240, %v3447
    %v3472 = vrot.slane %v3457, 7
    %v3473 = vrot.slane %v3458, 6
    %v3474 = vrot.slane %v3459, 5
    %v3475 = vrot.slane %v3460, 4
    %v3476 = vrot.slane %v3461, 3
    %v3477 = vrot.slane %v3462, 2
    %v3478 = vrot.slane %v3463, 1
    %v3479 = vsel %vm524, %v3456, %v3472
    %v3480 = vsel %vm1168, %v3473, %v3474
    %v3481 = vsel %vm1170, %v3479, %v3480
    %v3482 = vsel %vm3428, %v3475, %v3476
    %v3483 = vsel %vm3430, %v3477, %v3478
    %v3484 = vsel %vm3432, %v3482, %v3483
    %v3485 = vsel %vm3434, %v3481, %v3484
    %v3487 = vsub.f32 %v3438, %v3485
    %v3488 = vmul.f32 %v2818, %v3440
    %v3489 = vmul.f32 %v2870, %v3441
    %v3490 = vmul.f32 %v2922, %v3442
    %v3491 = vmul.f32 %v2974, %v3443
    %v3492 = vmul.f32 %v3026, %v3444
    %v3493 = vmul.f32 %v3078, %v3445
    %v3494 = vmul.f32 %v3130, %v3446
    %v3495 = vmul.f32 %v3182, %v3447
    %v3497 = vperm.slane %v3487, 0
    %v3498 = vperm.slane %v3487, 1
    %v3499 = vperm.slane %v3487, 2
    %v3500 = vperm.slane %v3487, 3
    %v3501 = vperm.slane %v3487, 4
    %v3502 = vperm.slane %v3487, 5
    %v3503 = vperm.slane %v3487, 6
    %v3504 = vperm.slane %v3487, 7
    %v3513 = vadd.f32 %v3488, %v3497
    %v3514 = vadd.f32 %v3489, %v3498
    %v3515 = vadd.f32 %v3490, %v3499
    %v3516 = vadd.f32 %v3491, %v3500
    %v3517 = vadd.f32 %v3492, %v3501
    %v3518 = vadd.f32 %v3493, %v3502
    %v3519 = vadd.f32 %v3494, %v3503
    %v3520 = vadd.f32 %v3495, %v3504
    %vm3521 = vcmp.gt.f32.partialorder %v3513, 0.0
    %vm3522 = vcmp.gt.f32.partialorder %v3514, 0.0
    %vm3523 = vcmp.gt.f32.partialorder %v3515, 0.0
    %vm3524 = vcmp.gt.f32.partialorder %v3516, 0.0
    %vm3525 = vcmp.gt.f32.partialorder %v3517, 0.0
    %vm3526 = vcmp.gt.f32.partialorder %v3518, 0.0
    %vm3527 = vcmp.gt.f32.partialorder %v3519, 0.0
    %vm3528 = vcmp.gt.f32.partialorder %v3520, 0.0
    %v3529 = vmul.f32 %v3513, 0.2
    %v3530 = vmul.f32 %v3514, 0.2
    %v3531 = vmul.f32 %v3515, 0.2
    %v3532 = vmul.f32 %v3516, 0.2
    %v3533 = vmul.f32 %v3517, 0.2
    %v3534 = vmul.f32 %v3518, 0.2
    %v3535 = vmul.f32 %v3519, 0.2
    %v3536 = vmul.f32 %v3520, 0.2
    %v3537 = vsel %vm3521, %v3513, %v3529
    %v3538 = vsel %vm3522, %v3514, %v3530
    %v3539 = vsel %vm3523, %v3515, %v3531
    %v3540 = vsel %vm3524, %v3516, %v3532
    %v3541 = vsel %vm3525, %v3517, %v3533
    %v3542 = vsel %vm3526, %v3518, %v3534
    %v3543 = vsel %vm3527, %v3519, %v3535
    %v3544 = vsel %vm3528, %v3520, %v3536
    %v3545 = vpack.c.bf16 %v3537, %v3537
    %v3546 = vpack.c.bf16 %v3538, %v3538
    %v3547 = vpack.c.bf16 %v3539, %v3539
    %v3548 = vpack.c.bf16 %v3540, %v3540
    %v3549 = vpack.c.bf16 %v3541, %v3541
    %v3550 = vpack.c.bf16 %v3542, %v3542
    %v3551 = vpack.c.bf16 %v3543, %v3543
    %v3552 = vpack.c.bf16 %v3544, %v3544
    %v3553 = vld [vmem:[#allocation22] sm:$0xff]
    %v3554 = vld [vmem:[#allocation22 + $0x8] sm:$0xff]
    %v3555 = vld [vmem:[#allocation22 + $0x10] sm:$0xff]
    %v3556 = vld [vmem:[#allocation22 + $0x18] sm:$0xf]
    %v3557 = vld [vmem:[#allocation22 + $0x1c] sm:$0xff]
    %v3558 = vld [vmem:[#allocation22 + $0x24] sm:$0xff]
    %v3559 = vld [vmem:[#allocation22 + $0x2c] sm:$0xff]
    %v3560 = vld [vmem:[#allocation22 + $0x34] sm:$0xf]
    %v3561 = vld [vmem:[#allocation22 + $0x38] sm:$0xff]
    %v3562 = vld [vmem:[#allocation22 + $0x40] sm:$0xff]
    %v3563 = vld [vmem:[#allocation22 + $0x48] sm:$0xff]
    %v3564 = vld [vmem:[#allocation22 + $0x50] sm:$0xf]
    %v3565 = vld [vmem:[#allocation22 + $0x54] sm:$0xff]
    %v3566 = vld [vmem:[#allocation22 + $0x5c] sm:$0xff]
    %v3567 = vld [vmem:[#allocation22 + $0x64] sm:$0xff]
    %v3568 = vld [vmem:[#allocation22 + $0x6c] sm:$0xf]
    %v3569 = vld [vmem:[#allocation22 + $0x70] sm:$0xff]
    %v3570 = vld [vmem:[#allocation22 + $0x78] sm:$0xff]
    %v3571 = vld [vmem:[#allocation22 + $0x80] sm:$0xff]
    %v3572 = vld [vmem:[#allocation22 + $0x88] sm:$0xf]
    %v3573 = vld [vmem:[#allocation22 + $0x8c] sm:$0xff]
    %v3574 = vld [vmem:[#allocation22 + $0x94] sm:$0xff]
    %v3575 = vld [vmem:[#allocation22 + $0x9c] sm:$0xff]
    %v3576 = vld [vmem:[#allocation22 + $0xa4] sm:$0xf]
    %v3577 = vld [vmem:[#allocation22 + $0xa8] sm:$0xff]
    %v3578 = vld [vmem:[#allocation22 + $0xb0] sm:$0xff]
    %v3579 = vld [vmem:[#allocation22 + $0xb8] sm:$0xff]
    %v3580 = vld [vmem:[#allocation22 + $0xc0] sm:$0xf]
    %v3581 = vld [vmem:[#allocation22 + $0xc4] sm:$0xff]
    %v3582 = vld [vmem:[#allocation22 + $0xcc] sm:$0xff]
    %v3583 = vld [vmem:[#allocation22 + $0xd4] sm:$0xff]
    %v3584 = vld [vmem:[#allocation22 + $0xdc] sm:$0xf]
    %v3585 = vld [vmem:[#allocation22 + $0xe0] sm:$0xff]
    %v3586 = vld [vmem:[#allocation22 + $0xe8] sm:$0xff]
    %v3587 = vld [vmem:[#allocation22 + $0xf0] sm:$0xff]
    %v3588 = vld [vmem:[#allocation22 + $0xf8] sm:$0xf]
    %v3589 = vld [vmem:[#allocation22 + $0xfc] sm:$0xff]
    %v3590 = vld [vmem:[#allocation22 + $0x104] sm:$0xff]
    %v3591 = vld [vmem:[#allocation22 + $0x10c] sm:$0xff]
    %v3592 = vld [vmem:[#allocation22 + $0x114] sm:$0xf]
    %v3593 = vld [vmem:[#allocation22 + $0x118] sm:$0xff]
    %v3594 = vld [vmem:[#allocation22 + $0x120] sm:$0xff]
    %v3595 = vld [vmem:[#allocation22 + $0x128] sm:$0xff]
    %v3596 = vld [vmem:[#allocation22 + $0x130] sm:$0xf]
    %v3597 = vld [vmem:[#allocation22 + $0x134] sm:$0xff]
    %v3598 = vld [vmem:[#allocation22 + $0x13c] sm:$0xff]
    %v3599 = vld [vmem:[#allocation22 + $0x144] sm:$0xff]
    %v3600 = vld [vmem:[#allocation22 + $0x14c] sm:$0xf]
    %v3601 = vld [vmem:[#allocation22 + $0x150] sm:$0xff]
    %v3602 = vld [vmem:[#allocation22 + $0x158] sm:$0xff]
    %v3603 = vld [vmem:[#allocation22 + $0x160] sm:$0xff]
    %v3604 = vld [vmem:[#allocation22 + $0x168] sm:$0xf]
    %v3605 = vld [vmem:[#allocation22 + $0x16c] sm:$0xff]
    %v3606 = vld [vmem:[#allocation22 + $0x174] sm:$0xff]
    %v3607 = vld [vmem:[#allocation22 + $0x17c] sm:$0xff]
    %v3608 = vld [vmem:[#allocation22 + $0x184] sm:$0xf]
    %v3609 = vld [vmem:[#allocation22 + $0x188] sm:$0xff]
    %v3610 = vld [vmem:[#allocation22 + $0x190] sm:$0xff]
    %v3611 = vld [vmem:[#allocation22 + $0x198] sm:$0xff]
    %v3612 = vld [vmem:[#allocation22 + $0x1a0] sm:$0xf]
    %v3613 = vld [vmem:[#allocation22 + $0x1a4] sm:$0xff]
    %v3614 = vld [vmem:[#allocation22 + $0x1ac] sm:$0xff]
    %v3615 = vld [vmem:[#allocation22 + $0x1b4] sm:$0xff]
    %v3616 = vld [vmem:[#allocation22 + $0x1bc] sm:$0xf]
    %v3617 = vld [vmem:[#allocation22 + $0x1c0] sm:$0xff]
    %v3618 = vld [vmem:[#allocation22 + $0x1c8] sm:$0xff]
    %v3619 = vld [vmem:[#allocation22 + $0x1d0] sm:$0xff]
    %v3620 = vld [vmem:[#allocation22 + $0x1d8] sm:$0xf]
    %v3621 = vld [vmem:[#allocation22 + $0x1dc] sm:$0xff]
    %v3622 = vld [vmem:[#allocation22 + $0x1e4] sm:$0xff]
    %v3623 = vld [vmem:[#allocation22 + $0x1ec] sm:$0xff]
    %v3624 = vld [vmem:[#allocation22 + $0x1f4] sm:$0xf]
    %v3625 = vld [vmem:[#allocation22 + $0x1f8] sm:$0xff]
    %v3626 = vld [vmem:[#allocation22 + $0x200] sm:$0xff]
    %v3627 = vld [vmem:[#allocation22 + $0x208] sm:$0xff]
    %v3628 = vld [vmem:[#allocation22 + $0x210] sm:$0xf]
    %v3629 = vld [vmem:[#allocation22 + $0x214] sm:$0xff]
    %v3630 = vld [vmem:[#allocation22 + $0x21c] sm:$0xff]
    %v3631 = vld [vmem:[#allocation22 + $0x224] sm:$0xff]
    %v3632 = vld [vmem:[#allocation22 + $0x22c] sm:$0xf]
    %v3633 = vld [vmem:[#allocation22 + $0x230] sm:$0xff]
    %v3634 = vld [vmem:[#allocation22 + $0x238] sm:$0xff]
    %v3635 = vld [vmem:[#allocation22 + $0x240] sm:$0xff]
    %v3636 = vld [vmem:[#allocation22 + $0x248] sm:$0xf]
    %v3637 = vld [vmem:[#allocation22 + $0x24c] sm:$0xff]
    %v3638 = vld [vmem:[#allocation22 + $0x254] sm:$0xff]
    %v3639 = vld [vmem:[#allocation22 + $0x25c] sm:$0xff]
    %v3640 = vld [vmem:[#allocation22 + $0x264] sm:$0xf]
    %v3641 = vld [vmem:[#allocation22 + $0x268] sm:$0xff]
    %v3642 = vld [vmem:[#allocation22 + $0x270] sm:$0xff]
    %v3643 = vld [vmem:[#allocation22 + $0x278] sm:$0xff]
    %v3644 = vld [vmem:[#allocation22 + $0x280] sm:$0xf]
    %v3645 = vld [vmem:[#allocation22 + $0x284] sm:$0xff]
    %v3646 = vld [vmem:[#allocation22 + $0x28c] sm:$0xff]
    %v3647 = vld [vmem:[#allocation22 + $0x294] sm:$0xff]
    %v3648 = vld [vmem:[#allocation22 + $0x29c] sm:$0xf]
    %v3649 = vld [vmem:[#allocation22 + $0x2a0] sm:$0xff]
    %v3650 = vld [vmem:[#allocation22 + $0x2a8] sm:$0xff]
    %v3651 = vld [vmem:[#allocation22 + $0x2b0] sm:$0xff]
    %v3652 = vld [vmem:[#allocation22 + $0x2b8] sm:$0xf]
    %v3653 = vld [vmem:[#allocation22 + $0x2bc] sm:$0xff]
    %v3654 = vld [vmem:[#allocation22 + $0x2c4] sm:$0xff]
    %v3655 = vld [vmem:[#allocation22 + $0x2cc] sm:$0xff]
    %v3656 = vld [vmem:[#allocation22 + $0x2d4] sm:$0xf]
    %v3657 = vld [vmem:[#allocation22 + $0x2d8] sm:$0xff]
    %v3658 = vld [vmem:[#allocation22 + $0x2e0] sm:$0xff]
    %v3659 = vld [vmem:[#allocation22 + $0x2e8] sm:$0xff]
    %v3660 = vld [vmem:[#allocation22 + $0x2f0] sm:$0xf]
    %v3661 = vld [vmem:[#allocation22 + $0x2f4] sm:$0xff]
    %v3662 = vld [vmem:[#allocation22 + $0x2fc] sm:$0xff]
    %v3663 = vld [vmem:[#allocation22 + $0x304] sm:$0xff]
    %v3664 = vld [vmem:[#allocation22 + $0x30c] sm:$0xf]
    %v3665 = vld [vmem:[#allocation22 + $0x310] sm:$0xff]
    %v3666 = vld [vmem:[#allocation22 + $0x318] sm:$0xff]
    %v3667 = vld [vmem:[#allocation22 + $0x320] sm:$0xff]
    %v3668 = vld [vmem:[#allocation22 + $0x328] sm:$0xf]
    %v3669 = vld [vmem:[#allocation22 + $0x32c] sm:$0xff]
    %v3670 = vld [vmem:[#allocation22 + $0x334] sm:$0xff]
    %v3671 = vld [vmem:[#allocation22 + $0x33c] sm:$0xff]
    %v3672 = vld [vmem:[#allocation22 + $0x344] sm:$0xf]
    %v3673 = vld [vmem:[#allocation22 + $0x348] sm:$0xff]
    %v3674 = vld [vmem:[#allocation22 + $0x350] sm:$0xff]
    %v3675 = vld [vmem:[#allocation22 + $0x358] sm:$0xff]
    %v3676 = vld [vmem:[#allocation22 + $0x360] sm:$0xf]
    %v3677 = vld [vmem:[#allocation22 + $0x364] sm:$0xff]
    %v3678 = vld [vmem:[#allocation22 + $0x36c] sm:$0xff]
    %v3679 = vld [vmem:[#allocation22 + $0x374] sm:$0xff]
    %v3680 = vld [vmem:[#allocation22 + $0x37c] sm:$0xf]
    %v3681 = vld [vmem:[#allocation22 + $0x380] sm:$0xff]
    %v3682 = vld [vmem:[#allocation22 + $0x388] sm:$0xff]
    %v3683 = vld [vmem:[#allocation22 + $0x390] sm:$0xff]
    %v3684 = vld [vmem:[#allocation22 + $0x398] sm:$0xf]
    %v3685 = vld [vmem:[#allocation22 + $0x39c] sm:$0xff]
    %v3686 = vld [vmem:[#allocation22 + $0x3a4] sm:$0xff]
    %v3687 = vld [vmem:[#allocation22 + $0x3ac] sm:$0xff]
    %v3688 = vld [vmem:[#allocation22 + $0x3b4] sm:$0xf]
    %v3689 = vld [vmem:[#allocation22 + $0x3b8] sm:$0xff]
    %v3690 = vld [vmem:[#allocation22 + $0x3c0] sm:$0xff]
    %v3691 = vld [vmem:[#allocation22 + $0x3c8] sm:$0xff]
    %v3692 = vld [vmem:[#allocation22 + $0x3d0] sm:$0xf]
    %v3693 = vld [vmem:[#allocation22 + $0x3d4] sm:$0xff]
    %v3694 = vld [vmem:[#allocation22 + $0x3dc] sm:$0xff]
    %v3695 = vld [vmem:[#allocation22 + $0x3e4] sm:$0xff]
    %v3696 = vld [vmem:[#allocation22 + $0x3ec] sm:$0xf]
    %v3697 = vld [vmem:[#allocation22 + $0x3f0] sm:$0xff]
    %v3698 = vld [vmem:[#allocation22 + $0x3f8] sm:$0xff]
    %v3699 = vld [vmem:[#allocation22 + $0x400] sm:$0xff]
    %v3700 = vld [vmem:[#allocation22 + $0x408] sm:$0xf]
    %v3701 = vld [vmem:[#allocation22 + $0x40c] sm:$0xff]
    %v3702 = vld [vmem:[#allocation22 + $0x414] sm:$0xff]
    %v3703 = vld [vmem:[#allocation22 + $0x41c] sm:$0xff]
    %v3704 = vld [vmem:[#allocation22 + $0x424] sm:$0xf]
    %v3705 = vld [vmem:[#allocation22 + $0x428] sm:$0xff]
    %v3706 = vld [vmem:[#allocation22 + $0x430] sm:$0xff]
    %v3707 = vld [vmem:[#allocation22 + $0x438] sm:$0xff]
    %v3708 = vld [vmem:[#allocation22 + $0x440] sm:$0xf]
    %v3709 = vld [vmem:[#allocation22 + $0x444] sm:$0xff]
    %v3710 = vld [vmem:[#allocation22 + $0x44c] sm:$0xff]
    %v3711 = vld [vmem:[#allocation22 + $0x454] sm:$0xff]
    %v3712 = vld [vmem:[#allocation22 + $0x45c] sm:$0xf]
    %v3713 = vld [vmem:[#allocation22 + $0x460] sm:$0xff]
    %v3714 = vld [vmem:[#allocation22 + $0x468] sm:$0xff]
    %v3715 = vld [vmem:[#allocation22 + $0x470] sm:$0xff]
    %v3716 = vld [vmem:[#allocation22 + $0x478] sm:$0xf]
    %v3717 = vld [vmem:[#allocation22 + $0x47c] sm:$0xff]
    %v3718 = vld [vmem:[#allocation22 + $0x484] sm:$0xff]
    %v3719 = vld [vmem:[#allocation22 + $0x48c] sm:$0xff]
    %v3720 = vld [vmem:[#allocation22 + $0x494] sm:$0xf]
    %v3721 = vld [vmem:[#allocation22 + $0x498] sm:$0xff]
    %v3722 = vld [vmem:[#allocation22 + $0x4a0] sm:$0xff]
    %v3723 = vld [vmem:[#allocation22 + $0x4a8] sm:$0xff]
    %v3724 = vld [vmem:[#allocation22 + $0x4b0] sm:$0xf]
    %v3725 = vld [vmem:[#allocation22 + $0x4b4] sm:$0xff]
    %v3726 = vld [vmem:[#allocation22 + $0x4bc] sm:$0xff]
    %v3727 = vld [vmem:[#allocation22 + $0x4c4] sm:$0xff]
    %v3728 = vld [vmem:[#allocation22 + $0x4cc] sm:$0xf]
    %v3729 = vld [vmem:[#allocation22 + $0x4d0] sm:$0xff]
    %v3730 = vld [vmem:[#allocation22 + $0x4d8] sm:$0xff]
    %v3731 = vld [vmem:[#allocation22 + $0x4e0] sm:$0xff]
    %v3732 = vld [vmem:[#allocation22 + $0x4e8] sm:$0xf]
    %v3733 = vld [vmem:[#allocation22 + $0x4ec] sm:$0xff]
    %v3734 = vld [vmem:[#allocation22 + $0x4f4] sm:$0xff]
    %v3735 = vld [vmem:[#allocation22 + $0x4fc] sm:$0xff]
    %v3736 = vld [vmem:[#allocation22 + $0x504] sm:$0xf]
    %v3737 = vld [vmem:[#allocation22 + $0x508] sm:$0xff]
    %v3738 = vld [vmem:[#allocation22 + $0x510] sm:$0xff]
    %v3739 = vld [vmem:[#allocation22 + $0x518] sm:$0xff]
    %v3740 = vld [vmem:[#allocation22 + $0x520] sm:$0xf]
    %v3741 = vld [vmem:[#allocation22 + $0x524] sm:$0xff]
    %v3742 = vld [vmem:[#allocation22 + $0x52c] sm:$0xff]
    %v3743 = vld [vmem:[#allocation22 + $0x534] sm:$0xff]
    %v3744 = vld [vmem:[#allocation22 + $0x53c] sm:$0xf]
    %v3745 = vld [vmem:[#allocation22 + $0x540] sm:$0xff]
    %v3746 = vld [vmem:[#allocation22 + $0x548] sm:$0xff]
    %v3747 = vld [vmem:[#allocation22 + $0x550] sm:$0xff]
    %v3748 = vld [vmem:[#allocation22 + $0x558] sm:$0xf]
    %v3749 = vld [vmem:[#allocation22 + $0x55c] sm:$0xff]
    %v3750 = vld [vmem:[#allocation22 + $0x564] sm:$0xff]
    %v3751 = vld [vmem:[#allocation22 + $0x56c] sm:$0xff]
    %v3752 = vld [vmem:[#allocation22 + $0x574] sm:$0xf]
    %v3753 = vld [vmem:[#allocation22 + $0x578] sm:$0xff]
    %v3754 = vld [vmem:[#allocation22 + $0x580] sm:$0xff]
    %v3755 = vld [vmem:[#allocation22 + $0x588] sm:$0xff]
    %v3756 = vld [vmem:[#allocation22 + $0x590] sm:$0xf]
    %v3757 = vld [vmem:[#allocation22 + $0x594] sm:$0xff]
    %v3758 = vld [vmem:[#allocation22 + $0x59c] sm:$0xff]
    %v3759 = vld [vmem:[#allocation22 + $0x5a4] sm:$0xff]
    %v3760 = vld [vmem:[#allocation22 + $0x5ac] sm:$0xf]
    %v3761 = vld [vmem:[#allocation22 + $0x5b0] sm:$0xff]
    %v3762 = vld [vmem:[#allocation22 + $0x5b8] sm:$0xff]
    %v3763 = vld [vmem:[#allocation22 + $0x5c0] sm:$0xff]
    %v3764 = vld [vmem:[#allocation22 + $0x5c8] sm:$0xf]
    %v3765 = vld [vmem:[#allocation22 + $0x5cc] sm:$0xff]
    %v3766 = vld [vmem:[#allocation22 + $0x5d4] sm:$0xff]
    %v3767 = vld [vmem:[#allocation22 + $0x5dc] sm:$0xff]
    %v3768 = vld [vmem:[#allocation22 + $0x5e4] sm:$0xf]
    %v3769 = vld [vmem:[#allocation22 + $0x5e8] sm:$0xff]
    %v3770 = vld [vmem:[#allocation22 + $0x5f0] sm:$0xff]
    %v3771 = vld [vmem:[#allocation22 + $0x5f8] sm:$0xff]
    %v3772 = vld [vmem:[#allocation22 + $0x600] sm:$0xf]
    %v3773 = vld [vmem:[#allocation22 + $0x604] sm:$0xff]
    %v3774 = vld [vmem:[#allocation22 + $0x60c] sm:$0xff]
    %v3775 = vld [vmem:[#allocation22 + $0x614] sm:$0xff]
    %v3776 = vld [vmem:[#allocation22 + $0x61c] sm:$0xf]
    %v3777 = vld [vmem:[#allocation22 + $0x620] sm:$0xff]
    %v3778 = vld [vmem:[#allocation22 + $0x628] sm:$0xff]
    %v3779 = vld [vmem:[#allocation22 + $0x630] sm:$0xff]
    %v3780 = vld [vmem:[#allocation22 + $0x638] sm:$0xf]
    %v3781 = vld [vmem:[#allocation22 + $0x63c] sm:$0xff]
    %v3782 = vld [vmem:[#allocation22 + $0x644] sm:$0xff]
    %v3783 = vld [vmem:[#allocation22 + $0x64c] sm:$0xff]
    %v3784 = vld [vmem:[#allocation22 + $0x654] sm:$0xf]
    %v3785 = vld [vmem:[#allocation22 + $0x658] sm:$0xff]
    %v3786 = vld [vmem:[#allocation22 + $0x660] sm:$0xff]
    %v3787 = vld [vmem:[#allocation22 + $0x668] sm:$0xff]
    %v3788 = vld [vmem:[#allocation22 + $0x670] sm:$0xf]
    %v3789 = vld [vmem:[#allocation22 + $0x674] sm:$0xff]
    %v3790 = vld [vmem:[#allocation22 + $0x67c] sm:$0xff]
    %v3791 = vld [vmem:[#allocation22 + $0x684] sm:$0xff]
    %v3792 = vld [vmem:[#allocation22 + $0x68c] sm:$0xf]
    %v3793 = vld [vmem:[#allocation22 + $0x690] sm:$0xff]
    %v3794 = vld [vmem:[#allocation22 + $0x698] sm:$0xff]
    %v3795 = vld [vmem:[#allocation22 + $0x6a0] sm:$0xff]
    %v3796 = vld [vmem:[#allocation22 + $0x6a8] sm:$0xf]
    %v3797 = vld [vmem:[#allocation22 + $0x6ac] sm:$0xff]
    %v3798 = vld [vmem:[#allocation22 + $0x6b4] sm:$0xff]
    %v3799 = vld [vmem:[#allocation22 + $0x6bc] sm:$0xff]
    %v3800 = vld [vmem:[#allocation22 + $0x6c4] sm:$0xf]
    %v3801 = vld [vmem:[#allocation22 + $0x6c8] sm:$0xff]
    %v3802 = vld [vmem:[#allocation22 + $0x6d0] sm:$0xff]
    %v3803 = vld [vmem:[#allocation22 + $0x6d8] sm:$0xff]
    %v3804 = vld [vmem:[#allocation22 + $0x6e0] sm:$0xf]
    %v3805 = vld [vmem:[#allocation22 + $0x6e4] sm:$0xff]
    %v3806 = vld [vmem:[#allocation22 + $0x6ec] sm:$0xff]
    %v3807 = vld [vmem:[#allocation22 + $0x6f4] sm:$0xff]
    %v3808 = vld [vmem:[#allocation22 + $0x6fc] sm:$0xf]
    %v3809 = vld [vmem:[#allocation22 + $0x700] sm:$0xff]
    %v3810 = vld [vmem:[#allocation22 + $0x708] sm:$0xff]
    %v3811 = vld [vmem:[#allocation22 + $0x710] sm:$0xff]
    %v3812 = vld [vmem:[#allocation22 + $0x718] sm:$0xf]
    %v3813 = vld [vmem:[#allocation22 + $0x71c] sm:$0xff]
    %v3814 = vld [vmem:[#allocation22 + $0x724] sm:$0xff]
    %v3815 = vld [vmem:[#allocation22 + $0x72c] sm:$0xff]
    %v3816 = vld [vmem:[#allocation22 + $0x734] sm:$0xf]
    %v3817 = vld [vmem:[#allocation22 + $0x738] sm:$0xff]
    %v3818 = vld [vmem:[#allocation22 + $0x740] sm:$0xff]
    %v3819 = vld [vmem:[#allocation22 + $0x748] sm:$0xff]
    %v3820 = vld [vmem:[#allocation22 + $0x750] sm:$0xf]
    %v3821 = vld [vmem:[#allocation22 + $0x754] sm:$0xff]
    %v3822 = vld [vmem:[#allocation22 + $0x75c] sm:$0xff]
    %v3823 = vld [vmem:[#allocation22 + $0x764] sm:$0xff]
    %v3824 = vld [vmem:[#allocation22 + $0x76c] sm:$0xf]
    %v3825 = vld [vmem:[#allocation22 + $0x770] sm:$0xff]
    %v3826 = vld [vmem:[#allocation22 + $0x778] sm:$0xff]
    %v3827 = vld [vmem:[#allocation22 + $0x780] sm:$0xff]
    %v3828 = vld [vmem:[#allocation22 + $0x788] sm:$0xf]
    %v3829 = vld [vmem:[#allocation22 + $0x78c] sm:$0xff]
    %v3830 = vld [vmem:[#allocation22 + $0x794] sm:$0xff]
    %v3831 = vld [vmem:[#allocation22 + $0x79c] sm:$0xff]
    %v3832 = vld [vmem:[#allocation22 + $0x7a4] sm:$0xf]
    %v3833 = vld [vmem:[#allocation22 + $0x7a8] sm:$0xff]
    %v3834 = vld [vmem:[#allocation22 + $0x7b0] sm:$0xff]
    %v3835 = vld [vmem:[#allocation22 + $0x7b8] sm:$0xff]
    %v3836 = vld [vmem:[#allocation22 + $0x7c0] sm:$0xf]
    %v3837 = vld [vmem:[#allocation22 + $0x7c4] sm:$0xff]
    %v3838 = vld [vmem:[#allocation22 + $0x7cc] sm:$0xff]
    %v3839 = vld [vmem:[#allocation22 + $0x7d4] sm:$0xff]
    %v3840 = vld [vmem:[#allocation22 + $0x7dc] sm:$0xf]
    %v3841 = vld [vmem:[#allocation22 + $0x7e0] sm:$0xff]
    %v3842 = vld [vmem:[#allocation22 + $0x7e8] sm:$0xff]
    %v3843 = vld [vmem:[#allocation22 + $0x7f0] sm:$0xff]
    %v3844 = vld [vmem:[#allocation22 + $0x7f8] sm:$0xf]
    %v3845 = vld [vmem:[#allocation22 + $0x7fc] sm:$0xff]
    %v3846 = vld [vmem:[#allocation22 + $0x804] sm:$0xff]
    %v3847 = vld [vmem:[#allocation22 + $0x80c] sm:$0xff]
    %v3848 = vld [vmem:[#allocation22 + $0x814] sm:$0xf]
    %v3849 = vld [vmem:[#allocation22 + $0x818] sm:$0xff]
    %v3850 = vld [vmem:[#allocation22 + $0x820] sm:$0xff]
    %v3851 = vld [vmem:[#allocation22 + $0x828] sm:$0xff]
    %v3852 = vld [vmem:[#allocation22 + $0x830] sm:$0xf]
    %v3853 = vld [vmem:[#allocation22 + $0x834] sm:$0xff]
    %v3854 = vld [vmem:[#allocation22 + $0x83c] sm:$0xff]
    %v3855 = vld [vmem:[#allocation22 + $0x844] sm:$0xff]
    %v3856 = vld [vmem:[#allocation22 + $0x84c] sm:$0xf]
    %v3857 = vld [vmem:[#allocation22 + $0x850] sm:$0xff]
    %v3858 = vld [vmem:[#allocation22 + $0x858] sm:$0xff]
    %v3859 = vld [vmem:[#allocation22 + $0x860] sm:$0xff]
    %v3860 = vld [vmem:[#allocation22 + $0x868] sm:$0xf]
    %v3861 = vld [vmem:[#allocation22 + $0x86c] sm:$0xff]
    %v3862 = vld [vmem:[#allocation22 + $0x874] sm:$0xff]
    %v3863 = vld [vmem:[#allocation22 + $0x87c] sm:$0xff]
    %v3864 = vld [vmem:[#allocation22 + $0x884] sm:$0xf]
    %v3865 = vld [vmem:[#allocation22 + $0x888] sm:$0xff]
    %v3866 = vld [vmem:[#allocation22 + $0x890] sm:$0xff]
    %v3867 = vld [vmem:[#allocation22 + $0x898] sm:$0xff]
    %v3868 = vld [vmem:[#allocation22 + $0x8a0] sm:$0xf]
    %v3869 = vld [vmem:[#allocation22 + $0x8a4] sm:$0xff]
    %v3870 = vld [vmem:[#allocation22 + $0x8ac] sm:$0xff]
    %v3871 = vld [vmem:[#allocation22 + $0x8b4] sm:$0xff]
    %v3872 = vld [vmem:[#allocation22 + $0x8bc] sm:$0xf]
    %v3873 = vld [vmem:[#allocation22 + $0x8c0] sm:$0xff]
    %v3874 = vld [vmem:[#allocation22 + $0x8c8] sm:$0xff]
    %v3875 = vld [vmem:[#allocation22 + $0x8d0] sm:$0xff]
    %v3876 = vld [vmem:[#allocation22 + $0x8d8] sm:$0xf]
    %v3877 = vld [vmem:[#allocation22 + $0x8dc] sm:$0xff]
    %v3878 = vld [vmem:[#allocation22 + $0x8e4] sm:$0xff]
    %v3879 = vld [vmem:[#allocation22 + $0x8ec] sm:$0xff]
    %v3880 = vld [vmem:[#allocation22 + $0x8f4] sm:$0xf]
    %v3881 = vld [vmem:[#allocation22 + $0x8f8] sm:$0xff]
    %v3882 = vld [vmem:[#allocation22 + $0x900] sm:$0xff]
    %v3883 = vld [vmem:[#allocation22 + $0x908] sm:$0xff]
    %v3884 = vld [vmem:[#allocation22 + $0x910] sm:$0xf]
    %v3885 = vld [vmem:[#allocation22 + $0x914] sm:$0xff]
    %v3886 = vld [vmem:[#allocation22 + $0x91c] sm:$0xff]
    %v3887 = vld [vmem:[#allocation22 + $0x924] sm:$0xff]
    %v3888 = vld [vmem:[#allocation22 + $0x92c] sm:$0xf]
    %v3889 = vld [vmem:[#allocation22 + $0x930] sm:$0xff]
    %v3890 = vld [vmem:[#allocation22 + $0x938] sm:$0xff]
    %v3891 = vld [vmem:[#allocation22 + $0x940] sm:$0xff]
    %v3892 = vld [vmem:[#allocation22 + $0x948] sm:$0xf]
    %v3893 = vld [vmem:[#allocation22 + $0x94c] sm:$0xff]
    %v3894 = vld [vmem:[#allocation22 + $0x954] sm:$0xff]
    %v3895 = vld [vmem:[#allocation22 + $0x95c] sm:$0xff]
    %v3896 = vld [vmem:[#allocation22 + $0x964] sm:$0xf]
    %v3897 = vld [vmem:[#allocation22 + $0x968] sm:$0xff]
    %v3898 = vld [vmem:[#allocation22 + $0x970] sm:$0xff]
    %v3899 = vld [vmem:[#allocation22 + $0x978] sm:$0xff]
    %v3900 = vld [vmem:[#allocation22 + $0x980] sm:$0xf]
    %v3901 = vld [vmem:[#allocation22 + $0x984] sm:$0xff]
    %v3902 = vld [vmem:[#allocation22 + $0x98c] sm:$0xff]
    %v3903 = vld [vmem:[#allocation22 + $0x994] sm:$0xff]
    %v3904 = vld [vmem:[#allocation22 + $0x99c] sm:$0xf]
    %v3905 = vld [vmem:[#allocation22 + $0x9a0] sm:$0xff]
    %v3906 = vld [vmem:[#allocation22 + $0x9a8] sm:$0xff]
    %v3907 = vld [vmem:[#allocation22 + $0x9b0] sm:$0xff]
    %v3908 = vld [vmem:[#allocation22 + $0x9b8] sm:$0xf]
    %v3909 = vld [vmem:[#allocation22 + $0x9bc] sm:$0xff]
    %v3910 = vld [vmem:[#allocation22 + $0x9c4] sm:$0xff]
    %v3911 = vld [vmem:[#allocation22 + $0x9cc] sm:$0xff]
    %v3912 = vld [vmem:[#allocation22 + $0x9d4] sm:$0xf]
    %v3913 = vld [vmem:[#allocation22 + $0x9d8] sm:$0xff]
    %v3914 = vld [vmem:[#allocation22 + $0x9e0] sm:$0xff]
    %v3915 = vld [vmem:[#allocation22 + $0x9e8] sm:$0xff]
    %v3916 = vld [vmem:[#allocation22 + $0x9f0] sm:$0xf]
    %v3917 = vld [vmem:[#allocation22 + $0x9f4] sm:$0xff]
    %v3918 = vld [vmem:[#allocation22 + $0x9fc] sm:$0xff]
    %v3919 = vld [vmem:[#allocation22 + $0xa04] sm:$0xff]
    %v3920 = vld [vmem:[#allocation22 + $0xa0c] sm:$0xf]
    %v3921 = vld [vmem:[#allocation22 + $0xa10] sm:$0xff]
    %v3922 = vld [vmem:[#allocation22 + $0xa18] sm:$0xff]
    %v3923 = vld [vmem:[#allocation22 + $0xa20] sm:$0xff]
    %v3924 = vld [vmem:[#allocation22 + $0xa28] sm:$0xf]
    %v3925 = vld [vmem:[#allocation22 + $0xa2c] sm:$0xff]
    %v3926 = vld [vmem:[#allocation22 + $0xa34] sm:$0xff]
    %v3927 = vld [vmem:[#allocation22 + $0xa3c] sm:$0xff]
    %v3928 = vld [vmem:[#allocation22 + $0xa44] sm:$0xf]
    %v3929 = vld [vmem:[#allocation22 + $0xa48] sm:$0xff]
    %v3930 = vld [vmem:[#allocation22 + $0xa50] sm:$0xff]
    %v3931 = vld [vmem:[#allocation22 + $0xa58] sm:$0xff]
    %v3932 = vld [vmem:[#allocation22 + $0xa60] sm:$0xf]
    %v3933 = vld [vmem:[#allocation22 + $0xa64] sm:$0xff]
    %v3934 = vld [vmem:[#allocation22 + $0xa6c] sm:$0xff]
    %v3935 = vld [vmem:[#allocation22 + $0xa74] sm:$0xff]
    %v3936 = vld [vmem:[#allocation22 + $0xa7c] sm:$0xf]
    %v3937 = vld [vmem:[#allocation22 + $0xa80] sm:$0xff]
    %v3938 = vld [vmem:[#allocation22 + $0xa88] sm:$0xff]
    %v3939 = vld [vmem:[#allocation22 + $0xa90] sm:$0xff]
    %v3940 = vld [vmem:[#allocation22 + $0xa98] sm:$0xf]
    %v3941 = vld [vmem:[#allocation22 + $0xa9c] sm:$0xff]
    %v3942 = vld [vmem:[#allocation22 + $0xaa4] sm:$0xff]
    %v3943 = vld [vmem:[#allocation22 + $0xaac] sm:$0xff]
    %v3944 = vld [vmem:[#allocation22 + $0xab4] sm:$0xf]
    %v3945 = vld [vmem:[#allocation22 + $0xab8] sm:$0xff]
    %v3946 = vld [vmem:[#allocation22 + $0xac0] sm:$0xff]
    %v3947 = vld [vmem:[#allocation22 + $0xac8] sm:$0xff]
    %v3948 = vld [vmem:[#allocation22 + $0xad0] sm:$0xf]
    %v3949 = vld [vmem:[#allocation22 + $0xad4] sm:$0xff]
    %v3950 = vld [vmem:[#allocation22 + $0xadc] sm:$0xff]
    %v3951 = vld [vmem:[#allocation22 + $0xae4] sm:$0xff]
    %v3952 = vld [vmem:[#allocation22 + $0xaec] sm:$0xf]
    %v3953 = vld [vmem:[#allocation22 + $0xaf0] sm:$0xff]
    %v3954 = vld [vmem:[#allocation22 + $0xaf8] sm:$0xff]
    %v3955 = vld [vmem:[#allocation22 + $0xb00] sm:$0xff]
    %v3956 = vld [vmem:[#allocation22 + $0xb08] sm:$0xf]
    %v3957 = vld [vmem:[#allocation22 + $0xb0c] sm:$0xff]
    %v3958 = vld [vmem:[#allocation22 + $0xb14] sm:$0xff]
    %v3959 = vld [vmem:[#allocation22 + $0xb1c] sm:$0xff]
    %v3960 = vld [vmem:[#allocation22 + $0xb24] sm:$0xf]
    %v3961 = vld [vmem:[#allocation22 + $0xb28] sm:$0xff]
    %v3962 = vld [vmem:[#allocation22 + $0xb30] sm:$0xff]
    %v3963 = vld [vmem:[#allocation22 + $0xb38] sm:$0xff]
    %v3964 = vld [vmem:[#allocation22 + $0xb40] sm:$0xf]
    %v3965 = vld [vmem:[#allocation22 + $0xb44] sm:$0xff]
    %v3966 = vld [vmem:[#allocation22 + $0xb4c] sm:$0xff]
    %v3967 = vld [vmem:[#allocation22 + $0xb54] sm:$0xff]
    %v3968 = vld [vmem:[#allocation22 + $0xb5c] sm:$0xf]
    %v3969 = vld [vmem:[#allocation22 + $0xb60] sm:$0xff]
    %v3970 = vld [vmem:[#allocation22 + $0xb68] sm:$0xff]
    %v3971 = vld [vmem:[#allocation22 + $0xb70] sm:$0xff]
    %v3972 = vld [vmem:[#allocation22 + $0xb78] sm:$0xf]
    %v3973 = vld [vmem:[#allocation22 + $0xb7c] sm:$0xff]
    %v3974 = vld [vmem:[#allocation22 + $0xb84] sm:$0xff]
    %v3975 = vld [vmem:[#allocation22 + $0xb8c] sm:$0xff]
    %v3976 = vld [vmem:[#allocation22 + $0xb94] sm:$0xf]
    %v3977 = vld [vmem:[#allocation22 + $0xb98] sm:$0xff]
    %v3978 = vld [vmem:[#allocation22 + $0xba0] sm:$0xff]
    %v3979 = vld [vmem:[#allocation22 + $0xba8] sm:$0xff]
    %v3980 = vld [vmem:[#allocation22 + $0xbb0] sm:$0xf]
    %v3981 = vld [vmem:[#allocation22 + $0xbb4] sm:$0xff]
    %v3982 = vld [vmem:[#allocation22 + $0xbbc] sm:$0xff]
    %v3983 = vld [vmem:[#allocation22 + $0xbc4] sm:$0xff]
    %v3984 = vld [vmem:[#allocation22 + $0xbcc] sm:$0xf]
    %v3985 = vld [vmem:[#allocation22 + $0xbd0] sm:$0xff]
    %v3986 = vld [vmem:[#allocation22 + $0xbd8] sm:$0xff]
    %v3987 = vld [vmem:[#allocation22 + $0xbe0] sm:$0xff]
    %v3988 = vld [vmem:[#allocation22 + $0xbe8] sm:$0xf]
    %v3989 = vld [vmem:[#allocation22 + $0xbec] sm:$0xff]
    %v3990 = vld [vmem:[#allocation22 + $0xbf4] sm:$0xff]
    %v3991 = vld [vmem:[#allocation22 + $0xbfc] sm:$0xff]
    %v3992 = vld [vmem:[#allocation22 + $0xc04] sm:$0xf]
    %v3993 = vld [vmem:[#allocation22 + $0xc08] sm:$0xff]
    %v3994 = vld [vmem:[#allocation22 + $0xc10] sm:$0xff]
    %v3995 = vld [vmem:[#allocation22 + $0xc18] sm:$0xff]
    %v3996 = vld [vmem:[#allocation22 + $0xc20] sm:$0xf]
    %v3997 = vld [vmem:[#allocation22 + $0xc24] sm:$0xff]
    %v3998 = vld [vmem:[#allocation22 + $0xc2c] sm:$0xff]
    %v3999 = vld [vmem:[#allocation22 + $0xc34] sm:$0xff]
    %v4000 = vld [vmem:[#allocation22 + $0xc3c] sm:$0xf]
    %v4001 = vld [vmem:[#allocation22 + $0xc40] sm:$0xff]
    %v4002 = vld [vmem:[#allocation22 + $0xc48] sm:$0xff]
    %v4003 = vld [vmem:[#allocation22 + $0xc50] sm:$0xff]
    %v4004 = vld [vmem:[#allocation22 + $0xc58] sm:$0xf]
    %v4005 = vld [vmem:[#allocation22 + $0xc5c] sm:$0xff]
    %v4006 = vld [vmem:[#allocation22 + $0xc64] sm:$0xff]
    %v4007 = vld [vmem:[#allocation22 + $0xc6c] sm:$0xff]
    %v4008 = vld [vmem:[#allocation22 + $0xc74] sm:$0xf]
    %v4009 = vld [vmem:[#allocation22 + $0xc78] sm:$0xff]
    %v4010 = vld [vmem:[#allocation22 + $0xc80] sm:$0xff]
    %v4011 = vld [vmem:[#allocation22 + $0xc88] sm:$0xff]
    %v4012 = vld [vmem:[#allocation22 + $0xc90] sm:$0xf]
    %v4013 = vld [vmem:[#allocation22 + $0xc94] sm:$0xff]
    %v4014 = vld [vmem:[#allocation22 + $0xc9c] sm:$0xff]
    %v4015 = vld [vmem:[#allocation22 + $0xca4] sm:$0xff]
    %v4016 = vld [vmem:[#allocation22 + $0xcac] sm:$0xf]
    %v4017 = vld [vmem:[#allocation22 + $0xcb0] sm:$0xff]
    %v4018 = vld [vmem:[#allocation22 + $0xcb8] sm:$0xff]
    %v4019 = vld [vmem:[#allocation22 + $0xcc0] sm:$0xff]
    %v4020 = vld [vmem:[#allocation22 + $0xcc8] sm:$0xf]
    %v4021 = vld [vmem:[#allocation22 + $0xccc] sm:$0xff]
    %v4022 = vld [vmem:[#allocation22 + $0xcd4] sm:$0xff]
    %v4023 = vld [vmem:[#allocation22 + $0xcdc] sm:$0xff]
    %v4024 = vld [vmem:[#allocation22 + $0xce4] sm:$0xf]
    %v4025 = vld [vmem:[#allocation22 + $0xce8] sm:$0xff]
    %v4026 = vld [vmem:[#allocation22 + $0xcf0] sm:$0xff]
    %v4027 = vld [vmem:[#allocation22 + $0xcf8] sm:$0xff]
    %v4028 = vld [vmem:[#allocation22 + $0xd00] sm:$0xf]
    %v4029 = vld [vmem:[#allocation22 + $0xd04] sm:$0xff]
    %v4030 = vld [vmem:[#allocation22 + $0xd0c] sm:$0xff]
    %v4031 = vld [vmem:[#allocation22 + $0xd14] sm:$0xff]
    %v4032 = vld [vmem:[#allocation22 + $0xd1c] sm:$0xf]
    %v4033 = vld [vmem:[#allocation22 + $0xd20] sm:$0xff]
    %v4034 = vld [vmem:[#allocation22 + $0xd28] sm:$0xff]
    %v4035 = vld [vmem:[#allocation22 + $0xd30] sm:$0xff]
    %v4036 = vld [vmem:[#allocation22 + $0xd38] sm:$0xf]
    %v4037 = vld [vmem:[#allocation22 + $0xd3c] sm:$0xff]
    %v4038 = vld [vmem:[#allocation22 + $0xd44] sm:$0xff]
    %v4039 = vld [vmem:[#allocation22 + $0xd4c] sm:$0xff]
    %v4040 = vld [vmem:[#allocation22 + $0xd54] sm:$0xf]
    %v4041 = vld [vmem:[#allocation22 + $0xd58] sm:$0xff]
    %v4042 = vld [vmem:[#allocation22 + $0xd60] sm:$0xff]
    %v4043 = vld [vmem:[#allocation22 + $0xd68] sm:$0xff]
    %v4044 = vld [vmem:[#allocation22 + $0xd70] sm:$0xf]
    %v4045 = vld [vmem:[#allocation22 + $0xd74] sm:$0xff]
    %v4046 = vld [vmem:[#allocation22 + $0xd7c] sm:$0xff]
    %v4047 = vld [vmem:[#allocation22 + $0xd84] sm:$0xff]
    %v4048 = vld [vmem:[#allocation22 + $0xd8c] sm:$0xf]
    %v4049 = vld [vmem:[#allocation22 + $0xd90] sm:$0xff]
    %v4050 = vld [vmem:[#allocation22 + $0xd98] sm:$0xff]
    %v4051 = vld [vmem:[#allocation22 + $0xda0] sm:$0xff]
    %v4052 = vld [vmem:[#allocation22 + $0xda8] sm:$0xf]
    %v4053 = vld [vmem:[#allocation22 + $0xdac] sm:$0xff]
    %v4054 = vld [vmem:[#allocation22 + $0xdb4] sm:$0xff]
    %v4055 = vld [vmem:[#allocation22 + $0xdbc] sm:$0xff]
    %v4056 = vld [vmem:[#allocation22 + $0xdc4] sm:$0xf]
    %v4057 = vld [vmem:[#allocation22 + $0xdc8] sm:$0xff]
    %v4058 = vld [vmem:[#allocation22 + $0xdd0] sm:$0xff]
    %v4059 = vld [vmem:[#allocation22 + $0xdd8] sm:$0xff]
    %v4060 = vld [vmem:[#allocation22 + $0xde0] sm:$0xf]
    %v4061 = vld [vmem:[#allocation22 + $0xde4] sm:$0xff]
    %v4062 = vld [vmem:[#allocation22 + $0xdec] sm:$0xff]
    %v4063 = vld [vmem:[#allocation22 + $0xdf4] sm:$0xff]
    %v4064 = vld [vmem:[#allocation22 + $0xdfc] sm:$0xf]
    %v4065 = vld [vmem:[#allocation23] sm:$0xff]
    %v4067 = vperm.slane %v4065, 0
    %v4068 = vperm.slane %v4065, 1
    %v4069 = vperm.slane %v4065, 2
    %v4070 = vperm.slane %v4065, 3
    %v4071 = vperm.slane %v4065, 4
    %v4072 = vperm.slane %v4065, 5
    %v4073 = vperm.slane %v4065, 6
    %v4593 = vunpack.c.l.b16 %v3553
    %v4594 = vunpack.c.h.b16 %v3553
    %v4595 = vunpack.c.l.b16 %v3554
    %v4596 = vunpack.c.h.b16 %v3554
    %v4597 = vunpack.c.l.b16 %v3555
    %v4598 = vunpack.c.h.b16 %v3555
    %v4599 = vunpack.c.l.b16 %v3556
    %v4600 = vunpack.c.l.b16 %v3557
    %v4601 = vunpack.c.h.b16 %v3557
    %v4602 = vunpack.c.l.b16 %v3558
    %v4603 = vunpack.c.h.b16 %v3558
    %v4604 = vunpack.c.l.b16 %v3559
    %v4605 = vunpack.c.h.b16 %v3559
    %v4606 = vunpack.c.l.b16 %v3560
    %v4607 = vunpack.c.l.b16 %v3561
    %v4608 = vunpack.c.h.b16 %v3561
    %v4609 = vunpack.c.l.b16 %v3562
    %v4610 = vunpack.c.h.b16 %v3562
    %v4611 = vunpack.c.l.b16 %v3563
    %v4612 = vunpack.c.h.b16 %v3563
    %v4613 = vunpack.c.l.b16 %v3564
    %v4614 = vunpack.c.l.b16 %v3565
    %v4615 = vunpack.c.h.b16 %v3565
    %v4616 = vunpack.c.l.b16 %v3566
    %v4617 = vunpack.c.h.b16 %v3566
    %v4618 = vunpack.c.l.b16 %v3567
    %v4619 = vunpack.c.h.b16 %v3567
    %v4620 = vunpack.c.l.b16 %v3568
    %v4621 = vunpack.c.l.b16 %v3569
    %v4622 = vunpack.c.h.b16 %v3569
    %v4623 = vunpack.c.l.b16 %v3570
    %v4624 = vunpack.c.h.b16 %v3570
    %v4625 = vunpack.c.l.b16 %v3571
    %v4626 = vunpack.c.h.b16 %v3571
    %v4627 = vunpack.c.l.b16 %v3572
    %v4628 = vunpack.c.l.b16 %v3573
    %v4629 = vunpack.c.h.b16 %v3573
    %v4630 = vunpack.c.l.b16 %v3574
    %v4631 = vunpack.c.h.b16 %v3574
    %v4632 = vunpack.c.l.b16 %v3575
    %v4633 = vunpack.c.h.b16 %v3575
    %v4634 = vunpack.c.l.b16 %v3576
    %v4635 = vunpack.c.l.b16 %v3577
    %v4636 = vunpack.c.h.b16 %v3577
    %v4637 = vunpack.c.l.b16 %v3578
    %v4638 = vunpack.c.h.b16 %v3578
    %v4639 = vunpack.c.l.b16 %v3579
    %v4640 = vunpack.c.h.b16 %v3579
    %v4641 = vunpack.c.l.b16 %v3580
    %v4642 = vunpack.c.l.b16 %v3581
    %v4643 = vunpack.c.h.b16 %v3581
    %v4644 = vunpack.c.l.b16 %v3582
    %v4645 = vunpack.c.h.b16 %v3582
    %v4646 = vunpack.c.l.b16 %v3583
    %v4647 = vunpack.c.h.b16 %v3583
    %v4648 = vunpack.c.l.b16 %v3584
    %v4649 = vunpack.c.l.b16 %v3585
    %v4650 = vunpack.c.h.b16 %v3585
    %v4651 = vunpack.c.l.b16 %v3586
    %v4652 = vunpack.c.h.b16 %v3586
    %v4653 = vunpack.c.l.b16 %v3587
    %v4654 = vunpack.c.h.b16 %v3587
    %v4655 = vunpack.c.l.b16 %v3588
    %v4656 = vunpack.c.l.b16 %v3589
    %v4657 = vunpack.c.h.b16 %v3589
    %v4658 = vunpack.c.l.b16 %v3590
    %v4659 = vunpack.c.h.b16 %v3590
    %v4660 = vunpack.c.l.b16 %v3591
    %v4661 = vunpack.c.h.b16 %v3591
    %v4662 = vunpack.c.l.b16 %v3592
    %v4663 = vunpack.c.l.b16 %v3593
    %v4664 = vunpack.c.h.b16 %v3593
    %v4665 = vunpack.c.l.b16 %v3594
    %v4666 = vunpack.c.h.b16 %v3594
    %v4667 = vunpack.c.l.b16 %v3595
    %v4668 = vunpack.c.h.b16 %v3595
    %v4669 = vunpack.c.l.b16 %v3596
    %v4670 = vunpack.c.l.b16 %v3597
    %v4671 = vunpack.c.h.b16 %v3597
    %v4672 = vunpack.c.l.b16 %v3598
    %v4673 = vunpack.c.h.b16 %v3598
    %v4674 = vunpack.c.l.b16 %v3599
    %v4675 = vunpack.c.h.b16 %v3599
    %v4676 = vunpack.c.l.b16 %v3600
    %v4677 = vunpack.c.l.b16 %v3601
    %v4678 = vunpack.c.h.b16 %v3601
    %v4679 = vunpack.c.l.b16 %v3602
    %v4680 = vunpack.c.h.b16 %v3602
    %v4681 = vunpack.c.l.b16 %v3603
    %v4682 = vunpack.c.h.b16 %v3603
    %v4683 = vunpack.c.l.b16 %v3604
    %v4684 = vunpack.c.l.b16 %v3605
    %v4685 = vunpack.c.h.b16 %v3605
    %v4686 = vunpack.c.l.b16 %v3606
    %v4687 = vunpack.c.h.b16 %v3606
    %v4688 = vunpack.c.l.b16 %v3607
    %v4689 = vunpack.c.h.b16 %v3607
    %v4690 = vunpack.c.l.b16 %v3608
    %v4691 = vunpack.c.l.b16 %v3609
    %v4692 = vunpack.c.h.b16 %v3609
    %v4693 = vunpack.c.l.b16 %v3610
    %v4694 = vunpack.c.h.b16 %v3610
    %v4695 = vunpack.c.l.b16 %v3611
    %v4696 = vunpack.c.h.b16 %v3611
    %v4697 = vunpack.c.l.b16 %v3612
    %v4698 = vunpack.c.l.b16 %v3613
    %v4699 = vunpack.c.h.b16 %v3613
    %v4700 = vunpack.c.l.b16 %v3614
    %v4701 = vunpack.c.h.b16 %v3614
    %v4702 = vunpack.c.l.b16 %v3615
    %v4703 = vunpack.c.h.b16 %v3615
    %v4704 = vunpack.c.l.b16 %v3616
    %v4705 = vunpack.c.l.b16 %v3617
    %v4706 = vunpack.c.h.b16 %v3617
    %v4707 = vunpack.c.l.b16 %v3618
    %v4708 = vunpack.c.h.b16 %v3618
    %v4709 = vunpack.c.l.b16 %v3619
    %v4710 = vunpack.c.h.b16 %v3619
    %v4711 = vunpack.c.l.b16 %v3620
    %v4712 = vunpack.c.l.b16 %v3621
    %v4713 = vunpack.c.h.b16 %v3621
    %v4714 = vunpack.c.l.b16 %v3622
    %v4715 = vunpack.c.h.b16 %v3622
    %v4716 = vunpack.c.l.b16 %v3623
    %v4717 = vunpack.c.h.b16 %v3623
    %v4718 = vunpack.c.l.b16 %v3624
    %v4719 = vunpack.c.l.b16 %v3625
    %v4720 = vunpack.c.h.b16 %v3625
    %v4721 = vunpack.c.l.b16 %v3626
    %v4722 = vunpack.c.h.b16 %v3626
    %v4723 = vunpack.c.l.b16 %v3627
    %v4724 = vunpack.c.h.b16 %v3627
    %v4725 = vunpack.c.l.b16 %v3628
    %v4726 = vunpack.c.l.b16 %v3629
    %v4727 = vunpack.c.h.b16 %v3629
    %v4728 = vunpack.c.l.b16 %v3630
    %v4729 = vunpack.c.h.b16 %v3630
    %v4730 = vunpack.c.l.b16 %v3631
    %v4731 = vunpack.c.h.b16 %v3631
    %v4732 = vunpack.c.l.b16 %v3632
    %v4733 = vunpack.c.l.b16 %v3633
    %v4734 = vunpack.c.h.b16 %v3633
    %v4735 = vunpack.c.l.b16 %v3634
    %v4736 = vunpack.c.h.b16 %v3634
    %v4737 = vunpack.c.l.b16 %v3635
    %v4738 = vunpack.c.h.b16 %v3635
    %v4739 = vunpack.c.l.b16 %v3636
    %v4740 = vunpack.c.l.b16 %v3637
    %v4741 = vunpack.c.h.b16 %v3637
    %v4742 = vunpack.c.l.b16 %v3638
    %v4743 = vunpack.c.h.b16 %v3638
    %v4744 = vunpack.c.l.b16 %v3639
    %v4745 = vunpack.c.h.b16 %v3639
    %v4746 = vunpack.c.l.b16 %v3640
    %v4747 = vunpack.c.l.b16 %v3641
    %v4748 = vunpack.c.h.b16 %v3641
    %v4749 = vunpack.c.l.b16 %v3642
    %v4750 = vunpack.c.h.b16 %v3642
    %v4751 = vunpack.c.l.b16 %v3643
    %v4752 = vunpack.c.h.b16 %v3643
    %v4753 = vunpack.c.l.b16 %v3644
    %v4754 = vunpack.c.l.b16 %v3645
    %v4755 = vunpack.c.h.b16 %v3645
    %v4756 = vunpack.c.l.b16 %v3646
    %v4757 = vunpack.c.h.b16 %v3646
    %v4758 = vunpack.c.l.b16 %v3647
    %v4759 = vunpack.c.h.b16 %v3647
    %v4760 = vunpack.c.l.b16 %v3648
    %v4761 = vunpack.c.l.b16 %v3649
    %v4762 = vunpack.c.h.b16 %v3649
    %v4763 = vunpack.c.l.b16 %v3650
    %v4764 = vunpack.c.h.b16 %v3650
    %v4765 = vunpack.c.l.b16 %v3651
    %v4766 = vunpack.c.h.b16 %v3651
    %v4767 = vunpack.c.l.b16 %v3652
    %v4768 = vunpack.c.l.b16 %v3653
    %v4769 = vunpack.c.h.b16 %v3653
    %v4770 = vunpack.c.l.b16 %v3654
    %v4771 = vunpack.c.h.b16 %v3654
    %v4772 = vunpack.c.l.b16 %v3655
    %v4773 = vunpack.c.h.b16 %v3655
    %v4774 = vunpack.c.l.b16 %v3656
    %v4775 = vunpack.c.l.b16 %v3657
    %v4776 = vunpack.c.h.b16 %v3657
    %v4777 = vunpack.c.l.b16 %v3658
    %v4778 = vunpack.c.h.b16 %v3658
    %v4779 = vunpack.c.l.b16 %v3659
    %v4780 = vunpack.c.h.b16 %v3659
    %v4781 = vunpack.c.l.b16 %v3660
    %v4782 = vunpack.c.l.b16 %v3661
    %v4783 = vunpack.c.h.b16 %v3661
    %v4784 = vunpack.c.l.b16 %v3662
    %v4785 = vunpack.c.h.b16 %v3662
    %v4786 = vunpack.c.l.b16 %v3663
    %v4787 = vunpack.c.h.b16 %v3663
    %v4788 = vunpack.c.l.b16 %v3664
    %v4789 = vunpack.c.l.b16 %v3665
    %v4790 = vunpack.c.h.b16 %v3665
    %v4791 = vunpack.c.l.b16 %v3666
    %v4792 = vunpack.c.h.b16 %v3666
    %v4793 = vunpack.c.l.b16 %v3667
    %v4794 = vunpack.c.h.b16 %v3667
    %v4795 = vunpack.c.l.b16 %v3668
    %v4796 = vunpack.c.l.b16 %v3669
    %v4797 = vunpack.c.h.b16 %v3669
    %v4798 = vunpack.c.l.b16 %v3670
    %v4799 = vunpack.c.h.b16 %v3670
    %v4800 = vunpack.c.l.b16 %v3671
    %v4801 = vunpack.c.h.b16 %v3671
    %v4802 = vunpack.c.l.b16 %v3672
    %v4803 = vunpack.c.l.b16 %v3673
    %v4804 = vunpack.c.h.b16 %v3673
    %v4805 = vunpack.c.l.b16 %v3674
    %v4806 = vunpack.c.h.b16 %v3674
    %v4807 = vunpack.c.l.b16 %v3675
    %v4808 = vunpack.c.h.b16 %v3675
    %v4809 = vunpack.c.l.b16 %v3676
    %v4810 = vunpack.c.l.b16 %v3677
    %v4811 = vunpack.c.h.b16 %v3677
    %v4812 = vunpack.c.l.b16 %v3678
    %v4813 = vunpack.c.h.b16 %v3678
    %v4814 = vunpack.c.l.b16 %v3679
    %v4815 = vunpack.c.h.b16 %v3679
    %v4816 = vunpack.c.l.b16 %v3680
    %v4817 = vunpack.c.l.b16 %v3681
    %v4818 = vunpack.c.h.b16 %v3681
    %v4819 = vunpack.c.l.b16 %v3682
    %v4820 = vunpack.c.h.b16 %v3682
    %v4821 = vunpack.c.l.b16 %v3683
    %v4822 = vunpack.c.h.b16 %v3683
    %v4823 = vunpack.c.l.b16 %v3684
    %v4824 = vunpack.c.l.b16 %v3685
    %v4825 = vunpack.c.h.b16 %v3685
    %v4826 = vunpack.c.l.b16 %v3686
    %v4827 = vunpack.c.h.b16 %v3686
    %v4828 = vunpack.c.l.b16 %v3687
    %v4829 = vunpack.c.h.b16 %v3687
    %v4830 = vunpack.c.l.b16 %v3688
    %v4831 = vunpack.c.l.b16 %v3689
    %v4832 = vunpack.c.h.b16 %v3689
    %v4833 = vunpack.c.l.b16 %v3690
    %v4834 = vunpack.c.h.b16 %v3690
    %v4835 = vunpack.c.l.b16 %v3691
    %v4836 = vunpack.c.h.b16 %v3691
    %v4837 = vunpack.c.l.b16 %v3692
    %v4838 = vunpack.c.l.b16 %v3693
    %v4839 = vunpack.c.h.b16 %v3693
    %v4840 = vunpack.c.l.b16 %v3694
    %v4841 = vunpack.c.h.b16 %v3694
    %v4842 = vunpack.c.l.b16 %v3695
    %v4843 = vunpack.c.h.b16 %v3695
    %v4844 = vunpack.c.l.b16 %v3696
    %v4845 = vunpack.c.l.b16 %v3697
    %v4846 = vunpack.c.h.b16 %v3697
    %v4847 = vunpack.c.l.b16 %v3698
    %v4848 = vunpack.c.h.b16 %v3698
    %v4849 = vunpack.c.l.b16 %v3699
    %v4850 = vunpack.c.h.b16 %v3699
    %v4851 = vunpack.c.l.b16 %v3700
    %v4852 = vunpack.c.l.b16 %v3701
    %v4853 = vunpack.c.h.b16 %v3701
    %v4854 = vunpack.c.l.b16 %v3702
    %v4855 = vunpack.c.h.b16 %v3702
    %v4856 = vunpack.c.l.b16 %v3703
    %v4857 = vunpack.c.h.b16 %v3703
    %v4858 = vunpack.c.l.b16 %v3704
    %v4859 = vunpack.c.l.b16 %v3705
    %v4860 = vunpack.c.h.b16 %v3705
    %v4861 = vunpack.c.l.b16 %v3706
    %v4862 = vunpack.c.h.b16 %v3706
    %v4863 = vunpack.c.l.b16 %v3707
    %v4864 = vunpack.c.h.b16 %v3707
    %v4865 = vunpack.c.l.b16 %v3708
    %v4866 = vunpack.c.l.b16 %v3709
    %v4867 = vunpack.c.h.b16 %v3709
    %v4868 = vunpack.c.l.b16 %v3710
    %v4869 = vunpack.c.h.b16 %v3710
    %v4870 = vunpack.c.l.b16 %v3711
    %v4871 = vunpack.c.h.b16 %v3711
    %v4872 = vunpack.c.l.b16 %v3712
    %v4873 = vunpack.c.l.b16 %v3713
    %v4874 = vunpack.c.h.b16 %v3713
    %v4875 = vunpack.c.l.b16 %v3714
    %v4876 = vunpack.c.h.b16 %v3714
    %v4877 = vunpack.c.l.b16 %v3715
    %v4878 = vunpack.c.h.b16 %v3715
    %v4879 = vunpack.c.l.b16 %v3716
    %v4880 = vunpack.c.l.b16 %v3717
    %v4881 = vunpack.c.h.b16 %v3717
    %v4882 = vunpack.c.l.b16 %v3718
    %v4883 = vunpack.c.h.b16 %v3718
    %v4884 = vunpack.c.l.b16 %v3719
    %v4885 = vunpack.c.h.b16 %v3719
    %v4886 = vunpack.c.l.b16 %v3720
    %v4887 = vunpack.c.l.b16 %v3721
    %v4888 = vunpack.c.h.b16 %v3721
    %v4889 = vunpack.c.l.b16 %v3722
    %v4890 = vunpack.c.h.b16 %v3722
    %v4891 = vunpack.c.l.b16 %v3723
    %v4892 = vunpack.c.h.b16 %v3723
    %v4893 = vunpack.c.l.b16 %v3724
    %v4894 = vunpack.c.l.b16 %v3725
    %v4895 = vunpack.c.h.b16 %v3725
    %v4896 = vunpack.c.l.b16 %v3726
    %v4897 = vunpack.c.h.b16 %v3726
    %v4898 = vunpack.c.l.b16 %v3727
    %v4899 = vunpack.c.h.b16 %v3727
    %v4900 = vunpack.c.l.b16 %v3728
    %v4901 = vunpack.c.l.b16 %v3729
    %v4902 = vunpack.c.h.b16 %v3729
    %v4903 = vunpack.c.l.b16 %v3730
    %v4904 = vunpack.c.h.b16 %v3730
    %v4905 = vunpack.c.l.b16 %v3731
    %v4906 = vunpack.c.h.b16 %v3731
    %v4907 = vunpack.c.l.b16 %v3732
    %v4908 = vunpack.c.l.b16 %v3733
    %v4909 = vunpack.c.h.b16 %v3733
    %v4910 = vunpack.c.l.b16 %v3734
    %v4911 = vunpack.c.h.b16 %v3734
    %v4912 = vunpack.c.l.b16 %v3735
    %v4913 = vunpack.c.h.b16 %v3735
    %v4914 = vunpack.c.l.b16 %v3736
    %v4915 = vunpack.c.l.b16 %v3737
    %v4916 = vunpack.c.h.b16 %v3737
    %v4917 = vunpack.c.l.b16 %v3738
    %v4918 = vunpack.c.h.b16 %v3738
    %v4919 = vunpack.c.l.b16 %v3739
    %v4920 = vunpack.c.h.b16 %v3739
    %v4921 = vunpack.c.l.b16 %v3740
    %v4922 = vunpack.c.l.b16 %v3741
    %v4923 = vunpack.c.h.b16 %v3741
    %v4924 = vunpack.c.l.b16 %v3742
    %v4925 = vunpack.c.h.b16 %v3742
    %v4926 = vunpack.c.l.b16 %v3743
    %v4927 = vunpack.c.h.b16 %v3743
    %v4928 = vunpack.c.l.b16 %v3744
    %v4929 = vunpack.c.l.b16 %v3745
    %v4930 = vunpack.c.h.b16 %v3745
    %v4931 = vunpack.c.l.b16 %v3746
    %v4932 = vunpack.c.h.b16 %v3746
    %v4933 = vunpack.c.l.b16 %v3747
    %v4934 = vunpack.c.h.b16 %v3747
    %v4935 = vunpack.c.l.b16 %v3748
    %v4936 = vunpack.c.l.b16 %v3749
    %v4937 = vunpack.c.h.b16 %v3749
    %v4938 = vunpack.c.l.b16 %v3750
    %v4939 = vunpack.c.h.b16 %v3750
    %v4940 = vunpack.c.l.b16 %v3751
    %v4941 = vunpack.c.h.b16 %v3751
    %v4942 = vunpack.c.l.b16 %v3752
    %v4943 = vunpack.c.l.b16 %v3753
    %v4944 = vunpack.c.h.b16 %v3753
    %v4945 = vunpack.c.l.b16 %v3754
    %v4946 = vunpack.c.h.b16 %v3754
    %v4947 = vunpack.c.l.b16 %v3755
    %v4948 = vunpack.c.h.b16 %v3755
    %v4949 = vunpack.c.l.b16 %v3756
    %v4950 = vunpack.c.l.b16 %v3757
    %v4951 = vunpack.c.h.b16 %v3757
    %v4952 = vunpack.c.l.b16 %v3758
    %v4953 = vunpack.c.h.b16 %v3758
    %v4954 = vunpack.c.l.b16 %v3759
    %v4955 = vunpack.c.h.b16 %v3759
    %v4956 = vunpack.c.l.b16 %v3760
    %v4957 = vunpack.c.l.b16 %v3761
    %v4958 = vunpack.c.h.b16 %v3761
    %v4959 = vunpack.c.l.b16 %v3762
    %v4960 = vunpack.c.h.b16 %v3762
    %v4961 = vunpack.c.l.b16 %v3763
    %v4962 = vunpack.c.h.b16 %v3763
    %v4963 = vunpack.c.l.b16 %v3764
    %v4964 = vunpack.c.l.b16 %v3765
    %v4965 = vunpack.c.h.b16 %v3765
    %v4966 = vunpack.c.l.b16 %v3766
    %v4967 = vunpack.c.h.b16 %v3766
    %v4968 = vunpack.c.l.b16 %v3767
    %v4969 = vunpack.c.h.b16 %v3767
    %v4970 = vunpack.c.l.b16 %v3768
    %v4971 = vunpack.c.l.b16 %v3769
    %v4972 = vunpack.c.h.b16 %v3769
    %v4973 = vunpack.c.l.b16 %v3770
    %v4974 = vunpack.c.h.b16 %v3770
    %v4975 = vunpack.c.l.b16 %v3771
    %v4976 = vunpack.c.h.b16 %v3771
    %v4977 = vunpack.c.l.b16 %v3772
    %v4978 = vunpack.c.l.b16 %v3773
    %v4979 = vunpack.c.h.b16 %v3773
    %v4980 = vunpack.c.l.b16 %v3774
    %v4981 = vunpack.c.h.b16 %v3774
    %v4982 = vunpack.c.l.b16 %v3775
    %v4983 = vunpack.c.h.b16 %v3775
    %v4984 = vunpack.c.l.b16 %v3776
    %v4985 = vunpack.c.l.b16 %v3777
    %v4986 = vunpack.c.h.b16 %v3777
    %v4987 = vunpack.c.l.b16 %v3778
    %v4988 = vunpack.c.h.b16 %v3778
    %v4989 = vunpack.c.l.b16 %v3779
    %v4990 = vunpack.c.h.b16 %v3779
    %v4991 = vunpack.c.l.b16 %v3780
    %v4992 = vunpack.c.l.b16 %v3781
    %v4993 = vunpack.c.h.b16 %v3781
    %v4994 = vunpack.c.l.b16 %v3782
    %v4995 = vunpack.c.h.b16 %v3782
    %v4996 = vunpack.c.l.b16 %v3783
    %v4997 = vunpack.c.h.b16 %v3783
    %v4998 = vunpack.c.l.b16 %v3784
    %v4999 = vunpack.c.l.b16 %v3785
    %v5000 = vunpack.c.h.b16 %v3785
    %v5001 = vunpack.c.l.b16 %v3786
    %v5002 = vunpack.c.h.b16 %v3786
    %v5003 = vunpack.c.l.b16 %v3787
    %v5004 = vunpack.c.h.b16 %v3787
    %v5005 = vunpack.c.l.b16 %v3788
    %v5006 = vunpack.c.l.b16 %v3789
    %v5007 = vunpack.c.h.b16 %v3789
    %v5008 = vunpack.c.l.b16 %v3790
    %v5009 = vunpack.c.h.b16 %v3790
    %v5010 = vunpack.c.l.b16 %v3791
    %v5011 = vunpack.c.h.b16 %v3791
    %v5012 = vunpack.c.l.b16 %v3792
    %v5013 = vunpack.c.l.b16 %v3793
    %v5014 = vunpack.c.h.b16 %v3793
    %v5015 = vunpack.c.l.b16 %v3794
    %v5016 = vunpack.c.h.b16 %v3794
    %v5017 = vunpack.c.l.b16 %v3795
    %v5018 = vunpack.c.h.b16 %v3795
    %v5019 = vunpack.c.l.b16 %v3796
    %v5020 = vunpack.c.l.b16 %v3797
    %v5021 = vunpack.c.h.b16 %v3797
    %v5022 = vunpack.c.l.b16 %v3798
    %v5023 = vunpack.c.h.b16 %v3798
    %v5024 = vunpack.c.l.b16 %v3799
    %v5025 = vunpack.c.h.b16 %v3799
    %v5026 = vunpack.c.l.b16 %v3800
    %v5027 = vunpack.c.l.b16 %v3801
    %v5028 = vunpack.c.h.b16 %v3801
    %v5029 = vunpack.c.l.b16 %v3802
    %v5030 = vunpack.c.h.b16 %v3802
    %v5031 = vunpack.c.l.b16 %v3803
    %v5032 = vunpack.c.h.b16 %v3803
    %v5033 = vunpack.c.l.b16 %v3804
    %v5034 = vunpack.c.l.b16 %v3805
    %v5035 = vunpack.c.h.b16 %v3805
    %v5036 = vunpack.c.l.b16 %v3806
    %v5037 = vunpack.c.h.b16 %v3806
    %v5038 = vunpack.c.l.b16 %v3807
    %v5039 = vunpack.c.h.b16 %v3807
    %v5040 = vunpack.c.l.b16 %v3808
    %v5041 = vunpack.c.l.b16 %v3809
    %v5042 = vunpack.c.h.b16 %v3809
    %v5043 = vunpack.c.l.b16 %v3810
    %v5044 = vunpack.c.h.b16 %v3810
    %v5045 = vunpack.c.l.b16 %v3811
    %v5046 = vunpack.c.h.b16 %v3811
    %v5047 = vunpack.c.l.b16 %v3812
    %v5048 = vunpack.c.l.b16 %v3813
    %v5049 = vunpack.c.h.b16 %v3813
    %v5050 = vunpack.c.l.b16 %v3814
    %v5051 = vunpack.c.h.b16 %v3814
    %v5052 = vunpack.c.l.b16 %v3815
    %v5053 = vunpack.c.h.b16 %v3815
    %v5054 = vunpack.c.l.b16 %v3816
    %v5055 = vunpack.c.l.b16 %v3817
    %v5056 = vunpack.c.h.b16 %v3817
    %v5057 = vunpack.c.l.b16 %v3818
    %v5058 = vunpack.c.h.b16 %v3818
    %v5059 = vunpack.c.l.b16 %v3819
    %v5060 = vunpack.c.h.b16 %v3819
    %v5061 = vunpack.c.l.b16 %v3820
    %v5062 = vunpack.c.l.b16 %v3821
    %v5063 = vunpack.c.h.b16 %v3821
    %v5064 = vunpack.c.l.b16 %v3822
    %v5065 = vunpack.c.h.b16 %v3822
    %v5066 = vunpack.c.l.b16 %v3823
    %v5067 = vunpack.c.h.b16 %v3823
    %v5068 = vunpack.c.l.b16 %v3824
    %v5069 = vunpack.c.l.b16 %v3825
    %v5070 = vunpack.c.h.b16 %v3825
    %v5071 = vunpack.c.l.b16 %v3826
    %v5072 = vunpack.c.h.b16 %v3826
    %v5073 = vunpack.c.l.b16 %v3827
    %v5074 = vunpack.c.h.b16 %v3827
    %v5075 = vunpack.c.l.b16 %v3828
    %v5076 = vunpack.c.l.b16 %v3829
    %v5077 = vunpack.c.h.b16 %v3829
    %v5078 = vunpack.c.l.b16 %v3830
    %v5079 = vunpack.c.h.b16 %v3830
    %v5080 = vunpack.c.l.b16 %v3831
    %v5081 = vunpack.c.h.b16 %v3831
    %v5082 = vunpack.c.l.b16 %v3832
    %v5083 = vunpack.c.l.b16 %v3833
    %v5084 = vunpack.c.h.b16 %v3833
    %v5085 = vunpack.c.l.b16 %v3834
    %v5086 = vunpack.c.h.b16 %v3834
    %v5087 = vunpack.c.l.b16 %v3835
    %v5088 = vunpack.c.h.b16 %v3835
    %v5089 = vunpack.c.l.b16 %v3836
    %v5090 = vunpack.c.l.b16 %v3837
    %v5091 = vunpack.c.h.b16 %v3837
    %v5092 = vunpack.c.l.b16 %v3838
    %v5093 = vunpack.c.h.b16 %v3838
    %v5094 = vunpack.c.l.b16 %v3839
    %v5095 = vunpack.c.h.b16 %v3839
    %v5096 = vunpack.c.l.b16 %v3840
    %v5097 = vunpack.c.l.b16 %v3841
    %v5098 = vunpack.c.h.b16 %v3841
    %v5099 = vunpack.c.l.b16 %v3842
    %v5100 = vunpack.c.h.b16 %v3842
    %v5101 = vunpack.c.l.b16 %v3843
    %v5102 = vunpack.c.h.b16 %v3843
    %v5103 = vunpack.c.l.b16 %v3844
    %v5104 = vunpack.c.l.b16 %v3845
    %v5105 = vunpack.c.h.b16 %v3845
    %v5106 = vunpack.c.l.b16 %v3846
    %v5107 = vunpack.c.h.b16 %v3846
    %v5108 = vunpack.c.l.b16 %v3847
    %v5109 = vunpack.c.h.b16 %v3847
    %v5110 = vunpack.c.l.b16 %v3848
    %v5111 = vunpack.c.l.b16 %v3849
    %v5112 = vunpack.c.h.b16 %v3849
    %v5113 = vunpack.c.l.b16 %v3850
    %v5114 = vunpack.c.h.b16 %v3850
    %v5115 = vunpack.c.l.b16 %v3851
    %v5116 = vunpack.c.h.b16 %v3851
    %v5117 = vunpack.c.l.b16 %v3852
    %v5118 = vunpack.c.l.b16 %v3853
    %v5119 = vunpack.c.h.b16 %v3853
    %v5120 = vunpack.c.l.b16 %v3854
    %v5121 = vunpack.c.h.b16 %v3854
    %v5122 = vunpack.c.l.b16 %v3855
    %v5123 = vunpack.c.h.b16 %v3855
    %v5124 = vunpack.c.l.b16 %v3856
    %v5125 = vunpack.c.l.b16 %v3857
    %v5126 = vunpack.c.h.b16 %v3857
    %v5127 = vunpack.c.l.b16 %v3858
    %v5128 = vunpack.c.h.b16 %v3858
    %v5129 = vunpack.c.l.b16 %v3859
    %v5130 = vunpack.c.h.b16 %v3859
    %v5131 = vunpack.c.l.b16 %v3860
    %v5132 = vunpack.c.l.b16 %v3861
    %v5133 = vunpack.c.h.b16 %v3861
    %v5134 = vunpack.c.l.b16 %v3862
    %v5135 = vunpack.c.h.b16 %v3862
    %v5136 = vunpack.c.l.b16 %v3863
    %v5137 = vunpack.c.h.b16 %v3863
    %v5138 = vunpack.c.l.b16 %v3864
    %v5139 = vunpack.c.l.b16 %v3865
    %v5140 = vunpack.c.h.b16 %v3865
    %v5141 = vunpack.c.l.b16 %v3866
    %v5142 = vunpack.c.h.b16 %v3866
    %v5143 = vunpack.c.l.b16 %v3867
    %v5144 = vunpack.c.h.b16 %v3867
    %v5145 = vunpack.c.l.b16 %v3868
    %v5146 = vunpack.c.l.b16 %v3869
    %v5147 = vunpack.c.h.b16 %v3869
    %v5148 = vunpack.c.l.b16 %v3870
    %v5149 = vunpack.c.h.b16 %v3870
    %v5150 = vunpack.c.l.b16 %v3871
    %v5151 = vunpack.c.h.b16 %v3871
    %v5152 = vunpack.c.l.b16 %v3872
    %v5153 = vunpack.c.l.b16 %v3873
    %v5154 = vunpack.c.h.b16 %v3873
    %v5155 = vunpack.c.l.b16 %v3874
    %v5156 = vunpack.c.h.b16 %v3874
    %v5157 = vunpack.c.l.b16 %v3875
    %v5158 = vunpack.c.h.b16 %v3875
    %v5159 = vunpack.c.l.b16 %v3876
    %v5160 = vunpack.c.l.b16 %v3877
    %v5161 = vunpack.c.h.b16 %v3877
    %v5162 = vunpack.c.l.b16 %v3878
    %v5163 = vunpack.c.h.b16 %v3878
    %v5164 = vunpack.c.l.b16 %v3879
    %v5165 = vunpack.c.h.b16 %v3879
    %v5166 = vunpack.c.l.b16 %v3880
    %v5167 = vunpack.c.l.b16 %v3881
    %v5168 = vunpack.c.h.b16 %v3881
    %v5169 = vunpack.c.l.b16 %v3882
    %v5170 = vunpack.c.h.b16 %v3882
    %v5171 = vunpack.c.l.b16 %v3883
    %v5172 = vunpack.c.h.b16 %v3883
    %v5173 = vunpack.c.l.b16 %v3884
    %v5174 = vunpack.c.l.b16 %v3885
    %v5175 = vunpack.c.h.b16 %v3885
    %v5176 = vunpack.c.l.b16 %v3886
    %v5177 = vunpack.c.h.b16 %v3886
    %v5178 = vunpack.c.l.b16 %v3887
    %v5179 = vunpack.c.h.b16 %v3887
    %v5180 = vunpack.c.l.b16 %v3888
    %v5181 = vunpack.c.l.b16 %v3889
    %v5182 = vunpack.c.h.b16 %v3889
    %v5183 = vunpack.c.l.b16 %v3890
    %v5184 = vunpack.c.h.b16 %v3890
    %v5185 = vunpack.c.l.b16 %v3891
    %v5186 = vunpack.c.h.b16 %v3891
    %v5187 = vunpack.c.l.b16 %v3892
    %v5188 = vunpack.c.l.b16 %v3893
    %v5189 = vunpack.c.h.b16 %v3893
    %v5190 = vunpack.c.l.b16 %v3894
    %v5191 = vunpack.c.h.b16 %v3894
    %v5192 = vunpack.c.l.b16 %v3895
    %v5193 = vunpack.c.h.b16 %v3895
    %v5194 = vunpack.c.l.b16 %v3896
    %v5195 = vunpack.c.l.b16 %v3897
    %v5196 = vunpack.c.h.b16 %v3897
    %v5197 = vunpack.c.l.b16 %v3898
    %v5198 = vunpack.c.h.b16 %v3898
    %v5199 = vunpack.c.l.b16 %v3899
    %v5200 = vunpack.c.h.b16 %v3899
    %v5201 = vunpack.c.l.b16 %v3900
    %v5202 = vunpack.c.l.b16 %v3901
    %v5203 = vunpack.c.h.b16 %v3901
    %v5204 = vunpack.c.l.b16 %v3902
    %v5205 = vunpack.c.h.b16 %v3902
    %v5206 = vunpack.c.l.b16 %v3903
    %v5207 = vunpack.c.h.b16 %v3903
    %v5208 = vunpack.c.l.b16 %v3904
    %v5209 = vunpack.c.l.b16 %v3905
    %v5210 = vunpack.c.h.b16 %v3905
    %v5211 = vunpack.c.l.b16 %v3906
    %v5212 = vunpack.c.h.b16 %v3906
    %v5213 = vunpack.c.l.b16 %v3907
    %v5214 = vunpack.c.h.b16 %v3907
    %v5215 = vunpack.c.l.b16 %v3908
    %v5216 = vunpack.c.l.b16 %v3909
    %v5217 = vunpack.c.h.b16 %v3909
    %v5218 = vunpack.c.l.b16 %v3910
    %v5219 = vunpack.c.h.b16 %v3910
    %v5220 = vunpack.c.l.b16 %v3911
    %v5221 = vunpack.c.h.b16 %v3911
    %v5222 = vunpack.c.l.b16 %v3912
    %v5223 = vunpack.c.l.b16 %v3913
    %v5224 = vunpack.c.h.b16 %v3913
    %v5225 = vunpack.c.l.b16 %v3914
    %v5226 = vunpack.c.h.b16 %v3914
    %v5227 = vunpack.c.l.b16 %v3915
    %v5228 = vunpack.c.h.b16 %v3915
    %v5229 = vunpack.c.l.b16 %v3916
    %v5230 = vunpack.c.l.b16 %v3917
    %v5231 = vunpack.c.h.b16 %v3917
    %v5232 = vunpack.c.l.b16 %v3918
    %v5233 = vunpack.c.h.b16 %v3918
    %v5234 = vunpack.c.l.b16 %v3919
    %v5235 = vunpack.c.h.b16 %v3919
    %v5236 = vunpack.c.l.b16 %v3920
    %v5237 = vunpack.c.l.b16 %v3921
    %v5238 = vunpack.c.h.b16 %v3921
    %v5239 = vunpack.c.l.b16 %v3922
    %v5240 = vunpack.c.h.b16 %v3922
    %v5241 = vunpack.c.l.b16 %v3923
    %v5242 = vunpack.c.h.b16 %v3923
    %v5243 = vunpack.c.l.b16 %v3924
    %v5244 = vunpack.c.l.b16 %v3925
    %v5245 = vunpack.c.h.b16 %v3925
    %v5246 = vunpack.c.l.b16 %v3926
    %v5247 = vunpack.c.h.b16 %v3926
    %v5248 = vunpack.c.l.b16 %v3927
    %v5249 = vunpack.c.h.b16 %v3927
    %v5250 = vunpack.c.l.b16 %v3928
    %v5251 = vunpack.c.l.b16 %v3929
    %v5252 = vunpack.c.h.b16 %v3929
    %v5253 = vunpack.c.l.b16 %v3930
    %v5254 = vunpack.c.h.b16 %v3930
    %v5255 = vunpack.c.l.b16 %v3931
    %v5256 = vunpack.c.h.b16 %v3931
    %v5257 = vunpack.c.l.b16 %v3932
    %v5258 = vunpack.c.l.b16 %v3933
    %v5259 = vunpack.c.h.b16 %v3933
    %v5260 = vunpack.c.l.b16 %v3934
    %v5261 = vunpack.c.h.b16 %v3934
    %v5262 = vunpack.c.l.b16 %v3935
    %v5263 = vunpack.c.h.b16 %v3935
    %v5264 = vunpack.c.l.b16 %v3936
    %v5265 = vunpack.c.l.b16 %v3937
    %v5266 = vunpack.c.h.b16 %v3937
    %v5267 = vunpack.c.l.b16 %v3938
    %v5268 = vunpack.c.h.b16 %v3938
    %v5269 = vunpack.c.l.b16 %v3939
    %v5270 = vunpack.c.h.b16 %v3939
    %v5271 = vunpack.c.l.b16 %v3940
    %v5272 = vunpack.c.l.b16 %v3941
    %v5273 = vunpack.c.h.b16 %v3941
    %v5274 = vunpack.c.l.b16 %v3942
    %v5275 = vunpack.c.h.b16 %v3942
    %v5276 = vunpack.c.l.b16 %v3943
    %v5277 = vunpack.c.h.b16 %v3943
    %v5278 = vunpack.c.l.b16 %v3944
    %v5279 = vunpack.c.l.b16 %v3945
    %v5280 = vunpack.c.h.b16 %v3945
    %v5281 = vunpack.c.l.b16 %v3946
    %v5282 = vunpack.c.h.b16 %v3946
    %v5283 = vunpack.c.l.b16 %v3947
    %v5284 = vunpack.c.h.b16 %v3947
    %v5285 = vunpack.c.l.b16 %v3948
    %v5286 = vunpack.c.l.b16 %v3949
    %v5287 = vunpack.c.h.b16 %v3949
    %v5288 = vunpack.c.l.b16 %v3950
    %v5289 = vunpack.c.h.b16 %v3950
    %v5290 = vunpack.c.l.b16 %v3951
    %v5291 = vunpack.c.h.b16 %v3951
    %v5292 = vunpack.c.l.b16 %v3952
    %v5293 = vunpack.c.l.b16 %v3953
    %v5294 = vunpack.c.h.b16 %v3953
    %v5295 = vunpack.c.l.b16 %v3954
    %v5296 = vunpack.c.h.b16 %v3954
    %v5297 = vunpack.c.l.b16 %v3955
    %v5298 = vunpack.c.h.b16 %v3955
    %v5299 = vunpack.c.l.b16 %v3956
    %v5300 = vunpack.c.l.b16 %v3957
    %v5301 = vunpack.c.h.b16 %v3957
    %v5302 = vunpack.c.l.b16 %v3958
    %v5303 = vunpack.c.h.b16 %v3958
    %v5304 = vunpack.c.l.b16 %v3959
    %v5305 = vunpack.c.h.b16 %v3959
    %v5306 = vunpack.c.l.b16 %v3960
    %v5307 = vunpack.c.l.b16 %v3961
    %v5308 = vunpack.c.h.b16 %v3961
    %v5309 = vunpack.c.l.b16 %v3962
    %v5310 = vunpack.c.h.b16 %v3962
    %v5311 = vunpack.c.l.b16 %v3963
    %v5312 = vunpack.c.h.b16 %v3963
    %v5313 = vunpack.c.l.b16 %v3964
    %v5314 = vunpack.c.l.b16 %v3965
    %v5315 = vunpack.c.h.b16 %v3965
    %v5316 = vunpack.c.l.b16 %v3966
    %v5317 = vunpack.c.h.b16 %v3966
    %v5318 = vunpack.c.l.b16 %v3967
    %v5319 = vunpack.c.h.b16 %v3967
    %v5320 = vunpack.c.l.b16 %v3968
    %v5321 = vunpack.c.l.b16 %v3969
    %v5322 = vunpack.c.h.b16 %v3969
    %v5323 = vunpack.c.l.b16 %v3970
    %v5324 = vunpack.c.h.b16 %v3970
    %v5325 = vunpack.c.l.b16 %v3971
    %v5326 = vunpack.c.h.b16 %v3971
    %v5327 = vunpack.c.l.b16 %v3972
    %v5328 = vunpack.c.l.b16 %v3973
    %v5329 = vunpack.c.h.b16 %v3973
    %v5330 = vunpack.c.l.b16 %v3974
    %v5331 = vunpack.c.h.b16 %v3974
    %v5332 = vunpack.c.l.b16 %v3975
    %v5333 = vunpack.c.h.b16 %v3975
    %v5334 = vunpack.c.l.b16 %v3976
    %v5335 = vunpack.c.l.b16 %v3977
    %v5336 = vunpack.c.h.b16 %v3977
    %v5337 = vunpack.c.l.b16 %v3978
    %v5338 = vunpack.c.h.b16 %v3978
    %v5339 = vunpack.c.l.b16 %v3979
    %v5340 = vunpack.c.h.b16 %v3979
    %v5341 = vunpack.c.l.b16 %v3980
    %v5342 = vunpack.c.l.b16 %v3981
    %v5343 = vunpack.c.h.b16 %v3981
    %v5344 = vunpack.c.l.b16 %v3982
    %v5345 = vunpack.c.h.b16 %v3982
    %v5346 = vunpack.c.l.b16 %v3983
    %v5347 = vunpack.c.h.b16 %v3983
    %v5348 = vunpack.c.l.b16 %v3984
    %v5349 = vunpack.c.l.b16 %v3985
    %v5350 = vunpack.c.h.b16 %v3985
    %v5351 = vunpack.c.l.b16 %v3986
    %v5352 = vunpack.c.h.b16 %v3986
    %v5353 = vunpack.c.l.b16 %v3987
    %v5354 = vunpack.c.h.b16 %v3987
    %v5355 = vunpack.c.l.b16 %v3988
    %v5356 = vunpack.c.l.b16 %v3989
    %v5357 = vunpack.c.h.b16 %v3989
    %v5358 = vunpack.c.l.b16 %v3990
    %v5359 = vunpack.c.h.b16 %v3990
    %v5360 = vunpack.c.l.b16 %v3991
    %v5361 = vunpack.c.h.b16 %v3991
    %v5362 = vunpack.c.l.b16 %v3992
    %v5363 = vunpack.c.l.b16 %v3993
    %v5364 = vunpack.c.h.b16 %v3993
    %v5365 = vunpack.c.l.b16 %v3994
    %v5366 = vunpack.c.h.b16 %v3994
    %v5367 = vunpack.c.l.b16 %v3995
    %v5368 = vunpack.c.h.b16 %v3995
    %v5369 = vunpack.c.l.b16 %v3996
    %v5370 = vunpack.c.l.b16 %v3997
    %v5371 = vunpack.c.h.b16 %v3997
    %v5372 = vunpack.c.l.b16 %v3998
    %v5373 = vunpack.c.h.b16 %v3998
    %v5374 = vunpack.c.l.b16 %v3999
    %v5375 = vunpack.c.h.b16 %v3999
    %v5376 = vunpack.c.l.b16 %v4000
    %v5377 = vunpack.c.l.b16 %v4001
    %v5378 = vunpack.c.h.b16 %v4001
    %v5379 = vunpack.c.l.b16 %v4002
    %v5380 = vunpack.c.h.b16 %v4002
    %v5381 = vunpack.c.l.b16 %v4003
    %v5382 = vunpack.c.h.b16 %v4003
    %v5383 = vunpack.c.l.b16 %v4004
    %v5384 = vunpack.c.l.b16 %v4005
    %v5385 = vunpack.c.h.b16 %v4005
    %v5386 = vunpack.c.l.b16 %v4006
    %v5387 = vunpack.c.h.b16 %v4006
    %v5388 = vunpack.c.l.b16 %v4007
    %v5389 = vunpack.c.h.b16 %v4007
    %v5390 = vunpack.c.l.b16 %v4008
    %v5391 = vunpack.c.l.b16 %v4009
    %v5392 = vunpack.c.h.b16 %v4009
    %v5393 = vunpack.c.l.b16 %v4010
    %v5394 = vunpack.c.h.b16 %v4010
    %v5395 = vunpack.c.l.b16 %v4011
    %v5396 = vunpack.c.h.b16 %v4011
    %v5397 = vunpack.c.l.b16 %v4012
    %v5398 = vunpack.c.l.b16 %v4013
    %v5399 = vunpack.c.h.b16 %v4013
    %v5400 = vunpack.c.l.b16 %v4014
    %v5401 = vunpack.c.h.b16 %v4014
    %v5402 = vunpack.c.l.b16 %v4015
    %v5403 = vunpack.c.h.b16 %v4015
    %v5404 = vunpack.c.l.b16 %v4016
    %v5405 = vunpack.c.l.b16 %v4017
    %v5406 = vunpack.c.h.b16 %v4017
    %v5407 = vunpack.c.l.b16 %v4018
    %v5408 = vunpack.c.h.b16 %v4018
    %v5409 = vunpack.c.l.b16 %v4019
    %v5410 = vunpack.c.h.b16 %v4019
    %v5411 = vunpack.c.l.b16 %v4020
    %v5412 = vunpack.c.l.b16 %v4021
    %v5413 = vunpack.c.h.b16 %v4021
    %v5414 = vunpack.c.l.b16 %v4022
    %v5415 = vunpack.c.h.b16 %v4022
    %v5416 = vunpack.c.l.b16 %v4023
    %v5417 = vunpack.c.h.b16 %v4023
    %v5418 = vunpack.c.l.b16 %v4024
    %v5419 = vunpack.c.l.b16 %v4025
    %v5420 = vunpack.c.h.b16 %v4025
    %v5421 = vunpack.c.l.b16 %v4026
    %v5422 = vunpack.c.h.b16 %v4026
    %v5423 = vunpack.c.l.b16 %v4027
    %v5424 = vunpack.c.h.b16 %v4027
    %v5425 = vunpack.c.l.b16 %v4028
    %v5426 = vunpack.c.l.b16 %v4029
    %v5427 = vunpack.c.h.b16 %v4029
    %v5428 = vunpack.c.l.b16 %v4030
    %v5429 = vunpack.c.h.b16 %v4030
    %v5430 = vunpack.c.l.b16 %v4031
    %v5431 = vunpack.c.h.b16 %v4031
    %v5432 = vunpack.c.l.b16 %v4032
    %v5433 = vunpack.c.l.b16 %v4033
    %v5434 = vunpack.c.h.b16 %v4033
    %v5435 = vunpack.c.l.b16 %v4034
    %v5436 = vunpack.c.h.b16 %v4034
    %v5437 = vunpack.c.l.b16 %v4035
    %v5438 = vunpack.c.h.b16 %v4035
    %v5439 = vunpack.c.l.b16 %v4036
    %v5440 = vunpack.c.l.b16 %v4037
    %v5441 = vunpack.c.h.b16 %v4037
    %v5442 = vunpack.c.l.b16 %v4038
    %v5443 = vunpack.c.h.b16 %v4038
    %v5444 = vunpack.c.l.b16 %v4039
    %v5445 = vunpack.c.h.b16 %v4039
    %v5446 = vunpack.c.l.b16 %v4040
    %v5447 = vunpack.c.l.b16 %v4041
    %v5448 = vunpack.c.h.b16 %v4041
    %v5449 = vunpack.c.l.b16 %v4042
    %v5450 = vunpack.c.h.b16 %v4042
    %v5451 = vunpack.c.l.b16 %v4043
    %v5452 = vunpack.c.h.b16 %v4043
    %v5453 = vunpack.c.l.b16 %v4044
    %v5454 = vunpack.c.l.b16 %v4045
    %v5455 = vunpack.c.h.b16 %v4045
    %v5456 = vunpack.c.l.b16 %v4046
    %v5457 = vunpack.c.h.b16 %v4046
    %v5458 = vunpack.c.l.b16 %v4047
    %v5459 = vunpack.c.h.b16 %v4047
    %v5460 = vunpack.c.l.b16 %v4048
    %v5461 = vunpack.c.l.b16 %v4049
    %v5462 = vunpack.c.h.b16 %v4049
    %v5463 = vunpack.c.l.b16 %v4050
    %v5464 = vunpack.c.h.b16 %v4050
    %v5465 = vunpack.c.l.b16 %v4051
    %v5466 = vunpack.c.h.b16 %v4051
    %v5467 = vunpack.c.l.b16 %v4052
    %v5468 = vunpack.c.l.b16 %v4053
    %v5469 = vunpack.c.h.b16 %v4053
    %v5470 = vunpack.c.l.b16 %v4054
    %v5471 = vunpack.c.h.b16 %v4054
    %v5472 = vunpack.c.l.b16 %v4055
    %v5473 = vunpack.c.h.b16 %v4055
    %v5474 = vunpack.c.l.b16 %v4056
    %v5475 = vunpack.c.l.b16 %v4057
    %v5476 = vunpack.c.h.b16 %v4057
    %v5477 = vunpack.c.l.b16 %v4058
    %v5478 = vunpack.c.h.b16 %v4058
    %v5479 = vunpack.c.l.b16 %v4059
    %v5480 = vunpack.c.h.b16 %v4059
    %v5481 = vunpack.c.l.b16 %v4060
    %v5482 = vunpack.c.l.b16 %v4061
    %v5483 = vunpack.c.h.b16 %v4061
    %v5484 = vunpack.c.l.b16 %v4062
    %v5485 = vunpack.c.h.b16 %v4062
    %v5486 = vunpack.c.l.b16 %v4063
    %v5487 = vunpack.c.h.b16 %v4063
    %v5488 = vunpack.c.l.b16 %v4064
    %v5489 = vpack.c.b16 %v4600, %v4593
    %v5490 = vpack.c.b16 %v4601, %v4594
    %v5491 = vpack.c.b16 %v4602, %v4595
    %v5492 = vpack.c.b16 %v4603, %v4596
    %v5493 = vpack.c.b16 %v4604, %v4597
    %v5494 = vpack.c.b16 %v4605, %v4598
    %v5495 = vpack.c.b16 %v4606, %v4599
    %v5496 = vpack.c.b16 %v4614, %v4607
    %v5497 = vpack.c.b16 %v4615, %v4608
    %v5498 = vpack.c.b16 %v4616, %v4609
    %v5499 = vpack.c.b16 %v4617, %v4610
    %v5500 = vpack.c.b16 %v4618, %v4611
    %v5501 = vpack.c.b16 %v4619, %v4612
    %v5502 = vpack.c.b16 %v4620, %v4613
    %v5503 = vpack.c.b16 %v4628, %v4621
    %v5504 = vpack.c.b16 %v4629, %v4622
    %v5505 = vpack.c.b16 %v4630, %v4623
    %v5506 = vpack.c.b16 %v4631, %v4624
    %v5507 = vpack.c.b16 %v4632, %v4625
    %v5508 = vpack.c.b16 %v4633, %v4626
    %v5509 = vpack.c.b16 %v4634, %v4627
    %v5510 = vpack.c.b16 %v4642, %v4635
    %v5511 = vpack.c.b16 %v4643, %v4636
    %v5512 = vpack.c.b16 %v4644, %v4637
    %v5513 = vpack.c.b16 %v4645, %v4638
    %v5514 = vpack.c.b16 %v4646, %v4639
    %v5515 = vpack.c.b16 %v4647, %v4640
    %v5516 = vpack.c.b16 %v4648, %v4641
    %v5517 = vpack.c.b16 %v4656, %v4649
    %v5518 = vpack.c.b16 %v4657, %v4650
    %v5519 = vpack.c.b16 %v4658, %v4651
    %v5520 = vpack.c.b16 %v4659, %v4652
    %v5521 = vpack.c.b16 %v4660, %v4653
    %v5522 = vpack.c.b16 %v4661, %v4654
    %v5523 = vpack.c.b16 %v4662, %v4655
    %v5524 = vpack.c.b16 %v4670, %v4663
    %v5525 = vpack.c.b16 %v4671, %v4664
    %v5526 = vpack.c.b16 %v4672, %v4665
    %v5527 = vpack.c.b16 %v4673, %v4666
    %v5528 = vpack.c.b16 %v4674, %v4667
    %v5529 = vpack.c.b16 %v4675, %v4668
    %v5530 = vpack.c.b16 %v4676, %v4669
    %v5531 = vpack.c.b16 %v4684, %v4677
    %v5532 = vpack.c.b16 %v4685, %v4678
    %v5533 = vpack.c.b16 %v4686, %v4679
    %v5534 = vpack.c.b16 %v4687, %v4680
    %v5535 = vpack.c.b16 %v4688, %v4681
    %v5536 = vpack.c.b16 %v4689, %v4682
    %v5537 = vpack.c.b16 %v4690, %v4683
    %v5538 = vpack.c.b16 %v4698, %v4691
    %v5539 = vpack.c.b16 %v4699, %v4692
    %v5540 = vpack.c.b16 %v4700, %v4693
    %v5541 = vpack.c.b16 %v4701, %v4694
    %v5542 = vpack.c.b16 %v4702, %v4695
    %v5543 = vpack.c.b16 %v4703, %v4696
    %v5544 = vpack.c.b16 %v4704, %v4697
    %v5545 = vpack.c.b16 %v4712, %v4705
    %v5546 = vpack.c.b16 %v4713, %v4706
    %v5547 = vpack.c.b16 %v4714, %v4707
    %v5548 = vpack.c.b16 %v4715, %v4708
    %v5549 = vpack.c.b16 %v4716, %v4709
    %v5550 = vpack.c.b16 %v4717, %v4710
    %v5551 = vpack.c.b16 %v4718, %v4711
    %v5552 = vpack.c.b16 %v4726, %v4719
    %v5553 = vpack.c.b16 %v4727, %v4720
    %v5554 = vpack.c.b16 %v4728, %v4721
    %v5555 = vpack.c.b16 %v4729, %v4722
    %v5556 = vpack.c.b16 %v4730, %v4723
    %v5557 = vpack.c.b16 %v4731, %v4724
    %v5558 = vpack.c.b16 %v4732, %v4725
    %v5559 = vpack.c.b16 %v4740, %v4733
    %v5560 = vpack.c.b16 %v4741, %v4734
    %v5561 = vpack.c.b16 %v4742, %v4735
    %v5562 = vpack.c.b16 %v4743, %v4736
    %v5563 = vpack.c.b16 %v4744, %v4737
    %v5564 = vpack.c.b16 %v4745, %v4738
    %v5565 = vpack.c.b16 %v4746, %v4739
    %v5566 = vpack.c.b16 %v4754, %v4747
    %v5567 = vpack.c.b16 %v4755, %v4748
    %v5568 = vpack.c.b16 %v4756, %v4749
    %v5569 = vpack.c.b16 %v4757, %v4750
    %v5570 = vpack.c.b16 %v4758, %v4751
    %v5571 = vpack.c.b16 %v4759, %v4752
    %v5572 = vpack.c.b16 %v4760, %v4753
    %v5573 = vpack.c.b16 %v4768, %v4761
    %v5574 = vpack.c.b16 %v4769, %v4762
    %v5575 = vpack.c.b16 %v4770, %v4763
    %v5576 = vpack.c.b16 %v4771, %v4764
    %v5577 = vpack.c.b16 %v4772, %v4765
    %v5578 = vpack.c.b16 %v4773, %v4766
    %v5579 = vpack.c.b16 %v4774, %v4767
    %v5580 = vpack.c.b16 %v4782, %v4775
    %v5581 = vpack.c.b16 %v4783, %v4776
    %v5582 = vpack.c.b16 %v4784, %v4777
    %v5583 = vpack.c.b16 %v4785, %v4778
    %v5584 = vpack.c.b16 %v4786, %v4779
    %v5585 = vpack.c.b16 %v4787, %v4780
    %v5586 = vpack.c.b16 %v4788, %v4781
    %v5587 = vpack.c.b16 %v4796, %v4789
    %v5588 = vpack.c.b16 %v4797, %v4790
    %v5589 = vpack.c.b16 %v4798, %v4791
    %v5590 = vpack.c.b16 %v4799, %v4792
    %v5591 = vpack.c.b16 %v4800, %v4793
    %v5592 = vpack.c.b16 %v4801, %v4794
    %v5593 = vpack.c.b16 %v4802, %v4795
    %v5594 = vpack.c.b16 %v4810, %v4803
    %v5595 = vpack.c.b16 %v4811, %v4804
    %v5596 = vpack.c.b16 %v4812, %v4805
    %v5597 = vpack.c.b16 %v4813, %v4806
    %v5598 = vpack.c.b16 %v4814, %v4807
    %v5599 = vpack.c.b16 %v4815, %v4808
    %v5600 = vpack.c.b16 %v4816, %v4809
    %v5601 = vpack.c.b16 %v4824, %v4817
    %v5602 = vpack.c.b16 %v4825, %v4818
    %v5603 = vpack.c.b16 %v4826, %v4819
    %v5604 = vpack.c.b16 %v4827, %v4820
    %v5605 = vpack.c.b16 %v4828, %v4821
    %v5606 = vpack.c.b16 %v4829, %v4822
    %v5607 = vpack.c.b16 %v4830, %v4823
    %v5608 = vpack.c.b16 %v4838, %v4831
    %v5609 = vpack.c.b16 %v4839, %v4832
    %v5610 = vpack.c.b16 %v4840, %v4833
    %v5611 = vpack.c.b16 %v4841, %v4834
    %v5612 = vpack.c.b16 %v4842, %v4835
    %v5613 = vpack.c.b16 %v4843, %v4836
    %v5614 = vpack.c.b16 %v4844, %v4837
    %v5615 = vpack.c.b16 %v4852, %v4845
    %v5616 = vpack.c.b16 %v4853, %v4846
    %v5617 = vpack.c.b16 %v4854, %v4847
    %v5618 = vpack.c.b16 %v4855, %v4848
    %v5619 = vpack.c.b16 %v4856, %v4849
    %v5620 = vpack.c.b16 %v4857, %v4850
    %v5621 = vpack.c.b16 %v4858, %v4851
    %v5622 = vpack.c.b16 %v4866, %v4859
    %v5623 = vpack.c.b16 %v4867, %v4860
    %v5624 = vpack.c.b16 %v4868, %v4861
    %v5625 = vpack.c.b16 %v4869, %v4862
    %v5626 = vpack.c.b16 %v4870, %v4863
    %v5627 = vpack.c.b16 %v4871, %v4864
    %v5628 = vpack.c.b16 %v4872, %v4865
    %v5629 = vpack.c.b16 %v4880, %v4873
    %v5630 = vpack.c.b16 %v4881, %v4874
    %v5631 = vpack.c.b16 %v4882, %v4875
    %v5632 = vpack.c.b16 %v4883, %v4876
    %v5633 = vpack.c.b16 %v4884, %v4877
    %v5634 = vpack.c.b16 %v4885, %v4878
    %v5635 = vpack.c.b16 %v4886, %v4879
    %v5636 = vpack.c.b16 %v4894, %v4887
    %v5637 = vpack.c.b16 %v4895, %v4888
    %v5638 = vpack.c.b16 %v4896, %v4889
    %v5639 = vpack.c.b16 %v4897, %v4890
    %v5640 = vpack.c.b16 %v4898, %v4891
    %v5641 = vpack.c.b16 %v4899, %v4892
    %v5642 = vpack.c.b16 %v4900, %v4893
    %v5643 = vpack.c.b16 %v4908, %v4901
    %v5644 = vpack.c.b16 %v4909, %v4902
    %v5645 = vpack.c.b16 %v4910, %v4903
    %v5646 = vpack.c.b16 %v4911, %v4904
    %v5647 = vpack.c.b16 %v4912, %v4905
    %v5648 = vpack.c.b16 %v4913, %v4906
    %v5649 = vpack.c.b16 %v4914, %v4907
    %v5650 = vpack.c.b16 %v4922, %v4915
    %v5651 = vpack.c.b16 %v4923, %v4916
    %v5652 = vpack.c.b16 %v4924, %v4917
    %v5653 = vpack.c.b16 %v4925, %v4918
    %v5654 = vpack.c.b16 %v4926, %v4919
    %v5655 = vpack.c.b16 %v4927, %v4920
    %v5656 = vpack.c.b16 %v4928, %v4921
    %v5657 = vpack.c.b16 %v4936, %v4929
    %v5658 = vpack.c.b16 %v4937, %v4930
    %v5659 = vpack.c.b16 %v4938, %v4931
    %v5660 = vpack.c.b16 %v4939, %v4932
    %v5661 = vpack.c.b16 %v4940, %v4933
    %v5662 = vpack.c.b16 %v4941, %v4934
    %v5663 = vpack.c.b16 %v4942, %v4935
    %v5664 = vpack.c.b16 %v4950, %v4943
    %v5665 = vpack.c.b16 %v4951, %v4944
    %v5666 = vpack.c.b16 %v4952, %v4945
    %v5667 = vpack.c.b16 %v4953, %v4946
    %v5668 = vpack.c.b16 %v4954, %v4947
    %v5669 = vpack.c.b16 %v4955, %v4948
    %v5670 = vpack.c.b16 %v4956, %v4949
    %v5671 = vpack.c.b16 %v4964, %v4957
    %v5672 = vpack.c.b16 %v4965, %v4958
    %v5673 = vpack.c.b16 %v4966, %v4959
    %v5674 = vpack.c.b16 %v4967, %v4960
    %v5675 = vpack.c.b16 %v4968, %v4961
    %v5676 = vpack.c.b16 %v4969, %v4962
    %v5677 = vpack.c.b16 %v4970, %v4963
    %v5678 = vpack.c.b16 %v4978, %v4971
    %v5679 = vpack.c.b16 %v4979, %v4972
    %v5680 = vpack.c.b16 %v4980, %v4973
    %v5681 = vpack.c.b16 %v4981, %v4974
    %v5682 = vpack.c.b16 %v4982, %v4975
    %v5683 = vpack.c.b16 %v4983, %v4976
    %v5684 = vpack.c.b16 %v4984, %v4977
    %v5685 = vpack.c.b16 %v4992, %v4985
    %v5686 = vpack.c.b16 %v4993, %v4986
    %v5687 = vpack.c.b16 %v4994, %v4987
    %v5688 = vpack.c.b16 %v4995, %v4988
    %v5689 = vpack.c.b16 %v4996, %v4989
    %v5690 = vpack.c.b16 %v4997, %v4990
    %v5691 = vpack.c.b16 %v4998, %v4991
    %v5692 = vpack.c.b16 %v5006, %v4999
    %v5693 = vpack.c.b16 %v5007, %v5000
    %v5694 = vpack.c.b16 %v5008, %v5001
    %v5695 = vpack.c.b16 %v5009, %v5002
    %v5696 = vpack.c.b16 %v5010, %v5003
    %v5697 = vpack.c.b16 %v5011, %v5004
    %v5698 = vpack.c.b16 %v5012, %v5005
    %v5699 = vpack.c.b16 %v5020, %v5013
    %v5700 = vpack.c.b16 %v5021, %v5014
    %v5701 = vpack.c.b16 %v5022, %v5015
    %v5702 = vpack.c.b16 %v5023, %v5016
    %v5703 = vpack.c.b16 %v5024, %v5017
    %v5704 = vpack.c.b16 %v5025, %v5018
    %v5705 = vpack.c.b16 %v5026, %v5019
    %v5706 = vpack.c.b16 %v5034, %v5027
    %v5707 = vpack.c.b16 %v5035, %v5028
    %v5708 = vpack.c.b16 %v5036, %v5029
    %v5709 = vpack.c.b16 %v5037, %v5030
    %v5710 = vpack.c.b16 %v5038, %v5031
    %v5711 = vpack.c.b16 %v5039, %v5032
    %v5712 = vpack.c.b16 %v5040, %v5033
    %v5713 = vpack.c.b16 %v5048, %v5041
    %v5714 = vpack.c.b16 %v5049, %v5042
    %v5715 = vpack.c.b16 %v5050, %v5043
    %v5716 = vpack.c.b16 %v5051, %v5044
    %v5717 = vpack.c.b16 %v5052, %v5045
    %v5718 = vpack.c.b16 %v5053, %v5046
    %v5719 = vpack.c.b16 %v5054, %v5047
    %v5720 = vpack.c.b16 %v5062, %v5055
    %v5721 = vpack.c.b16 %v5063, %v5056
    %v5722 = vpack.c.b16 %v5064, %v5057
    %v5723 = vpack.c.b16 %v5065, %v5058
    %v5724 = vpack.c.b16 %v5066, %v5059
    %v5725 = vpack.c.b16 %v5067, %v5060
    %v5726 = vpack.c.b16 %v5068, %v5061
    %v5727 = vpack.c.b16 %v5076, %v5069
    %v5728 = vpack.c.b16 %v5077, %v5070
    %v5729 = vpack.c.b16 %v5078, %v5071
    %v5730 = vpack.c.b16 %v5079, %v5072
    %v5731 = vpack.c.b16 %v5080, %v5073
    %v5732 = vpack.c.b16 %v5081, %v5074
    %v5733 = vpack.c.b16 %v5082, %v5075
    %v5734 = vpack.c.b16 %v5090, %v5083
    %v5735 = vpack.c.b16 %v5091, %v5084
    %v5736 = vpack.c.b16 %v5092, %v5085
    %v5737 = vpack.c.b16 %v5093, %v5086
    %v5738 = vpack.c.b16 %v5094, %v5087
    %v5739 = vpack.c.b16 %v5095, %v5088
    %v5740 = vpack.c.b16 %v5096, %v5089
    %v5741 = vpack.c.b16 %v5104, %v5097
    %v5742 = vpack.c.b16 %v5105, %v5098
    %v5743 = vpack.c.b16 %v5106, %v5099
    %v5744 = vpack.c.b16 %v5107, %v5100
    %v5745 = vpack.c.b16 %v5108, %v5101
    %v5746 = vpack.c.b16 %v5109, %v5102
    %v5747 = vpack.c.b16 %v5110, %v5103
    %v5748 = vpack.c.b16 %v5118, %v5111
    %v5749 = vpack.c.b16 %v5119, %v5112
    %v5750 = vpack.c.b16 %v5120, %v5113
    %v5751 = vpack.c.b16 %v5121, %v5114
    %v5752 = vpack.c.b16 %v5122, %v5115
    %v5753 = vpack.c.b16 %v5123, %v5116
    %v5754 = vpack.c.b16 %v5124, %v5117
    %v5755 = vpack.c.b16 %v5132, %v5125
    %v5756 = vpack.c.b16 %v5133, %v5126
    %v5757 = vpack.c.b16 %v5134, %v5127
    %v5758 = vpack.c.b16 %v5135, %v5128
    %v5759 = vpack.c.b16 %v5136, %v5129
    %v5760 = vpack.c.b16 %v5137, %v5130
    %v5761 = vpack.c.b16 %v5138, %v5131
    %v5762 = vpack.c.b16 %v5146, %v5139
    %v5763 = vpack.c.b16 %v5147, %v5140
    %v5764 = vpack.c.b16 %v5148, %v5141
    %v5765 = vpack.c.b16 %v5149, %v5142
    %v5766 = vpack.c.b16 %v5150, %v5143
    %v5767 = vpack.c.b16 %v5151, %v5144
    %v5768 = vpack.c.b16 %v5152, %v5145
    %v5769 = vpack.c.b16 %v5160, %v5153
    %v5770 = vpack.c.b16 %v5161, %v5154
    %v5771 = vpack.c.b16 %v5162, %v5155
    %v5772 = vpack.c.b16 %v5163, %v5156
    %v5773 = vpack.c.b16 %v5164, %v5157
    %v5774 = vpack.c.b16 %v5165, %v5158
    %v5775 = vpack.c.b16 %v5166, %v5159
    %v5776 = vpack.c.b16 %v5174, %v5167
    %v5777 = vpack.c.b16 %v5175, %v5168
    %v5778 = vpack.c.b16 %v5176, %v5169
    %v5779 = vpack.c.b16 %v5177, %v5170
    %v5780 = vpack.c.b16 %v5178, %v5171
    %v5781 = vpack.c.b16 %v5179, %v5172
    %v5782 = vpack.c.b16 %v5180, %v5173
    %v5783 = vpack.c.b16 %v5188, %v5181
    %v5784 = vpack.c.b16 %v5189, %v5182
    %v5785 = vpack.c.b16 %v5190, %v5183
    %v5786 = vpack.c.b16 %v5191, %v5184
    %v5787 = vpack.c.b16 %v5192, %v5185
    %v5788 = vpack.c.b16 %v5193, %v5186
    %v5789 = vpack.c.b16 %v5194, %v5187
    %v5790 = vpack.c.b16 %v5202, %v5195
    %v5791 = vpack.c.b16 %v5203, %v5196
    %v5792 = vpack.c.b16 %v5204, %v5197
    %v5793 = vpack.c.b16 %v5205, %v5198
    %v5794 = vpack.c.b16 %v5206, %v5199
    %v5795 = vpack.c.b16 %v5207, %v5200
    %v5796 = vpack.c.b16 %v5208, %v5201
    %v5797 = vpack.c.b16 %v5216, %v5209
    %v5798 = vpack.c.b16 %v5217, %v5210
    %v5799 = vpack.c.b16 %v5218, %v5211
    %v5800 = vpack.c.b16 %v5219, %v5212
    %v5801 = vpack.c.b16 %v5220, %v5213
    %v5802 = vpack.c.b16 %v5221, %v5214
    %v5803 = vpack.c.b16 %v5222, %v5215
    %v5804 = vpack.c.b16 %v5230, %v5223
    %v5805 = vpack.c.b16 %v5231, %v5224
    %v5806 = vpack.c.b16 %v5232, %v5225
    %v5807 = vpack.c.b16 %v5233, %v5226
    %v5808 = vpack.c.b16 %v5234, %v5227
    %v5809 = vpack.c.b16 %v5235, %v5228
    %v5810 = vpack.c.b16 %v5236, %v5229
    %v5811 = vpack.c.b16 %v5244, %v5237
    %v5812 = vpack.c.b16 %v5245, %v5238
    %v5813 = vpack.c.b16 %v5246, %v5239
    %v5814 = vpack.c.b16 %v5247, %v5240
    %v5815 = vpack.c.b16 %v5248, %v5241
    %v5816 = vpack.c.b16 %v5249, %v5242
    %v5817 = vpack.c.b16 %v5250, %v5243
    %v5818 = vpack.c.b16 %v5258, %v5251
    %v5819 = vpack.c.b16 %v5259, %v5252
    %v5820 = vpack.c.b16 %v5260, %v5253
    %v5821 = vpack.c.b16 %v5261, %v5254
    %v5822 = vpack.c.b16 %v5262, %v5255
    %v5823 = vpack.c.b16 %v5263, %v5256
    %v5824 = vpack.c.b16 %v5264, %v5257
    %v5825 = vpack.c.b16 %v5272, %v5265
    %v5826 = vpack.c.b16 %v5273, %v5266
    %v5827 = vpack.c.b16 %v5274, %v5267
    %v5828 = vpack.c.b16 %v5275, %v5268
    %v5829 = vpack.c.b16 %v5276, %v5269
    %v5830 = vpack.c.b16 %v5277, %v5270
    %v5831 = vpack.c.b16 %v5278, %v5271
    %v5832 = vpack.c.b16 %v5286, %v5279
    %v5833 = vpack.c.b16 %v5287, %v5280
    %v5834 = vpack.c.b16 %v5288, %v5281
    %v5835 = vpack.c.b16 %v5289, %v5282
    %v5836 = vpack.c.b16 %v5290, %v5283
    %v5837 = vpack.c.b16 %v5291, %v5284
    %v5838 = vpack.c.b16 %v5292, %v5285
    %v5839 = vpack.c.b16 %v5300, %v5293
    %v5840 = vpack.c.b16 %v5301, %v5294
    %v5841 = vpack.c.b16 %v5302, %v5295
    %v5842 = vpack.c.b16 %v5303, %v5296
    %v5843 = vpack.c.b16 %v5304, %v5297
    %v5844 = vpack.c.b16 %v5305, %v5298
    %v5845 = vpack.c.b16 %v5306, %v5299
    %v5846 = vpack.c.b16 %v5314, %v5307
    %v5847 = vpack.c.b16 %v5315, %v5308
    %v5848 = vpack.c.b16 %v5316, %v5309
    %v5849 = vpack.c.b16 %v5317, %v5310
    %v5850 = vpack.c.b16 %v5318, %v5311
    %v5851 = vpack.c.b16 %v5319, %v5312
    %v5852 = vpack.c.b16 %v5320, %v5313
    %v5853 = vpack.c.b16 %v5328, %v5321
    %v5854 = vpack.c.b16 %v5329, %v5322
    %v5855 = vpack.c.b16 %v5330, %v5323
    %v5856 = vpack.c.b16 %v5331, %v5324
    %v5857 = vpack.c.b16 %v5332, %v5325
    %v5858 = vpack.c.b16 %v5333, %v5326
    %v5859 = vpack.c.b16 %v5334, %v5327
    %v5860 = vpack.c.b16 %v5342, %v5335
    %v5861 = vpack.c.b16 %v5343, %v5336
    %v5862 = vpack.c.b16 %v5344, %v5337
    %v5863 = vpack.c.b16 %v5345, %v5338
    %v5864 = vpack.c.b16 %v5346, %v5339
    %v5865 = vpack.c.b16 %v5347, %v5340
    %v5866 = vpack.c.b16 %v5348, %v5341
    %v5867 = vpack.c.b16 %v5356, %v5349
    %v5868 = vpack.c.b16 %v5357, %v5350
    %v5869 = vpack.c.b16 %v5358, %v5351
    %v5870 = vpack.c.b16 %v5359, %v5352
    %v5871 = vpack.c.b16 %v5360, %v5353
    %v5872 = vpack.c.b16 %v5361, %v5354
    %v5873 = vpack.c.b16 %v5362, %v5355
    %v5874 = vpack.c.b16 %v5370, %v5363
    %v5875 = vpack.c.b16 %v5371, %v5364
    %v5876 = vpack.c.b16 %v5372, %v5365
    %v5877 = vpack.c.b16 %v5373, %v5366
    %v5878 = vpack.c.b16 %v5374, %v5367
    %v5879 = vpack.c.b16 %v5375, %v5368
    %v5880 = vpack.c.b16 %v5376, %v5369
    %v5881 = vpack.c.b16 %v5384, %v5377
    %v5882 = vpack.c.b16 %v5385, %v5378
    %v5883 = vpack.c.b16 %v5386, %v5379
    %v5884 = vpack.c.b16 %v5387, %v5380
    %v5885 = vpack.c.b16 %v5388, %v5381
    %v5886 = vpack.c.b16 %v5389, %v5382
    %v5887 = vpack.c.b16 %v5390, %v5383
    %v5888 = vpack.c.b16 %v5398, %v5391
    %v5889 = vpack.c.b16 %v5399, %v5392
    %v5890 = vpack.c.b16 %v5400, %v5393
    %v5891 = vpack.c.b16 %v5401, %v5394
    %v5892 = vpack.c.b16 %v5402, %v5395
    %v5893 = vpack.c.b16 %v5403, %v5396
    %v5894 = vpack.c.b16 %v5404, %v5397
    %v5895 = vpack.c.b16 %v5412, %v5405
    %v5896 = vpack.c.b16 %v5413, %v5406
    %v5897 = vpack.c.b16 %v5414, %v5407
    %v5898 = vpack.c.b16 %v5415, %v5408
    %v5899 = vpack.c.b16 %v5416, %v5409
    %v5900 = vpack.c.b16 %v5417, %v5410
    %v5901 = vpack.c.b16 %v5418, %v5411
    %v5902 = vpack.c.b16 %v5426, %v5419
    %v5903 = vpack.c.b16 %v5427, %v5420
    %v5904 = vpack.c.b16 %v5428, %v5421
    %v5905 = vpack.c.b16 %v5429, %v5422
    %v5906 = vpack.c.b16 %v5430, %v5423
    %v5907 = vpack.c.b16 %v5431, %v5424
    %v5908 = vpack.c.b16 %v5432, %v5425
    %v5909 = vpack.c.b16 %v5440, %v5433
    %v5910 = vpack.c.b16 %v5441, %v5434
    %v5911 = vpack.c.b16 %v5442, %v5435
    %v5912 = vpack.c.b16 %v5443, %v5436
    %v5913 = vpack.c.b16 %v5444, %v5437
    %v5914 = vpack.c.b16 %v5445, %v5438
    %v5915 = vpack.c.b16 %v5446, %v5439
    %v5916 = vpack.c.b16 %v5454, %v5447
    %v5917 = vpack.c.b16 %v5455, %v5448
    %v5918 = vpack.c.b16 %v5456, %v5449
    %v5919 = vpack.c.b16 %v5457, %v5450
    %v5920 = vpack.c.b16 %v5458, %v5451
    %v5921 = vpack.c.b16 %v5459, %v5452
    %v5922 = vpack.c.b16 %v5460, %v5453
    %v5923 = vpack.c.b16 %v5468, %v5461
    %v5924 = vpack.c.b16 %v5469, %v5462
    %v5925 = vpack.c.b16 %v5470, %v5463
    %v5926 = vpack.c.b16 %v5471, %v5464
    %v5927 = vpack.c.b16 %v5472, %v5465
    %v5928 = vpack.c.b16 %v5473, %v5466
    %v5929 = vpack.c.b16 %v5474, %v5467
    %v5930 = vpack.c.b16 %v5482, %v5475
    %v5931 = vpack.c.b16 %v5483, %v5476
    %v5932 = vpack.c.b16 %v5484, %v5477
    %v5933 = vpack.c.b16 %v5485, %v5478
    %v5934 = vpack.c.b16 %v5486, %v5479
    %v5935 = vpack.c.b16 %v5487, %v5480
    %v5936 = vpack.c.b16 %v5488, %v5481
    %6385 = vmatpush.bf16.msra.mxu0 %v5538
    %6386 = vmatpush.bf16.msra.mxu0 %v5531
    %6387 = vmatpush.bf16.msra.mxu0 %v5524
    %6388 = vmatpush.bf16.msra.mxu0 %v5517
    %6389 = vmatpush.bf16.msra.mxu0 %v5510
    %6390 = vmatpush.bf16.msra.mxu0 %v5503
    %6391 = vmatpush.bf16.msra.mxu0 %v5496
    %6392 = vmatpush.bf16.msra.mxu0 %v5489
    %6393 = vmatmul.bf16.gmra.mxu0 %v3545
    %v6394 = vpop.f32.mrf.mxu0
    %v6395 = vadd.f32 %v4067, %v6394
    %v6396 = vpop.f32.mrf.mxu0
    %6397 = vdwg.mxu0
    %6398 = vmatpush.bf16.msra.mxu0 %v5594
    %6399 = vmatpush.bf16.msra.mxu0 %v5587
    %6400 = vmatpush.bf16.msra.mxu0 %v5580
    %6401 = vmatpush.bf16.msra.mxu0 %v5573
    %6402 = vmatpush.bf16.msra.mxu0 %v5566
    %6403 = vmatpush.bf16.msra.mxu0 %v5559
    %6404 = vmatpush.bf16.msra.mxu0 %v5552
    %6405 = vmatpush.bf16.msra.mxu0 %v5545
    %6406 = vmatmul.bf16.gmra.mxu0 %v3546
    %v6407 = vpop.f32.mrf.mxu0
    %v6408 = vadd.f32 %v6395, %v6407
    %v6409 = vpop.f32.mrf.mxu0
    %6410 = vdwg.mxu0
    %6411 = vmatpush.bf16.msra.mxu0 %v5650
    %6412 = vmatpush.bf16.msra.mxu0 %v5643
    %6413 = vmatpush.bf16.msra.mxu0 %v5636
    %6414 = vmatpush.bf16.msra.mxu0 %v5629
    %6415 = vmatpush.bf16.msra.mxu0 %v5622
    %6416 = vmatpush.bf16.msra.mxu0 %v5615
    %6417 = vmatpush.bf16.msra.mxu0 %v5608
    %6418 = vmatpush.bf16.msra.mxu0 %v5601
    %6419 = vmatmul.bf16.gmra.mxu0 %v3547
    %v6420 = vpop.f32.mrf.mxu0
    %v6421 = vadd.f32 %v6408, %v6420
    %v6422 = vpop.f32.mrf.mxu0
    %6423 = vdwg.mxu0
    %6424 = vmatpush.bf16.msra.mxu0 %v5706
    %6425 = vmatpush.bf16.msra.mxu0 %v5699
    %6426 = vmatpush.bf16.msra.mxu0 %v5692
    %6427 = vmatpush.bf16.msra.mxu0 %v5685
    %6428 = vmatpush.bf16.msra.mxu0 %v5678
    %6429 = vmatpush.bf16.msra.mxu0 %v5671
    %6430 = vmatpush.bf16.msra.mxu0 %v5664
    %6431 = vmatpush.bf16.msra.mxu0 %v5657
    %6432 = vmatmul.bf16.gmra.mxu0 %v3548
    %v6433 = vpop.f32.mrf.mxu0
    %v6434 = vadd.f32 %v6421, %v6433
    %v6435 = vpop.f32.mrf.mxu0
    %6436 = vdwg.mxu0
    %6437 = vmatpush.bf16.msra.mxu0 %v5762
    %6438 = vmatpush.bf16.msra.mxu0 %v5755
    %6439 = vmatpush.bf16.msra.mxu0 %v5748
    %6440 = vmatpush.bf16.msra.mxu0 %v5741
    %6441 = vmatpush.bf16.msra.mxu0 %v5734
    %6442 = vmatpush.bf16.msra.mxu0 %v5727
    %6443 = vmatpush.bf16.msra.mxu0 %v5720
    %6444 = vmatpush.bf16.msra.mxu0 %v5713
    %6445 = vmatmul.bf16.gmra.mxu0 %v3549
    %v6446 = vpop.f32.mrf.mxu0
    %v6447 = vadd.f32 %v6434, %v6446
    %v6448 = vpop.f32.mrf.mxu0
    %6449 = vdwg.mxu0
    %6450 = vmatpush.bf16.msra.mxu0 %v5818
    %6451 = vmatpush.bf16.msra.mxu0 %v5811
    %6452 = vmatpush.bf16.msra.mxu0 %v5804
    %6453 = vmatpush.bf16.msra.mxu0 %v5797
    %6454 = vmatpush.bf16.msra.mxu0 %v5790
    %6455 = vmatpush.bf16.msra.mxu0 %v5783
    %6456 = vmatpush.bf16.msra.mxu0 %v5776
    %6457 = vmatpush.bf16.msra.mxu0 %v5769
    %6458 = vmatmul.bf16.gmra.mxu0 %v3550
    %v6459 = vpop.f32.mrf.mxu0
    %v6460 = vadd.f32 %v6447, %v6459
    %v6461 = vpop.f32.mrf.mxu0
    %6462 = vdwg.mxu0
    %6463 = vmatpush.bf16.msra.mxu0 %v5874
    %6464 = vmatpush.bf16.msra.mxu0 %v5867
    %6465 = vmatpush.bf16.msra.mxu0 %v5860
    %6466 = vmatpush.bf16.msra.mxu0 %v5853
    %6467 = vmatpush.bf16.msra.mxu0 %v5846
    %6468 = vmatpush.bf16.msra.mxu0 %v5839
    %6469 = vmatpush.bf16.msra.mxu0 %v5832
    %6470 = vmatpush.bf16.msra.mxu0 %v5825
    %6471 = vmatmul.bf16.gmra.mxu0 %v3551
    %v6472 = vpop.f32.mrf.mxu0
    %v6473 = vadd.f32 %v6460, %v6472
    %v6474 = vpop.f32.mrf.mxu0
    %6475 = vdwg.mxu0
    %6476 = vmatpush.bf16.msra.mxu0 %v5930
    %6477 = vmatpush.bf16.msra.mxu0 %v5923
    %6478 = vmatpush.bf16.msra.mxu0 %v5916
    %6479 = vmatpush.bf16.msra.mxu0 %v5909
    %6480 = vmatpush.bf16.msra.mxu0 %v5902
    %6481 = vmatpush.bf16.msra.mxu0 %v5895
    %6482 = vmatpush.bf16.msra.mxu0 %v5888
    %6483 = vmatpush.bf16.msra.mxu0 %v5881
    %6484 = vmatmul.bf16.gmra.mxu0 %v3552
    %v6485 = vpop.f32.mrf.mxu0
    %v6486 = vadd.f32 %v6473, %v6485
    %v6487 = vpop.f32.mrf.mxu0
    %6488 = vdwg.mxu0
    %6489 = vmatpush.bf16.msra.mxu0 %v5539
    %6490 = vmatpush.bf16.msra.mxu0 %v5532
    %6491 = vmatpush.bf16.msra.mxu0 %v5525
    %6492 = vmatpush.bf16.msra.mxu0 %v5518
    %6493 = vmatpush.bf16.msra.mxu0 %v5511
    %6494 = vmatpush.bf16.msra.mxu0 %v5504
    %6495 = vmatpush.bf16.msra.mxu0 %v5497
    %6496 = vmatpush.bf16.msra.mxu0 %v5490
    %6497 = vmatmul.bf16.gmra.mxu0 %v3545
    %v6498 = vpop.f32.mrf.mxu0
    %v6499 = vadd.f32 %v4068, %v6498
    %v6500 = vpop.f32.mrf.mxu0
    %6501 = vdwg.mxu0
    %6502 = vmatpush.bf16.msra.mxu0 %v5595
    %6503 = vmatpush.bf16.msra.mxu0 %v5588
    %6504 = vmatpush.bf16.msra.mxu0 %v5581
    %6505 = vmatpush.bf16.msra.mxu0 %v5574
    %6506 = vmatpush.bf16.msra.mxu0 %v5567
    %6507 = vmatpush.bf16.msra.mxu0 %v5560
    %6508 = vmatpush.bf16.msra.mxu0 %v5553
    %6509 = vmatpush.bf16.msra.mxu0 %v5546
    %6510 = vmatmul.bf16.gmra.mxu0 %v3546
    %v6511 = vpop.f32.mrf.mxu0
    %v6512 = vadd.f32 %v6499, %v6511
    %v6513 = vpop.f32.mrf.mxu0
    %6514 = vdwg.mxu0
    %6515 = vmatpush.bf16.msra.mxu0 %v5651
    %6516 = vmatpush.bf16.msra.mxu0 %v5644
    %6517 = vmatpush.bf16.msra.mxu0 %v5637
    %6518 = vmatpush.bf16.msra.mxu0 %v5630
    %6519 = vmatpush.bf16.msra.mxu0 %v5623
    %6520 = vmatpush.bf16.msra.mxu0 %v5616
    %6521 = vmatpush.bf16.msra.mxu0 %v5609
    %6522 = vmatpush.bf16.msra.mxu0 %v5602
    %6523 = vmatmul.bf16.gmra.mxu0 %v3547
    %v6524 = vpop.f32.mrf.mxu0
    %v6525 = vadd.f32 %v6512, %v6524
    %v6526 = vpop.f32.mrf.mxu0
    %6527 = vdwg.mxu0
    %6528 = vmatpush.bf16.msra.mxu0 %v5707
    %6529 = vmatpush.bf16.msra.mxu0 %v5700
    %6530 = vmatpush.bf16.msra.mxu0 %v5693
    %6531 = vmatpush.bf16.msra.mxu0 %v5686
    %6532 = vmatpush.bf16.msra.mxu0 %v5679
    %6533 = vmatpush.bf16.msra.mxu0 %v5672
    %6534 = vmatpush.bf16.msra.mxu0 %v5665
    %6535 = vmatpush.bf16.msra.mxu0 %v5658
    %6536 = vmatmul.bf16.gmra.mxu0 %v3548
    %v6537 = vpop.f32.mrf.mxu0
    %v6538 = vadd.f32 %v6525, %v6537
    %v6539 = vpop.f32.mrf.mxu0
    %6540 = vdwg.mxu0
    %6541 = vmatpush.bf16.msra.mxu0 %v5763
    %6542 = vmatpush.bf16.msra.mxu0 %v5756
    %6543 = vmatpush.bf16.msra.mxu0 %v5749
    %6544 = vmatpush.bf16.msra.mxu0 %v5742
    %6545 = vmatpush.bf16.msra.mxu0 %v5735
    %6546 = vmatpush.bf16.msra.mxu0 %v5728
    %6547 = vmatpush.bf16.msra.mxu0 %v5721
    %6548 = vmatpush.bf16.msra.mxu0 %v5714
    %6549 = vmatmul.bf16.gmra.mxu0 %v3549
    %v6550 = vpop.f32.mrf.mxu0
    %v6551 = vadd.f32 %v6538, %v6550
    %v6552 = vpop.f32.mrf.mxu0
    %6553 = vdwg.mxu0
    %6554 = vmatpush.bf16.msra.mxu0 %v5819
    %6555 = vmatpush.bf16.msra.mxu0 %v5812
    %6556 = vmatpush.bf16.msra.mxu0 %v5805
    %6557 = vmatpush.bf16.msra.mxu0 %v5798
    %6558 = vmatpush.bf16.msra.mxu0 %v5791
    %6559 = vmatpush.bf16.msra.mxu0 %v5784
    %6560 = vmatpush.bf16.msra.mxu0 %v5777
    %6561 = vmatpush.bf16.msra.mxu0 %v5770
    %6562 = vmatmul.bf16.gmra.mxu0 %v3550
    %v6563 = vpop.f32.mrf.mxu0
    %v6564 = vadd.f32 %v6551, %v6563
    %v6565 = vpop.f32.mrf.mxu0
    %6566 = vdwg.mxu0
    %6567 = vmatpush.bf16.msra.mxu0 %v5875
    %6568 = vmatpush.bf16.msra.mxu0 %v5868
    %6569 = vmatpush.bf16.msra.mxu0 %v5861
    %6570 = vmatpush.bf16.msra.mxu0 %v5854
    %6571 = vmatpush.bf16.msra.mxu0 %v5847
    %6572 = vmatpush.bf16.msra.mxu0 %v5840
    %6573 = vmatpush.bf16.msra.mxu0 %v5833
    %6574 = vmatpush.bf16.msra.mxu0 %v5826
    %6575 = vmatmul.bf16.gmra.mxu0 %v3551
    %v6576 = vpop.f32.mrf.mxu0
    %v6577 = vadd.f32 %v6564, %v6576
    %v6578 = vpop.f32.mrf.mxu0
    %6579 = vdwg.mxu0
    %6580 = vmatpush.bf16.msra.mxu0 %v5931
    %6581 = vmatpush.bf16.msra.mxu0 %v5924
    %6582 = vmatpush.bf16.msra.mxu0 %v5917
    %6583 = vmatpush.bf16.msra.mxu0 %v5910
    %6584 = vmatpush.bf16.msra.mxu0 %v5903
    %6585 = vmatpush.bf16.msra.mxu0 %v5896
    %6586 = vmatpush.bf16.msra.mxu0 %v5889
    %6587 = vmatpush.bf16.msra.mxu0 %v5882
    %6588 = vmatmul.bf16.gmra.mxu0 %v3552
    %v6589 = vpop.f32.mrf.mxu0
    %v6590 = vadd.f32 %v6577, %v6589
    %v6591 = vpop.f32.mrf.mxu0
    %6592 = vdwg.mxu0
    %6593 = vmatpush.bf16.msra.mxu0 %v5540
    %6594 = vmatpush.bf16.msra.mxu0 %v5533
    %6595 = vmatpush.bf16.msra.mxu0 %v5526
    %6596 = vmatpush.bf16.msra.mxu0 %v5519
    %6597 = vmatpush.bf16.msra.mxu0 %v5512
    %6598 = vmatpush.bf16.msra.mxu0 %v5505
    %6599 = vmatpush.bf16.msra.mxu0 %v5498
    %6600 = vmatpush.bf16.msra.mxu0 %v5491
    %6601 = vmatmul.bf16.gmra.mxu0 %v3545
    %v6602 = vpop.f32.mrf.mxu0
    %v6603 = vadd.f32 %v4069, %v6602
    %v6604 = vpop.f32.mrf.mxu0
    %6605 = vdwg.mxu0
    %6606 = vmatpush.bf16.msra.mxu0 %v5596
    %6607 = vmatpush.bf16.msra.mxu0 %v5589
    %6608 = vmatpush.bf16.msra.mxu0 %v5582
    %6609 = vmatpush.bf16.msra.mxu0 %v5575
    %6610 = vmatpush.bf16.msra.mxu0 %v5568
    %6611 = vmatpush.bf16.msra.mxu0 %v5561
    %6612 = vmatpush.bf16.msra.mxu0 %v5554
    %6613 = vmatpush.bf16.msra.mxu0 %v5547
    %6614 = vmatmul.bf16.gmra.mxu0 %v3546
    %v6615 = vpop.f32.mrf.mxu0
    %v6616 = vadd.f32 %v6603, %v6615
    %v6617 = vpop.f32.mrf.mxu0
    %6618 = vdwg.mxu0
    %6619 = vmatpush.bf16.msra.mxu0 %v5652
    %6620 = vmatpush.bf16.msra.mxu0 %v5645
    %6621 = vmatpush.bf16.msra.mxu0 %v5638
    %6622 = vmatpush.bf16.msra.mxu0 %v5631
    %6623 = vmatpush.bf16.msra.mxu0 %v5624
    %6624 = vmatpush.bf16.msra.mxu0 %v5617
    %6625 = vmatpush.bf16.msra.mxu0 %v5610
    %6626 = vmatpush.bf16.msra.mxu0 %v5603
    %6627 = vmatmul.bf16.gmra.mxu0 %v3547
    %v6628 = vpop.f32.mrf.mxu0
    %v6629 = vadd.f32 %v6616, %v6628
    %v6630 = vpop.f32.mrf.mxu0
    %6631 = vdwg.mxu0
    %6632 = vmatpush.bf16.msra.mxu0 %v5708
    %6633 = vmatpush.bf16.msra.mxu0 %v5701
    %6634 = vmatpush.bf16.msra.mxu0 %v5694
    %6635 = vmatpush.bf16.msra.mxu0 %v5687
    %6636 = vmatpush.bf16.msra.mxu0 %v5680
    %6637 = vmatpush.bf16.msra.mxu0 %v5673
    %6638 = vmatpush.bf16.msra.mxu0 %v5666
    %6639 = vmatpush.bf16.msra.mxu0 %v5659
    %6640 = vmatmul.bf16.gmra.mxu0 %v3548
    %v6641 = vpop.f32.mrf.mxu0
    %v6642 = vadd.f32 %v6629, %v6641
    %v6643 = vpop.f32.mrf.mxu0
    %6644 = vdwg.mxu0
    %6645 = vmatpush.bf16.msra.mxu0 %v5764
    %6646 = vmatpush.bf16.msra.mxu0 %v5757
    %6647 = vmatpush.bf16.msra.mxu0 %v5750
    %6648 = vmatpush.bf16.msra.mxu0 %v5743
    %6649 = vmatpush.bf16.msra.mxu0 %v5736
    %6650 = vmatpush.bf16.msra.mxu0 %v5729
    %6651 = vmatpush.bf16.msra.mxu0 %v5722
    %6652 = vmatpush.bf16.msra.mxu0 %v5715
    %6653 = vmatmul.bf16.gmra.mxu0 %v3549
    %v6654 = vpop.f32.mrf.mxu0
    %v6655 = vadd.f32 %v6642, %v6654
    %v6656 = vpop.f32.mrf.mxu0
    %6657 = vdwg.mxu0
    %6658 = vmatpush.bf16.msra.mxu0 %v5820
    %6659 = vmatpush.bf16.msra.mxu0 %v5813
    %6660 = vmatpush.bf16.msra.mxu0 %v5806
    %6661 = vmatpush.bf16.msra.mxu0 %v5799
    %6662 = vmatpush.bf16.msra.mxu0 %v5792
    %6663 = vmatpush.bf16.msra.mxu0 %v5785
    %6664 = vmatpush.bf16.msra.mxu0 %v5778
    %6665 = vmatpush.bf16.msra.mxu0 %v5771
    %6666 = vmatmul.bf16.gmra.mxu0 %v3550
    %v6667 = vpop.f32.mrf.mxu0
    %v6668 = vadd.f32 %v6655, %v6667
    %v6669 = vpop.f32.mrf.mxu0
    %6670 = vdwg.mxu0
    %6671 = vmatpush.bf16.msra.mxu0 %v5876
    %6672 = vmatpush.bf16.msra.mxu0 %v5869
    %6673 = vmatpush.bf16.msra.mxu0 %v5862
    %6674 = vmatpush.bf16.msra.mxu0 %v5855
    %6675 = vmatpush.bf16.msra.mxu0 %v5848
    %6676 = vmatpush.bf16.msra.mxu0 %v5841
    %6677 = vmatpush.bf16.msra.mxu0 %v5834
    %6678 = vmatpush.bf16.msra.mxu0 %v5827
    %6679 = vmatmul.bf16.gmra.mxu0 %v3551
    %v6680 = vpop.f32.mrf.mxu0
    %v6681 = vadd.f32 %v6668, %v6680
    %v6682 = vpop.f32.mrf.mxu0
    %6683 = vdwg.mxu0
    %6684 = vmatpush.bf16.msra.mxu0 %v5932
    %6685 = vmatpush.bf16.msra.mxu0 %v5925
    %6686 = vmatpush.bf16.msra.mxu0 %v5918
    %6687 = vmatpush.bf16.msra.mxu0 %v5911
    %6688 = vmatpush.bf16.msra.mxu0 %v5904
    %6689 = vmatpush.bf16.msra.mxu0 %v5897
    %6690 = vmatpush.bf16.msra.mxu0 %v5890
    %6691 = vmatpush.bf16.msra.mxu0 %v5883
    %6692 = vmatmul.bf16.gmra.mxu0 %v3552
    %v6693 = vpop.f32.mrf.mxu0
    %v6694 = vadd.f32 %v6681, %v6693
    %v6695 = vpop.f32.mrf.mxu0
    %6696 = vdwg.mxu0
    %6697 = vmatpush.bf16.msra.mxu0 %v5541
    %6698 = vmatpush.bf16.msra.mxu0 %v5534
    %6699 = vmatpush.bf16.msra.mxu0 %v5527
    %6700 = vmatpush.bf16.msra.mxu0 %v5520
    %6701 = vmatpush.bf16.msra.mxu0 %v5513
    %6702 = vmatpush.bf16.msra.mxu0 %v5506
    %6703 = vmatpush.bf16.msra.mxu0 %v5499
    %6704 = vmatpush.bf16.msra.mxu0 %v5492
    %6705 = vmatmul.bf16.gmra.mxu0 %v3545
    %v6706 = vpop.f32.mrf.mxu0
    %v6707 = vadd.f32 %v4070, %v6706
    %v6708 = vpop.f32.mrf.mxu0
    %6709 = vdwg.mxu0
    %6710 = vmatpush.bf16.msra.mxu0 %v5597
    %6711 = vmatpush.bf16.msra.mxu0 %v5590
    %6712 = vmatpush.bf16.msra.mxu0 %v5583
    %6713 = vmatpush.bf16.msra.mxu0 %v5576
    %6714 = vmatpush.bf16.msra.mxu0 %v5569
    %6715 = vmatpush.bf16.msra.mxu0 %v5562
    %6716 = vmatpush.bf16.msra.mxu0 %v5555
    %6717 = vmatpush.bf16.msra.mxu0 %v5548
    %6718 = vmatmul.bf16.gmra.mxu0 %v3546
    %v6719 = vpop.f32.mrf.mxu0
    %v6720 = vadd.f32 %v6707, %v6719
    %v6721 = vpop.f32.mrf.mxu0
    %6722 = vdwg.mxu0
    %6723 = vmatpush.bf16.msra.mxu0 %v5653
    %6724 = vmatpush.bf16.msra.mxu0 %v5646
    %6725 = vmatpush.bf16.msra.mxu0 %v5639
    %6726 = vmatpush.bf16.msra.mxu0 %v5632
    %6727 = vmatpush.bf16.msra.mxu0 %v5625
    %6728 = vmatpush.bf16.msra.mxu0 %v5618
    %6729 = vmatpush.bf16.msra.mxu0 %v5611
    %6730 = vmatpush.bf16.msra.mxu0 %v5604
    %6731 = vmatmul.bf16.gmra.mxu0 %v3547
    %v6732 = vpop.f32.mrf.mxu0
    %v6733 = vadd.f32 %v6720, %v6732
    %v6734 = vpop.f32.mrf.mxu0
    %6735 = vdwg.mxu0
    %6736 = vmatpush.bf16.msra.mxu0 %v5709
    %6737 = vmatpush.bf16.msra.mxu0 %v5702
    %6738 = vmatpush.bf16.msra.mxu0 %v5695
    %6739 = vmatpush.bf16.msra.mxu0 %v5688
    %6740 = vmatpush.bf16.msra.mxu0 %v5681
    %6741 = vmatpush.bf16.msra.mxu0 %v5674
    %6742 = vmatpush.bf16.msra.mxu0 %v5667
    %6743 = vmatpush.bf16.msra.mxu0 %v5660
    %6744 = vmatmul.bf16.gmra.mxu0 %v3548
    %v6745 = vpop.f32.mrf.mxu0
    %v6746 = vadd.f32 %v6733, %v6745
    %v6747 = vpop.f32.mrf.mxu0
    %6748 = vdwg.mxu0
    %6749 = vmatpush.bf16.msra.mxu0 %v5765
    %6750 = vmatpush.bf16.msra.mxu0 %v5758
    %6751 = vmatpush.bf16.msra.mxu0 %v5751
    %6752 = vmatpush.bf16.msra.mxu0 %v5744
    %6753 = vmatpush.bf16.msra.mxu0 %v5737
    %6754 = vmatpush.bf16.msra.mxu0 %v5730
    %6755 = vmatpush.bf16.msra.mxu0 %v5723
    %6756 = vmatpush.bf16.msra.mxu0 %v5716
    %6757 = vmatmul.bf16.gmra.mxu0 %v3549
    %v6758 = vpop.f32.mrf.mxu0
    %v6759 = vadd.f32 %v6746, %v6758
    %v6760 = vpop.f32.mrf.mxu0
    %6761 = vdwg.mxu0
    %6762 = vmatpush.bf16.msra.mxu0 %v5821
    %6763 = vmatpush.bf16.msra.mxu0 %v5814
    %6764 = vmatpush.bf16.msra.mxu0 %v5807
    %6765 = vmatpush.bf16.msra.mxu0 %v5800
    %6766 = vmatpush.bf16.msra.mxu0 %v5793
    %6767 = vmatpush.bf16.msra.mxu0 %v5786
    %6768 = vmatpush.bf16.msra.mxu0 %v5779
    %6769 = vmatpush.bf16.msra.mxu0 %v5772
    %6770 = vmatmul.bf16.gmra.mxu0 %v3550
    %v6771 = vpop.f32.mrf.mxu0
    %v6772 = vadd.f32 %v6759, %v6771
    %v6773 = vpop.f32.mrf.mxu0
    %6774 = vdwg.mxu0
    %6775 = vmatpush.bf16.msra.mxu0 %v5877
    %6776 = vmatpush.bf16.msra.mxu0 %v5870
    %6777 = vmatpush.bf16.msra.mxu0 %v5863
    %6778 = vmatpush.bf16.msra.mxu0 %v5856
    %6779 = vmatpush.bf16.msra.mxu0 %v5849
    %6780 = vmatpush.bf16.msra.mxu0 %v5842
    %6781 = vmatpush.bf16.msra.mxu0 %v5835
    %6782 = vmatpush.bf16.msra.mxu0 %v5828
    %6783 = vmatmul.bf16.gmra.mxu0 %v3551
    %v6784 = vpop.f32.mrf.mxu0
    %v6785 = vadd.f32 %v6772, %v6784
    %v6786 = vpop.f32.mrf.mxu0
    %6787 = vdwg.mxu0
    %6788 = vmatpush.bf16.msra.mxu0 %v5933
    %6789 = vmatpush.bf16.msra.mxu0 %v5926
    %6790 = vmatpush.bf16.msra.mxu0 %v5919
    %6791 = vmatpush.bf16.msra.mxu0 %v5912
    %6792 = vmatpush.bf16.msra.mxu0 %v5905
    %6793 = vmatpush.bf16.msra.mxu0 %v5898
    %6794 = vmatpush.bf16.msra.mxu0 %v5891
    %6795 = vmatpush.bf16.msra.mxu0 %v5884
    %6796 = vmatmul.bf16.gmra.mxu0 %v3552
    %v6797 = vpop.f32.mrf.mxu0
    %v6798 = vadd.f32 %v6785, %v6797
    %v6799 = vpop.f32.mrf.mxu0
    %6800 = vdwg.mxu0
    %6801 = vmatpush.bf16.msra.mxu0 %v5542
    %6802 = vmatpush.bf16.msra.mxu0 %v5535
    %6803 = vmatpush.bf16.msra.mxu0 %v5528
    %6804 = vmatpush.bf16.msra.mxu0 %v5521
    %6805 = vmatpush.bf16.msra.mxu0 %v5514
    %6806 = vmatpush.bf16.msra.mxu0 %v5507
    %6807 = vmatpush.bf16.msra.mxu0 %v5500
    %6808 = vmatpush.bf16.msra.mxu0 %v5493
    %6809 = vmatmul.bf16.gmra.mxu0 %v3545
    %v6810 = vpop.f32.mrf.mxu0
    %v6811 = vadd.f32 %v4071, %v6810
    %v6812 = vpop.f32.mrf.mxu0
    %6813 = vdwg.mxu0
    %6814 = vmatpush.bf16.msra.mxu0 %v5598
    %6815 = vmatpush.bf16.msra.mxu0 %v5591
    %6816 = vmatpush.bf16.msra.mxu0 %v5584
    %6817 = vmatpush.bf16.msra.mxu0 %v5577
    %6818 = vmatpush.bf16.msra.mxu0 %v5570
    %6819 = vmatpush.bf16.msra.mxu0 %v5563
    %6820 = vmatpush.bf16.msra.mxu0 %v5556
    %6821 = vmatpush.bf16.msra.mxu0 %v5549
    %6822 = vmatmul.bf16.gmra.mxu0 %v3546
    %v6823 = vpop.f32.mrf.mxu0
    %v6824 = vadd.f32 %v6811, %v6823
    %v6825 = vpop.f32.mrf.mxu0
    %6826 = vdwg.mxu0
    %6827 = vmatpush.bf16.msra.mxu0 %v5654
    %6828 = vmatpush.bf16.msra.mxu0 %v5647
    %6829 = vmatpush.bf16.msra.mxu0 %v5640
    %6830 = vmatpush.bf16.msra.mxu0 %v5633
    %6831 = vmatpush.bf16.msra.mxu0 %v5626
    %6832 = vmatpush.bf16.msra.mxu0 %v5619
    %6833 = vmatpush.bf16.msra.mxu0 %v5612
    %6834 = vmatpush.bf16.msra.mxu0 %v5605
    %6835 = vmatmul.bf16.gmra.mxu0 %v3547
    %v6836 = vpop.f32.mrf.mxu0
    %v6837 = vadd.f32 %v6824, %v6836
    %v6838 = vpop.f32.mrf.mxu0
    %6839 = vdwg.mxu0
    %6840 = vmatpush.bf16.msra.mxu0 %v5710
    %6841 = vmatpush.bf16.msra.mxu0 %v5703
    %6842 = vmatpush.bf16.msra.mxu0 %v5696
    %6843 = vmatpush.bf16.msra.mxu0 %v5689
    %6844 = vmatpush.bf16.msra.mxu0 %v5682
    %6845 = vmatpush.bf16.msra.mxu0 %v5675
    %6846 = vmatpush.bf16.msra.mxu0 %v5668
    %6847 = vmatpush.bf16.msra.mxu0 %v5661
    %6848 = vmatmul.bf16.gmra.mxu0 %v3548
    %v6849 = vpop.f32.mrf.mxu0
    %v6850 = vadd.f32 %v6837, %v6849
    %v6851 = vpop.f32.mrf.mxu0
    %6852 = vdwg.mxu0
    %6853 = vmatpush.bf16.msra.mxu0 %v5766
    %6854 = vmatpush.bf16.msra.mxu0 %v5759
    %6855 = vmatpush.bf16.msra.mxu0 %v5752
    %6856 = vmatpush.bf16.msra.mxu0 %v5745
    %6857 = vmatpush.bf16.msra.mxu0 %v5738
    %6858 = vmatpush.bf16.msra.mxu0 %v5731
    %6859 = vmatpush.bf16.msra.mxu0 %v5724
    %6860 = vmatpush.bf16.msra.mxu0 %v5717
    %6861 = vmatmul.bf16.gmra.mxu0 %v3549
    %v6862 = vpop.f32.mrf.mxu0
    %v6863 = vadd.f32 %v6850, %v6862
    %v6864 = vpop.f32.mrf.mxu0
    %6865 = vdwg.mxu0
    %6866 = vmatpush.bf16.msra.mxu0 %v5822
    %6867 = vmatpush.bf16.msra.mxu0 %v5815
    %6868 = vmatpush.bf16.msra.mxu0 %v5808
    %6869 = vmatpush.bf16.msra.mxu0 %v5801
    %6870 = vmatpush.bf16.msra.mxu0 %v5794
    %6871 = vmatpush.bf16.msra.mxu0 %v5787
    %6872 = vmatpush.bf16.msra.mxu0 %v5780
    %6873 = vmatpush.bf16.msra.mxu0 %v5773
    %6874 = vmatmul.bf16.gmra.mxu0 %v3550
    %v6875 = vpop.f32.mrf.mxu0
    %v6876 = vadd.f32 %v6863, %v6875
    %v6877 = vpop.f32.mrf.mxu0
    %6878 = vdwg.mxu0
    %6879 = vmatpush.bf16.msra.mxu0 %v5878
    %6880 = vmatpush.bf16.msra.mxu0 %v5871
    %6881 = vmatpush.bf16.msra.mxu0 %v5864
    %6882 = vmatpush.bf16.msra.mxu0 %v5857
    %6883 = vmatpush.bf16.msra.mxu0 %v5850
    %6884 = vmatpush.bf16.msra.mxu0 %v5843
    %6885 = vmatpush.bf16.msra.mxu0 %v5836
    %6886 = vmatpush.bf16.msra.mxu0 %v5829
    %6887 = vmatmul.bf16.gmra.mxu0 %v3551
    %v6888 = vpop.f32.mrf.mxu0
    %v6889 = vadd.f32 %v6876, %v6888
    %v6890 = vpop.f32.mrf.mxu0
    %6891 = vdwg.mxu0
    %6892 = vmatpush.bf16.msra.mxu0 %v5934
    %6893 = vmatpush.bf16.msra.mxu0 %v5927
    %6894 = vmatpush.bf16.msra.mxu0 %v5920
    %6895 = vmatpush.bf16.msra.mxu0 %v5913
    %6896 = vmatpush.bf16.msra.mxu0 %v5906
    %6897 = vmatpush.bf16.msra.mxu0 %v5899
    %6898 = vmatpush.bf16.msra.mxu0 %v5892
    %6899 = vmatpush.bf16.msra.mxu0 %v5885
    %6900 = vmatmul.bf16.gmra.mxu0 %v3552
    %v6901 = vpop.f32.mrf.mxu0
    %v6902 = vadd.f32 %v6889, %v6901
    %v6903 = vpop.f32.mrf.mxu0
    %6904 = vdwg.mxu0
    %6905 = vmatpush.bf16.msra.mxu0 %v5543
    %6906 = vmatpush.bf16.msra.mxu0 %v5536
    %6907 = vmatpush.bf16.msra.mxu0 %v5529
    %6908 = vmatpush.bf16.msra.mxu0 %v5522
    %6909 = vmatpush.bf16.msra.mxu0 %v5515
    %6910 = vmatpush.bf16.msra.mxu0 %v5508
    %6911 = vmatpush.bf16.msra.mxu0 %v5501
    %6912 = vmatpush.bf16.msra.mxu0 %v5494
    %6913 = vmatmul.bf16.gmra.mxu0 %v3545
    %v6914 = vpop.f32.mrf.mxu0
    %v6915 = vadd.f32 %v4072, %v6914
    %v6916 = vpop.f32.mrf.mxu0
    %6917 = vdwg.mxu0
    %6918 = vmatpush.bf16.msra.mxu0 %v5599
    %6919 = vmatpush.bf16.msra.mxu0 %v5592
    %6920 = vmatpush.bf16.msra.mxu0 %v5585
    %6921 = vmatpush.bf16.msra.mxu0 %v5578
    %6922 = vmatpush.bf16.msra.mxu0 %v5571
    %6923 = vmatpush.bf16.msra.mxu0 %v5564
    %6924 = vmatpush.bf16.msra.mxu0 %v5557
    %6925 = vmatpush.bf16.msra.mxu0 %v5550
    %6926 = vmatmul.bf16.gmra.mxu0 %v3546
    %v6927 = vpop.f32.mrf.mxu0
    %v6928 = vadd.f32 %v6915, %v6927
    %v6929 = vpop.f32.mrf.mxu0
    %6930 = vdwg.mxu0
    %6931 = vmatpush.bf16.msra.mxu0 %v5655
    %6932 = vmatpush.bf16.msra.mxu0 %v5648
    %6933 = vmatpush.bf16.msra.mxu0 %v5641
    %6934 = vmatpush.bf16.msra.mxu0 %v5634
    %6935 = vmatpush.bf16.msra.mxu0 %v5627
    %6936 = vmatpush.bf16.msra.mxu0 %v5620
    %6937 = vmatpush.bf16.msra.mxu0 %v5613
    %6938 = vmatpush.bf16.msra.mxu0 %v5606
    %6939 = vmatmul.bf16.gmra.mxu0 %v3547
    %v6940 = vpop.f32.mrf.mxu0
    %v6941 = vadd.f32 %v6928, %v6940
    %v6942 = vpop.f32.mrf.mxu0
    %6943 = vdwg.mxu0
    %6944 = vmatpush.bf16.msra.mxu0 %v5711
    %6945 = vmatpush.bf16.msra.mxu0 %v5704
    %6946 = vmatpush.bf16.msra.mxu0 %v5697
    %6947 = vmatpush.bf16.msra.mxu0 %v5690
    %6948 = vmatpush.bf16.msra.mxu0 %v5683
    %6949 = vmatpush.bf16.msra.mxu0 %v5676
    %6950 = vmatpush.bf16.msra.mxu0 %v5669
    %6951 = vmatpush.bf16.msra.mxu0 %v5662
    %6952 = vmatmul.bf16.gmra.mxu0 %v3548
    %v6953 = vpop.f32.mrf.mxu0
    %v6954 = vadd.f32 %v6941, %v6953
    %v6955 = vpop.f32.mrf.mxu0
    %6956 = vdwg.mxu0
    %6957 = vmatpush.bf16.msra.mxu0 %v5767
    %6958 = vmatpush.bf16.msra.mxu0 %v5760
    %6959 = vmatpush.bf16.msra.mxu0 %v5753
    %6960 = vmatpush.bf16.msra.mxu0 %v5746
    %6961 = vmatpush.bf16.msra.mxu0 %v5739
    %6962 = vmatpush.bf16.msra.mxu0 %v5732
    %6963 = vmatpush.bf16.msra.mxu0 %v5725
    %6964 = vmatpush.bf16.msra.mxu0 %v5718
    %6965 = vmatmul.bf16.gmra.mxu0 %v3549
    %v6966 = vpop.f32.mrf.mxu0
    %v6967 = vadd.f32 %v6954, %v6966
    %v6968 = vpop.f32.mrf.mxu0
    %6969 = vdwg.mxu0
    %6970 = vmatpush.bf16.msra.mxu0 %v5823
    %6971 = vmatpush.bf16.msra.mxu0 %v5816
    %6972 = vmatpush.bf16.msra.mxu0 %v5809
    %6973 = vmatpush.bf16.msra.mxu0 %v5802
    %6974 = vmatpush.bf16.msra.mxu0 %v5795
    %6975 = vmatpush.bf16.msra.mxu0 %v5788
    %6976 = vmatpush.bf16.msra.mxu0 %v5781
    %6977 = vmatpush.bf16.msra.mxu0 %v5774
    %6978 = vmatmul.bf16.gmra.mxu0 %v3550
    %v6979 = vpop.f32.mrf.mxu0
    %v6980 = vadd.f32 %v6967, %v6979
    %v6981 = vpop.f32.mrf.mxu0
    %6982 = vdwg.mxu0
    %6983 = vmatpush.bf16.msra.mxu0 %v5879
    %6984 = vmatpush.bf16.msra.mxu0 %v5872
    %6985 = vmatpush.bf16.msra.mxu0 %v5865
    %6986 = vmatpush.bf16.msra.mxu0 %v5858
    %6987 = vmatpush.bf16.msra.mxu0 %v5851
    %6988 = vmatpush.bf16.msra.mxu0 %v5844
    %6989 = vmatpush.bf16.msra.mxu0 %v5837
    %6990 = vmatpush.bf16.msra.mxu0 %v5830
    %6991 = vmatmul.bf16.gmra.mxu0 %v3551
    %v6992 = vpop.f32.mrf.mxu0
    %v6993 = vadd.f32 %v6980, %v6992
    %v6994 = vpop.f32.mrf.mxu0
    %6995 = vdwg.mxu0
    %6996 = vmatpush.bf16.msra.mxu0 %v5935
    %6997 = vmatpush.bf16.msra.mxu0 %v5928
    %6998 = vmatpush.bf16.msra.mxu0 %v5921
    %6999 = vmatpush.bf16.msra.mxu0 %v5914
    %7000 = vmatpush.bf16.msra.mxu0 %v5907
    %7001 = vmatpush.bf16.msra.mxu0 %v5900
    %7002 = vmatpush.bf16.msra.mxu0 %v5893
    %7003 = vmatpush.bf16.msra.mxu0 %v5886
    %7004 = vmatmul.bf16.gmra.mxu0 %v3552
    %v7005 = vpop.f32.mrf.mxu0
    %v7006 = vadd.f32 %v6993, %v7005
    %v7007 = vpop.f32.mrf.mxu0
    %7008 = vdwg.mxu0
    %7009 = vmatpush.bf16.msra.mxu0 %v5544
    %7010 = vmatpush.bf16.msra.mxu0 %v5537
    %7011 = vmatpush.bf16.msra.mxu0 %v5530
    %7012 = vmatpush.bf16.msra.mxu0 %v5523
    %7013 = vmatpush.bf16.msra.mxu0 %v5516
    %7014 = vmatpush.bf16.msra.mxu0 %v5509
    %7015 = vmatpush.bf16.msra.mxu0 %v5502
    %7016 = vmatpush.bf16.msra.mxu0 %v5495
    %7017 = vmatmul.bf16.gmra.mxu0 %v3545
    %v7018 = vpop.f32.mrf.mxu0
    %v7019 = vadd.f32 %v4073, %v7018
    %v7020 = vpop.f32.mrf.mxu0
    %7021 = vdwg.mxu0
    %7022 = vmatpush.bf16.msra.mxu0 %v5600
    %7023 = vmatpush.bf16.msra.mxu0 %v5593
    %7024 = vmatpush.bf16.msra.mxu0 %v5586
    %7025 = vmatpush.bf16.msra.mxu0 %v5579
    %7026 = vmatpush.bf16.msra.mxu0 %v5572
    %7027 = vmatpush.bf16.msra.mxu0 %v5565
    %7028 = vmatpush.bf16.msra.mxu0 %v5558
    %7029 = vmatpush.bf16.msra.mxu0 %v5551
    %7030 = vmatmul.bf16.gmra.mxu0 %v3546
    %v7031 = vpop.f32.mrf.mxu0
    %v7032 = vadd.f32 %v7019, %v7031
    %v7033 = vpop.f32.mrf.mxu0
    %7034 = vdwg.mxu0
    %7035 = vmatpush.bf16.msra.mxu0 %v5656
    %7036 = vmatpush.bf16.msra.mxu0 %v5649
    %7037 = vmatpush.bf16.msra.mxu0 %v5642
    %7038 = vmatpush.bf16.msra.mxu0 %v5635
    %7039 = vmatpush.bf16.msra.mxu0 %v5628
    %7040 = vmatpush.bf16.msra.mxu0 %v5621
    %7041 = vmatpush.bf16.msra.mxu0 %v5614
    %7042 = vmatpush.bf16.msra.mxu0 %v5607
    %7043 = vmatmul.bf16.gmra.mxu0 %v3547
    %v7044 = vpop.f32.mrf.mxu0
    %v7045 = vadd.f32 %v7032, %v7044
    %v7046 = vpop.f32.mrf.mxu0
    %7047 = vdwg.mxu0
    %7048 = vmatpush.bf16.msra.mxu0 %v5712
    %7049 = vmatpush.bf16.msra.mxu0 %v5705
    %7050 = vmatpush.bf16.msra.mxu0 %v5698
    %7051 = vmatpush.bf16.msra.mxu0 %v5691
    %7052 = vmatpush.bf16.msra.mxu0 %v5684
    %7053 = vmatpush.bf16.msra.mxu0 %v5677
    %7054 = vmatpush.bf16.msra.mxu0 %v5670
    %7055 = vmatpush.bf16.msra.mxu0 %v5663
    %7056 = vmatmul.bf16.gmra.mxu0 %v3548
    %v7057 = vpop.f32.mrf.mxu0
    %v7058 = vadd.f32 %v7045, %v7057
    %v7059 = vpop.f32.mrf.mxu0
    %7060 = vdwg.mxu0
    %7061 = vmatpush.bf16.msra.mxu0 %v5768
    %7062 = vmatpush.bf16.msra.mxu0 %v5761
    %7063 = vmatpush.bf16.msra.mxu0 %v5754
    %7064 = vmatpush.bf16.msra.mxu0 %v5747
    %7065 = vmatpush.bf16.msra.mxu0 %v5740
    %7066 = vmatpush.bf16.msra.mxu0 %v5733
    %7067 = vmatpush.bf16.msra.mxu0 %v5726
    %7068 = vmatpush.bf16.msra.mxu0 %v5719
    %7069 = vmatmul.bf16.gmra.mxu0 %v3549
    %v7070 = vpop.f32.mrf.mxu0
    %v7071 = vadd.f32 %v7058, %v7070
    %v7072 = vpop.f32.mrf.mxu0
    %7073 = vdwg.mxu0
    %7074 = vmatpush.bf16.msra.mxu0 %v5824
    %7075 = vmatpush.bf16.msra.mxu0 %v5817
    %7076 = vmatpush.bf16.msra.mxu0 %v5810
    %7077 = vmatpush.bf16.msra.mxu0 %v5803
    %7078 = vmatpush.bf16.msra.mxu0 %v5796
    %7079 = vmatpush.bf16.msra.mxu0 %v5789
    %7080 = vmatpush.bf16.msra.mxu0 %v5782
    %7081 = vmatpush.bf16.msra.mxu0 %v5775
    %7082 = vmatmul.bf16.gmra.mxu0 %v3550
    %v7083 = vpop.f32.mrf.mxu0
    %v7084 = vadd.f32 %v7071, %v7083
    %v7085 = vpop.f32.mrf.mxu0
    %7086 = vdwg.mxu0
    %7087 = vmatpush.bf16.msra.mxu0 %v5880
    %7088 = vmatpush.bf16.msra.mxu0 %v5873
    %7089 = vmatpush.bf16.msra.mxu0 %v5866
    %7090 = vmatpush.bf16.msra.mxu0 %v5859
    %7091 = vmatpush.bf16.msra.mxu0 %v5852
    %7092 = vmatpush.bf16.msra.mxu0 %v5845
    %7093 = vmatpush.bf16.msra.mxu0 %v5838
    %7094 = vmatpush.bf16.msra.mxu0 %v5831
    %7095 = vmatmul.bf16.gmra.mxu0 %v3551
    %v7096 = vpop.f32.mrf.mxu0
    %v7097 = vadd.f32 %v7084, %v7096
    %v7098 = vpop.f32.mrf.mxu0
    %7099 = vdwg.mxu0
    %7100 = vmatpush.bf16.msra.mxu0 %v5936
    %7101 = vmatpush.bf16.msra.mxu0 %v5929
    %7102 = vmatpush.bf16.msra.mxu0 %v5922
    %7103 = vmatpush.bf16.msra.mxu0 %v5915
    %7104 = vmatpush.bf16.msra.mxu0 %v5908
    %7105 = vmatpush.bf16.msra.mxu0 %v5901
    %7106 = vmatpush.bf16.msra.mxu0 %v5894
    %7107 = vmatpush.bf16.msra.mxu0 %v5887
    %7108 = vmatmul.bf16.gmra.mxu0 %v3552
    %v7109 = vpop.f32.mrf.mxu0
    %v7110 = vadd.f32 %v7097, %v7109
    %v7111 = vpop.f32.mrf.mxu0
    %7112 = vdwg.mxu0
    %v7113 = vtanh.pop %v6486
    %v7114 = vtanh.pop %v6590
    %v7115 = vtanh.pop %v6694
    %v7116 = vtanh.pop %v6798
    %v7117 = vtanh.pop %v6902
    %v7118 = vtanh.pop %v7006
    %v7119 = vtanh.pop %v7110
    %7120 = vst [vmem:[#allocation25] sm:$0xff] %v7113
    %7121 = vst [vmem:[#allocation25 + $0x8] sm:$0xff] %v7114
    %7122 = vst [vmem:[#allocation25 + $0x10] sm:$0xff] %v7115
    %7123 = vst [vmem:[#allocation25 + $0x18] sm:$0xff] %v7116
    %7124 = vst [vmem:[#allocation25 + $0x20] sm:$0xff] %v7117
    %7125 = vst [vmem:[#allocation25 + $0x28] sm:$0xff] %v7118
    %7126 = vst [vmem:[#allocation25 + $0x30] sm:$0xff] %v7119
    // Predicated region
    $region114: #{tpu_custom_call.1} parent=1 // pred_check
      _
    $region115: #{tpu_custom_call.1} parent=1 // pred_check_branch
      %7128 = sbr.rel (0) target = $region117
    $region116: #{tpu_custom_call.1} parent=1 // pred_region
      %7130 = vsyncadd [#allocation4], 0
      %s7132 = sshll.u32 [#allocation25], 4
      %s7133 = int_to_ptr.vmem [resolvable:$true] %s7132
      %s7134 = sshll.u32 %s14, 4
      %s7135 = int_to_ptr.hbm [resolvable:$true] %s7134
      %7137 = dma.vmem_to_hbm [thread:$0]  %s7133, 896, %s7135, [#allocation4]
    $region117: #{tpu_custom_call.1} parent=1 // pred_fallthru
      _
    // Predicated region
    $region118: #{tpu_custom_call.1} parent=1 // pred_check
      _
    $region119: #{tpu_custom_call.1} parent=1 // pred_check_branch
      %7139 = sbr.rel (0) target = $region121
    $region120: #{tpu_custom_call.1} parent=1 // pred_region
      %7141 = dma.done [#allocation4], 896
    $region121: #{tpu_custom_call.1} parent=1 // pred_fallthru
      _
    %7142 = vsyncpa [#allocation3], 1
    %7143 = vsyncpa [#allocation6], 1
    %7144 = vsyncpa [#allocation9], 1
    %7145 = vsyncpa [#allocation12], 1
    %7146 = vsyncpa [#allocation15], 1
    %7147 = vsyncpa [#allocation18], 1
    %7148 = vsyncpa [#allocation21], 1
    %7149 = vsyncpa [#allocation24], 1
    %7150 = vsyncpa [#allocation4], 1

</llo_original>
